<compile_context>
chip_gen: v7x
topology: tpu7x:2x2x1
jax: 0.10.0
libtpu: 0.0.40
codegen_flags: <defaults>
</compile_context>

<pallas_src>
import functools
import math

import jax
import jax.numpy as jnp
from jax.experimental import pallas as pl
from jax.experimental.pallas import tpu as pltpu

_VMEM_LIMIT_BYTES = 48 * 1024 * 1024   # < v7x 64 MiB physical, > v5e/v6e scoped defaults
_VMEM_TILE_BUDGET = 40 * 1024 * 1024   # leave headroom for compiler temporaries


def _tile_candidates(dim):
    """Tile sizes to try, largest first: the full dim, then 128-multiple divisors."""
    cands = [dim]
    for c in range((dim // 128) * 128, 127, -128):
        if dim % c == 0 and c != dim:
            cands.append(c)
    for c in range((dim // 8) * 8, 7, -8):          # small-shape fallback
        if dim % c == 0 and c not in cands:
            cands.append(c)
            break
    return cands


def _flash_tile(B, T, E, stream_mask):
    """Largest q/kv tile fitting the VMEM budget; prefer >=2 parallel blocks (v7x)."""
    def residency(t):
        bf, f4 = 2, 4
        streamed = 2 * t * E * bf                  # xq + xkv tiles (bf16)
        streamed += E * t * bf                     # transposed output tile (bf16)
        streamed += 3 * E * E * bf                 # Wq / Wk / Wv^T (bf16, resident)
        if stream_mask:
            streamed += t * t * f4                 # f32 additive-mask tile
        scratch = t * E * bf + 2 * t * f4 + E * t * f4   # q, m, l, acc
        temps = 2 * t * t * f4                     # s / p working set
        return 2 * streamed + scratch + temps      # double-buffered pipeline
    cands = _tile_candidates(T)
    fitting = [c for c in cands if residency(c) <= _VMEM_TILE_BUDGET] or [cands[-1]]
    for c in fitting:                              # largest tile giving >=2 parallel blocks
        if B * (T // c) >= 2:
            return c
    return fitting[0]


def _proj_tile(rows, E):
    def residency(t):
        return 2 * (t * E * 2 + E * E * 2 + t * E * 4)
    cands = _tile_candidates(rows)
    fitting = [c for c in cands if residency(c) <= _VMEM_TILE_BUDGET] or [cands[-1]]
    for c in fitting:                              # >=2 row tiles keeps both v7x TCs busy
        if rows // c >= 2:
            return c
    return fitting[0]


def _make_flash_kernel(causal):
    """Fused QKV projection + online-softmax attention for one (batch, q-tile).

    Transposed data flow: s^T = K @ Q^T (tk, tq); softmax statistics are (1, tq);
    V is produced pre-transposed (E, tk); the accumulator is (E, tq).  Every
    matmul is a plain NN / NT MXU contraction and no XLU transpose is emitted.
    """
    def kernel(xq_ref, xkv_ref, wq_ref, wk_ref, wvt_ref, *rest):
        if causal:
            yt_ref, q_scr, m_scr, l_scr, acc_scr = rest
        else:
            maskt_ref, yt_ref, q_scr, m_scr, l_scr, acc_scr = rest

        qi = pl.program_id(1)
        ki = pl.program_id(2)
        nk = pl.num_programs(2)
        tq = q_scr.shape[0]
        tk = xkv_ref.shape[0]
        e = wq_ref.shape[1]
        scale = 1.0 / math.sqrt(e)       # SDPA scale: query last dim == E

        @pl.when(ki == 0)
        def _init():
            q = jnp.dot(xq_ref[...], wq_ref[...],
                        preferred_element_type=jnp.float32)
            q_scr[...] = (q * scale).astype(q_scr.dtype)          # bf16, scale folded in
            m_scr[...] = jnp.full(m_scr.shape, -jnp.inf, jnp.float32)
            l_scr[...] = jnp.zeros(l_scr.shape, jnp.float32)
            acc_scr[...] = jnp.zeros(acc_scr.shape, jnp.float32)

        def _update():
            xkv = xkv_ref[...]                                     # (tk, E) bf16
            k = jnp.dot(xkv, wk_ref[...],
                        preferred_element_type=jnp.float32).astype(jnp.bfloat16)  # (tk, E)
            # V produced already transposed: (E, tk), NT matmul (transpose on MXU operand).
            v_t = jax.lax.dot_general(
                wvt_ref[...], xkv, (((1,), (1,)), ((), ())),
                preferred_element_type=jnp.float32).astype(jnp.bfloat16)          # (E, tk)
            # Transposed scores s^T = K @ Q^T : (tk, tq)  (NT matmul)
            s_t = jax.lax.dot_general(k, q_scr[...], (((1,), (1,)), ((), ())),
                                      preferred_element_type=jnp.float32)
            if causal:
                kpos = ki * tk + jax.lax.broadcasted_iota(jnp.int32, (tk, tq), 0)
                qpos = qi * tq + jax.lax.broadcasted_iota(jnp.int32, (tk, tq), 1)
                s_t = s_t + jnp.where(kpos <= qpos, 0.0, -1e9)     # in-kernel causal mask
            else:
                s_t = s_t + maskt_ref[...].astype(jnp.float32)     # additive user mask

            # Online-softmax update, statistics on the lane axis (1, tq), all f32.
            m_prev = m_scr[...]
            m_new = jnp.maximum(m_prev, jnp.max(s_t, axis=0, keepdims=True))
            alpha = jnp.exp(m_prev - m_new)
            p_t = jnp.exp(s_t - m_new)                             # (tk, tq)
            l_scr[...] = alpha * l_scr[...] + jnp.sum(p_t, axis=0, keepdims=True)
            acc_scr[...] = alpha * acc_scr[...] + jnp.dot(
                v_t, p_t.astype(jnp.bfloat16),
                preferred_element_type=jnp.float32)                # (E, tq), NN matmul
            m_scr[...] = m_new

        if causal:
            # Skip kv tiles entirely above the causal diagonal (kv tile 0 is never skipped,
            # so m/l always become finite before finalize).
            pl.when(ki * tk < (qi + 1) * tq)(_update)
        else:
            _update()

        @pl.when(ki == nk - 1)
        def _finalize():
            inv_l = pl.reciprocal(l_scr[...], approx=True)         # per-column, EUP slot
            yt_ref[...] = (acc_scr[...] * inv_l).astype(yt_ref.dtype)

    return kernel


def _proj_kernel(y_ref, w_ref, o_ref):
    """Output projection tile: (tm, E) @ (E, E), bf16 operands, f32 accumulation."""
    o_ref[...] = jnp.dot(y_ref[...], w_ref[...],
                         preferred_element_type=jnp.float32).astype(o_ref.dtype)


@functools.partial(jax.jit, static_argnames=("num_heads", "causal_mask"))
def causal_self_attention(x, mask, w_qkv_t, w_proj_t, num_heads, causal_mask=False):
    """Eval-mode forward of the PyTorch CausalSelfAttention module.

    x:        (B, T, E);  mask: additive float mask (T,T) or (B,T,T); may be None
              when causal_mask=True (mask is then generated inside the kernel).
    w_qkv_t:  (E, 3E) c_attn weight, pre-transposed so kernels compute x @ W.
    w_proj_t: (E, E)  c_proj weight, pre-transposed.
    """
    B, T, E = x.shape
    # Faithful to the module: head_dim = (3E) // (num_heads*3) == E // num_heads.
    head_dim = (3 * E) // (num_heads * 3)
    assert num_heads * head_dim == E

    # bf16 MXU operands; accumulation stays f32 inside the kernels.
    x_bf = x.astype(jnp.bfloat16)
    w_q = w_qkv_t[:, :E].astype(jnp.bfloat16)
    w_k = w_qkv_t[:, E:2 * E].astype(jnp.bfloat16)
    w_vt = w_qkv_t[:, 2 * E:].T.astype(jnp.bfloat16)    # V weight pre-transposed (E_out, E_in)
    w_p = w_proj_t.astype(jnp.bfloat16)

    tile = _flash_tile(B, T, E, stream_mask=not causal_mask)
    assert T % tile == 0
    tq = tk = tile
    nq, nk = T // tq, T // tk

    in_specs = [
        pl.BlockSpec((pl.Squeezed(), tq, E), lambda b, qi, ki: (b, qi, 0)),  # x rows -> Q
        pl.BlockSpec((pl.Squeezed(), tk, E), lambda b, qi, ki: (b, ki, 0)),  # x rows -> K, V
        pl.BlockSpec((E, E), lambda b, qi, ki: (0, 0)),                      # Wq
        pl.BlockSpec((E, E), lambda b, qi, ki: (0, 0)),                      # Wk
        pl.BlockSpec((E, E), lambda b, qi, ki: (0, 0)),                      # Wv^T
    ]
    operands = [x_bf, x_bf, w_q, w_k, w_vt]
    if not causal_mask:
        # Kernel works on transposed score tiles, so stream the mask pre-transposed
        # (a single (T,T) array shared across batch when 2-D, per SDPA broadcast).
        if mask.ndim == 2:
            operands.append(mask.T)
            in_specs.append(pl.BlockSpec((tk, tq), lambda b, qi, ki: (ki, qi)))
        else:
            operands.append(jnp.swapaxes(mask, -1, -2))
            in_specs.append(pl.BlockSpec((pl.Squeezed(), tk, tq),
                                         lambda b, qi, ki: (b, ki, qi)))

    # --- kernel 1: fused c_attn + flash attention; output written transposed (B,E,T) ---
    y_t = pl.pallas_call(
        _make_flash_kernel(causal_mask),
        out_shape=jax.ShapeDtypeStruct((B, E, T), jnp.bfloat16),
        grid_spec=pltpu.PrefetchScalarGridSpec(
            num_scalar_prefetch=0,
            grid=(B, nq, nk),
            in_specs=in_specs,
            out_specs=pl.BlockSpec((pl.Squeezed(), E, tq),
                                   lambda b, qi, ki: (b, 0, qi)),
            scratch_shapes=[
                pltpu.VMEM((tq, E), jnp.bfloat16),   # scaled Q tile
                pltpu.VMEM((1, tq), jnp.float32),    # running max m (lane-major)
                pltpu.VMEM((1, tq), jnp.float32),    # running sum l (lane-major)
                pltpu.VMEM((E, tq), jnp.float32),    # transposed output accumulator
            ],
        ),
        compiler_params=pltpu.CompilerParams(
            dimension_semantics=("parallel", "parallel", "arbitrary"),
            vmem_limit_bytes=_VMEM_LIMIT_BYTES),
    )(*operands)

    # Faithful y.transpose(1,2).contiguous().view(B,-1,nh*hd): kernel 1 already produced
    # the (B, E, T) layout, so the scramble is a free row-major reshape.
    y_flat = y_t.reshape(B * T, num_heads * head_dim)

    # --- kernel 2: c_proj (resid_dropout is identity in eval mode) ---
    rows = B * T
    tm = _proj_tile(rows, E)
    assert rows % tm == 0
    out = pl.pallas_call(
        _proj_kernel,
        out_shape=jax.ShapeDtypeStruct((rows, E), x.dtype),
        grid=(rows // tm,),
        in_specs=[pl.BlockSpec((tm, E), lambda i: (i, 0)),
                  pl.BlockSpec((E, E), lambda i: (0, 0))],
        out_specs=pl.BlockSpec((tm, E), lambda i: (i, 0)),
        compiler_params=pltpu.CompilerParams(
            dimension_semantics=("parallel",),
            vmem_limit_bytes=_VMEM_LIMIT_BYTES),
    )(y_flat, w_p)
    return out.reshape(B, T, E)


def _reference(x, mask, w_qkv_t, w_proj_t, num_heads):
    """Pure-JAX f32 mirror of the PyTorch forward (eval mode) for validation."""
    B, T, E = x.shape
    qkv = x @ w_qkv_t
    q, k, v = qkv[..., :E], qkv[..., E:2 * E], qkv[..., 2 * E:]
    s = jnp.einsum("bqe,bke->bqk", q, k) / math.sqrt(E) + mask
    p = jax.nn.softmax(s, axis=-1)
    y = jnp.einsum("bqk,bke->bqe", p, v)
    head_dim = (3 * E) // (num_heads * 3)
    y = jnp.transpose(y, (0, 2, 1)).reshape(B, -1, num_heads * head_dim)
    return y @ w_proj_t


if __name__ == "__main__":
    # Lane-dense E (multiple of 128); T tiles cleanly into 128-wide blocks.
    B, T, E = 2, 384, 128
    num_heads = 4

    key = jax.random.PRNGKey(0)
    k_x, k_qkv, k_proj = jax.random.split(key, 3)
    x = jax.random.normal(k_x, (B, T, E), dtype=jnp.float32)

    # nn.Linear(E, 3E, bias=False): weight (3E, E), init U(-1/sqrt(E), 1/sqrt(E));
    # stored transposed so kernels compute x @ W directly.
    bound = 1.0 / math.sqrt(E)
    w_qkv_t = jax.random.uniform(k_qkv, (E, 3 * E), jnp.float32, -bound, bound)
    w_proj_t = jax.random.uniform(k_proj, (E, E), jnp.float32, -bound, bound)

    # Single (T, T) float additive mask (torch SDPA broadcasts it over batch).
    causal = jnp.tril(jnp.ones((T, T), dtype=bool))
    mask = jnp.where(causal, 0.0, -1e9).astype(jnp.float32)

    ref = _reference(x, mask, w_qkv_t, w_proj_t, num_heads)

    # Fast path: causal mask generated in-kernel (no (T,T) HBM stream, masked-tile skip).
    out_c = causal_self_attention(x, None, w_qkv_t, w_proj_t,
                                  num_heads=num_heads, causal_mask=True)
    out_c = jax.block_until_ready(out_c)

    # General path: arbitrary additive mask streamed tile-by-tile.
    out_m = causal_self_attention(x, mask, w_qkv_t, w_proj_t,
                                  num_heads=num_heads, causal_mask=False)
    out_m = jax.block_until_ready(out_m)

    assert out_c.shape == (B, T, E) and out_m.shape == (B, T, E)
    # bf16 MXU operands (with f32 accumulation) + approximate reciprocal => tolerance
    # looser than a pure-f32 run; numerics match a bf16-MXU PyTorch execution.
    assert jnp.allclose(out_c, ref, atol=3e-2, rtol=3e-2), "causal-path mismatch vs reference"
    assert jnp.allclose(out_m, ref, atol=3e-2, rtol=3e-2), "mask-path mismatch vs reference"

    print("KERNEL_OK")
</pallas_src>

<mosaic_0001>
module attributes {stable_mosaic.version = 11 : i64} {
  func.func @_proj_kernel(%arg0: i32, %arg1: memref<384x128xbf16, #tpu.memory_space<vmem>>, %arg2: memref<128x128xbf16, #tpu.memory_space<vmem>>, %arg3: memref<384x128xf32, #tpu.memory_space<vmem>>) attributes {dimension_semantics = [#tpu.dimension_semantics<parallel>], iteration_bounds = array<i64: 2>, scalar_prefetch = 0 : i64, scratch_operands = 0 : i64, tpu.core_type = #tpu.core_type<tc>, window_params = [{transform_indices = @transform_0, window_bounds = array<i64: 384, 128>}, {pipeline_mode = #tpu.pipeline_mode<synchronous>, transform_indices = @transform_1, window_bounds = array<i64: 128, 128>}, {transform_indices = @transform_2, window_bounds = array<i64: 384, 128>}]} {
    %c0 = arith.constant 0 : index
    %c0_0 = arith.constant 0 : index
    %0 = vector.load %arg1[%c0, %c0_0] : memref<384x128xbf16, #tpu.memory_space<vmem>>, vector<384x128xbf16>
    %c0_1 = arith.constant 0 : index
    %c0_2 = arith.constant 0 : index
    %1 = vector.load %arg2[%c0_1, %c0_2] : memref<128x128xbf16, #tpu.memory_space<vmem>>, vector<128x128xbf16>
    %cst = arith.constant dense<0.000000e+00> : vector<384x128xf32>
    %2 = tpu.matmul %0, %1, %cst {dimension_numbers = #tpu.dot_dimension_numbers<[1], [0], [0], [1], [0, 0, 1, 1], [], []>} : vector<384x128xbf16>, vector<128x128xbf16>, vector<384x128xf32> -> vector<384x128xf32>
    %c0_3 = arith.constant 0 : index
    %c0_4 = arith.constant 0 : index
    %3 = vector.load %arg3[%c0_3, %c0_4] : memref<384x128xf32, #tpu.memory_space<vmem>>, vector<384x128xf32>
    tpu.vector_store %arg3[%c0_3, %c0_4], %2 {strides = array<i32>} : memref<384x128xf32, #tpu.memory_space<vmem>>, vector<384x128xf32>,
    return
  }
  func.func @transform_0(%arg0: i32) -> (i32, i32) {
    %c0_i32 = arith.constant 0 : i32
    %c0_i32_0 = arith.constant 0 : i32
    return %arg0, %c0_i32 : i32, i32
  }
  func.func @transform_1(%arg0: i32) -> (i32, i32) {
    %c0_i32 = arith.constant 0 : i32
    %c0_i32_0 = arith.constant 0 : i32
    %c0_i32_1 = arith.constant 0 : i32
    return %c0_i32, %c0_i32_0 : i32, i32
  }
  func.func @transform_2(%arg0: i32) -> (i32, i32) {
    %c0_i32 = arith.constant 0 : i32
    %c0_i32_0 = arith.constant 0 : i32
    return %arg0, %c0_i32 : i32, i32
  }
}

module attributes {stable_mosaic.version = 11 : i64} {
  func.func @kernel(%arg0: i32, %arg1: i32, %arg2: i32, %arg3: memref<1x384x128xbf16, #tpu.memory_space<vmem>>, %arg4: memref<1x384x128xbf16, #tpu.memory_space<vmem>>, %arg5: memref<128x128xbf16, #tpu.memory_space<vmem>>, %arg6: memref<128x128xbf16, #tpu.memory_space<vmem>>, %arg7: memref<128x128xbf16, #tpu.memory_space<vmem>>, %arg8: memref<1x128x384xbf16, #tpu.memory_space<vmem>>, %arg9: memref<384x128xbf16, #tpu.memory_space<vmem>>, %arg10: memref<1x384xf32, #tpu.memory_space<vmem>>, %arg11: memref<1x384xf32, #tpu.memory_space<vmem>>, %arg12: memref<128x384xf32, #tpu.memory_space<vmem>>) attributes {dimension_semantics = [#tpu.dimension_semantics<parallel>, #tpu.dimension_semantics<parallel>, #tpu.dimension_semantics<arbitrary>], iteration_bounds = array<i64: 2, 1, 1>, scalar_prefetch = 0 : i64, scratch_operands = 4 : i64, tpu.core_type = #tpu.core_type<tc>, window_params = [{transform_indices = @transform_0, window_bounds = array<i64: 1, 384, 128>}, {transform_indices = @transform_1, window_bounds = array<i64: 1, 384, 128>}, {pipeline_mode = #tpu.pipeline_mode<synchronous>, transform_indices = @transform_2, window_bounds = array<i64: 128, 128>}, {pipeline_mode = #tpu.pipeline_mode<synchronous>, transform_indices = @transform_3, window_bounds = array<i64: 128, 128>}, {pipeline_mode = #tpu.pipeline_mode<synchronous>, transform_indices = @transform_4, window_bounds = array<i64: 128, 128>}, {transform_indices = @transform_5, window_bounds = array<i64: 1, 128, 384>}]} {
    %c0_i32 = arith.constant 0 : i32
    %0 = arith.cmpi eq, %arg2, %c0_i32 : i32
    %1 = arith.extui %0 : i1 to i32
    %c0_i32_0 = arith.constant 0 : i32
    %2 = arith.cmpi ne, %1, %c0_i32_0 : i32
    scf.if %2 {
      %c0 = arith.constant 0 : index
      %c0_5 = arith.constant 0 : index
      %c0_6 = arith.constant 0 : index
      %12 = vector.load %arg3[%c0, %c0_5, %c0_6] : memref<1x384x128xbf16, #tpu.memory_space<vmem>>, vector<1x384x128xbf16>
      %13 = vector.shape_cast %12 : vector<1x384x128xbf16> to vector<384x128xbf16>
      %c0_7 = arith.constant 0 : index
      %c0_8 = arith.constant 0 : index
      %14 = vector.load %arg5[%c0_7, %c0_8] : memref<128x128xbf16, #tpu.memory_space<vmem>>, vector<128x128xbf16>
      %cst = arith.constant dense<0.000000e+00> : vector<384x128xf32>
      %15 = tpu.matmul %13, %14, %cst {dimension_numbers = #tpu.dot_dimension_numbers<[1], [0], [0], [1], [0, 0, 1, 1], [], []>} : vector<384x128xbf16>, vector<128x128xbf16>, vector<384x128xf32> -> vector<384x128xf32>
      %cst_9 = arith.constant 0.0883883461 : f32
      %16 = vector.broadcast %cst_9 : f32 to vector<384x128xf32>
      %17 = arith.mulf %15, %16 : vector<384x128xf32>
      %18 = arith.truncf %17 : vector<384x128xf32> to vector<384x128xbf16>
      %c0_10 = arith.constant 0 : index
      %c0_11 = arith.constant 0 : index
      %19 = vector.load %arg9[%c0_10, %c0_11] : memref<384x128xbf16, #tpu.memory_space<vmem>>, vector<384x128xbf16>
      tpu.vector_store %arg9[%c0_10, %c0_11], %18 {strides = array<i32>} : memref<384x128xbf16, #tpu.memory_space<vmem>>, vector<384x128xbf16>,
      %cst_12 = arith.constant 0xFF800000 : f32
      %20 = vector.broadcast %cst_12 : f32 to vector<1x384xf32>
      %c0_13 = arith.constant 0 : index
      %c0_14 = arith.constant 0 : index
      %21 = vector.load %arg10[%c0_13, %c0_14] : memref<1x384xf32, #tpu.memory_space<vmem>>, vector<1x384xf32>
      tpu.vector_store %arg10[%c0_13, %c0_14], %20 {strides = array<i32>} : memref<1x384xf32, #tpu.memory_space<vmem>>, vector<1x384xf32>,
      %cst_15 = arith.constant 0.000000e+00 : f32
      %22 = vector.broadcast %cst_15 : f32 to vector<1x384xf32>
      %c0_16 = arith.constant 0 : index
      %c0_17 = arith.constant 0 : index
      %23 = vector.load %arg11[%c0_16, %c0_17] : memref<1x384xf32, #tpu.memory_space<vmem>>, vector<1x384xf32>
      tpu.vector_store %arg11[%c0_16, %c0_17], %22 {strides = array<i32>} : memref<1x384xf32, #tpu.memory_space<vmem>>, vector<1x384xf32>,
      %cst_18 = arith.constant 0.000000e+00 : f32
      %24 = vector.broadcast %cst_18 : f32 to vector<128x384xf32>
      %c0_19 = arith.constant 0 : index
      %c0_20 = arith.constant 0 : index
      %25 = vector.load %arg12[%c0_19, %c0_20] : memref<128x384xf32, #tpu.memory_space<vmem>>, vector<128x384xf32>
      tpu.vector_store %arg12[%c0_19, %c0_20], %24 {strides = array<i32>} : memref<128x384xf32, #tpu.memory_space<vmem>>, vector<128x384xf32>,
    } else {
    }
    %c384_i32 = arith.constant 384 : i32
    %3 = arith.muli %arg2, %c384_i32 : i32
    %c1_i32 = arith.constant 1 : i32
    %4 = arith.addi %arg1, %c1_i32 : i32
    %c384_i32_1 = arith.constant 384 : i32
    %5 = arith.muli %4, %c384_i32_1 : i32
    %6 = arith.cmpi slt, %3, %5 : i32
    %7 = arith.extui %6 : i1 to i32
    %c0_i32_2 = arith.constant 0 : i32
    %8 = arith.cmpi ne, %7, %c0_i32_2 : i32
    scf.if %8 {
      %c0 = arith.constant 0 : index
      %c0_5 = arith.constant 0 : index
      %c0_6 = arith.constant 0 : index
      %12 = vector.load %arg4[%c0, %c0_5, %c0_6] : memref<1x384x128xbf16, #tpu.memory_space<vmem>>, vector<1x384x128xbf16>
      %13 = vector.shape_cast %12 : vector<1x384x128xbf16> to vector<384x128xbf16>
      %c0_7 = arith.constant 0 : index
      %c0_8 = arith.constant 0 : index
      %14 = vector.load %arg6[%c0_7, %c0_8] : memref<128x128xbf16, #tpu.memory_space<vmem>>, vector<128x128xbf16>
      %cst = arith.constant dense<0.000000e+00> : vector<384x128xf32>
      %15 = tpu.matmul %13, %14, %cst {dimension_numbers = #tpu.dot_dimension_numbers<[1], [0], [0], [1], [0, 0, 1, 1], [], []>} : vector<384x128xbf16>, vector<128x128xbf16>, vector<384x128xf32> -> vector<384x128xf32>
      %16 = arith.truncf %15 : vector<384x128xf32> to vector<384x128xbf16>
      %c0_9 = arith.constant 0 : index
      %c0_10 = arith.constant 0 : index
      %17 = vector.load %arg7[%c0_9, %c0_10] : memref<128x128xbf16, #tpu.memory_space<vmem>>, vector<128x128xbf16>
      %cst_11 = arith.constant dense<0.000000e+00> : vector<128x384xf32>
      %18 = tpu.matmul %17, %13, %cst_11 {dimension_numbers = #tpu.dot_dimension_numbers<[1], [1], [0], [0], [0, 0, 1, 0], [], []>} : vector<128x128xbf16>, vector<384x128xbf16>, vector<128x384xf32> -> vector<128x384xf32>
      %19 = arith.truncf %18 : vector<128x384xf32> to vector<128x384xbf16>
      %c0_12 = arith.constant 0 : index
      %c0_13 = arith.constant 0 : index
      %20 = vector.load %arg9[%c0_12, %c0_13] : memref<384x128xbf16, #tpu.memory_space<vmem>>, vector<384x128xbf16>
      %cst_14 = arith.constant dense<0.000000e+00> : vector<384x384xf32>
      %21 = tpu.matmul %16, %20, %cst_14 {dimension_numbers = #tpu.dot_dimension_numbers<[1], [1], [0], [0], [0, 0, 1, 0], [], []>} : vector<384x128xbf16>, vector<384x128xbf16>, vector<384x384xf32> -> vector<384x384xf32>
      %c384_i32_15 = arith.constant 384 : i32
      %22 = arith.muli %arg2, %c384_i32_15 : i32
      %23 = tpu.iota {dimensions = array<i32: 0>} : vector<384x384xi32>
      %24 = vector.broadcast %22 : i32 to vector<384x384xi32>
      %25 = arith.addi %24, %23 : vector<384x384xi32>
      %c384_i32_16 = arith.constant 384 : i32
      %26 = arith.muli %arg1, %c384_i32_16 : i32
      %27 = tpu.iota {dimensions = array<i32: 1>} : vector<384x384xi32>
      %28 = vector.broadcast %26 : i32 to vector<384x384xi32>
      %29 = arith.addi %28, %27 : vector<384x384xi32>
      %30 = arith.cmpi sle, %25, %29 : vector<384x384xi32>
      %cst_17 = arith.constant 0.000000e+00 : f32
      %cst_18 = arith.constant -1.000000e+09 : f32
      %31 = vector.broadcast %cst_17 : f32 to vector<384x384xf32>
      %32 = vector.broadcast %cst_18 : f32 to vector<384x384xf32>
      %33 = arith.select %30, %31, %32 : vector<384x384xi1>, vector<384x384xf32>
      %34 = arith.addf %21, %33 : vector<384x384xf32>
      %c0_19 = arith.constant 0 : index
      %c0_20 = arith.constant 0 : index
      %35 = vector.load %arg10[%c0_19, %c0_20] : memref<1x384xf32, #tpu.memory_space<vmem>>, vector<1x384xf32>
      %cst_21 = arith.constant dense<0xFF800000> : vector<384xf32>
      %36 = vector.multi_reduction <maximumf>, %34, %cst_21 [0] : vector<384x384xf32> to vector<384xf32>
      %37 = vector.shape_cast %36 : vector<384xf32> to vector<1x384xf32>
      %38 = arith.maximumf %35, %37 : vector<1x384xf32>
      %39 = arith.subf %35, %38 : vector<1x384xf32>
      %40 = math.exp %39 : vector<1x384xf32>
      %41 = vector.broadcast %38 : vector<1x384xf32> to vector<384x384xf32>
      %42 = arith.subf %34, %41 : vector<384x384xf32>
      %43 = math.exp %42 : vector<384x384xf32>
      %c0_22 = arith.constant 0 : index
      %c0_23 = arith.constant 0 : index
      %44 = vector.load %arg11[%c0_22, %c0_23] : memref<1x384xf32, #tpu.memory_space<vmem>>, vector<1x384xf32>
      %45 = arith.mulf %40, %44 : vector<1x384xf32>
      %cst_24 = arith.constant dense<0.000000e+00> : vector<384xf32>
      %46 = vector.multi_reduction <add>, %43, %cst_24 [0] : vector<384x384xf32> to vector<384xf32>
      %47 = vector.shape_cast %46 : vector<384xf32> to vector<1x384xf32>
      %48 = arith.addf %45, %47 : vector<1x384xf32>
      %c0_25 = arith.constant 0 : index
      %c0_26 = arith.constant 0 : index
      %49 = vector.load %arg11[%c0_25, %c0_26] : memref<1x384xf32, #tpu.memory_space<vmem>>, vector<1x384xf32>
      tpu.vector_store %arg11[%c0_25, %c0_26], %48 {strides = array<i32>} : memref<1x384xf32, #tpu.memory_space<vmem>>, vector<1x384xf32>,
      %c0_27 = arith.constant 0 : index
      %c0_28 = arith.constant 0 : index
      %50 = vector.load %arg12[%c0_27, %c0_28] : memref<128x384xf32, #tpu.memory_space<vmem>>, vector<128x384xf32>
      %51 = vector.broadcast %40 : vector<1x384xf32> to vector<128x384xf32>
      %52 = arith.mulf %51, %50 : vector<128x384xf32>
      %53 = arith.truncf %43 : vector<384x384xf32> to vector<384x384xbf16>
      %cst_29 = arith.constant dense<0.000000e+00> : vector<128x384xf32>
      %54 = tpu.matmul %19, %53, %cst_29 {dimension_numbers = #tpu.dot_dimension_numbers<[1], [0], [0], [1], [0, 0, 1, 1], [], []>} : vector<128x384xbf16>, vector<384x384xbf16>, vector<128x384xf32> -> vector<128x384xf32>
      %55 = arith.addf %52, %54 : vector<128x384xf32>
      %c0_30 = arith.constant 0 : index
      %c0_31 = arith.constant 0 : index
      %56 = vector.load %arg12[%c0_30, %c0_31] : memref<128x384xf32, #tpu.memory_space<vmem>>, vector<128x384xf32>
      tpu.vector_store %arg12[%c0_30, %c0_31], %55 {strides = array<i32>} : memref<128x384xf32, #tpu.memory_space<vmem>>, vector<128x384xf32>,
      %c0_32 = arith.constant 0 : index
      %c0_33 = arith.constant 0 : index
      %57 = vector.load %arg10[%c0_32, %c0_33] : memref<1x384xf32, #tpu.memory_space<vmem>>, vector<1x384xf32>
      tpu.vector_store %arg10[%c0_32, %c0_33], %38 {strides = array<i32>} : memref<1x384xf32, #tpu.memory_space<vmem>>, vector<1x384xf32>,
    } else {
    }
    %c0_i32_3 = arith.constant 0 : i32
    %9 = arith.cmpi eq, %arg2, %c0_i32_3 : i32
    %10 = arith.extui %9 : i1 to i32
    %c0_i32_4 = arith.constant 0 : i32
    %11 = arith.cmpi ne, %10, %c0_i32_4 : i32
    scf.if %11 {
      %c0 = arith.constant 0 : index
      %c0_5 = arith.constant 0 : index
      %12 = vector.load %arg11[%c0, %c0_5] : memref<1x384xf32, #tpu.memory_space<vmem>>, vector<1x384xf32>
      %13 = tpu.reciprocal %12 {approx = true} : vector<1x384xf32> -> vector<1x384xf32>
      %c0_6 = arith.constant 0 : index
      %c0_7 = arith.constant 0 : index
      %14 = vector.load %arg12[%c0_6, %c0_7] : memref<128x384xf32, #tpu.memory_space<vmem>>, vector<128x384xf32>
      %15 = vector.broadcast %13 : vector<1x384xf32> to vector<128x384xf32>
      %16 = arith.mulf %14, %15 : vector<128x384xf32>
      %17 = arith.truncf %16 : vector<128x384xf32> to vector<128x384xbf16>
      %c0_8 = arith.constant 0 : index
      %c0_9 = arith.constant 0 : index
      %c0_10 = arith.constant 0 : index
      %18 = vector.load %arg8[%c0_8, %c0_9, %c0_10] : memref<1x128x384xbf16, #tpu.memory_space<vmem>>, vector<1x128x384xbf16>
      %19 = vector.shape_cast %18 : vector<1x128x384xbf16> to vector<128x384xbf16>
      %20 = vector.shape_cast %17 : vector<128x384xbf16> to vector<1x128x384xbf16>
      tpu.vector_store %arg8[%c0_8, %c0_9, %c0_10], %20 {strides = array<i32>} : memref<1x128x384xbf16, #tpu.memory_space<vmem>>, vector<1x128x384xbf16>,
    } else {
    }
    return
  }
  func.func @transform_0(%arg0: i32, %arg1: i32, %arg2: i32) -> (i32, i32, i32) {
    %c0_i32 = arith.constant 0 : i32
    %c0_i32_0 = arith.constant 0 : i32
    return %arg0, %arg1, %c0_i32 : i32, i32, i32
  }
  func.func @transform_1(%arg0: i32, %arg1: i32, %arg2: i32) -> (i32, i32, i32) {
    %c0_i32 = arith.constant 0 : i32
    %c0_i32_0 = arith.constant 0 : i32
    return %arg0, %arg2, %c0_i32 : i32, i32, i32
  }
  func.func @transform_2(%arg0: i32, %arg1: i32, %arg2: i32) -> (i32, i32) {
    %c0_i32 = arith.constant 0 : i32
    %c0_i32_0 = arith.constant 0 : i32
    %c0_i32_1 = arith.constant 0 : i32
    return %c0_i32, %c0_i32_0 : i32, i32
  }
  func.func @transform_3(%arg0: i32, %arg1: i32, %arg2: i32) -> (i32, i32) {
    %c0_i32 = arith.constant 0 : i32
    %c0_i32_0 = arith.constant 0 : i32
    %c0_i32_1 = arith.constant 0 : i32
    return %c0_i32, %c0_i32_0 : i32, i32
  }
  func.func @transform_4(%arg0: i32, %arg1: i32, %arg2: i32) -> (i32, i32) {
    %c0_i32 = arith.constant 0 : i32
    %c0_i32_0 = arith.constant 0 : i32
    %c0_i32_1 = arith.constant 0 : i32
    return %c0_i32, %c0_i32_0 : i32, i32
  }
  func.func @transform_5(%arg0: i32, %arg1: i32, %arg2: i32) -> (i32, i32, i32) {
    %c0_i32 = arith.constant 0 : i32
    %c0_i32_0 = arith.constant 0 : i32
    return %arg0, %c0_i32, %arg1 : i32, i32, i32
  }
}

</mosaic_0001>

<llo_original>
// kernel: causal_self_attention.3
$region0: #{causal_self_attention.3}
  #allocation0 [shape = 'u32[]', space=smem, size = 0x4, offset = 0x4, fixed_abs, tag = 'smem constant byte address 0x4 - core index']
  #allocation1 [shape = 'u32[144,128]{1,0:T(1,128)}', space=vmem, size = 0x12000, scoped, tag = 'internal scratch']
  %s0 = inlined_call_operand.vmem [shape: bf16[768,128], index: 0, kind: input, shape index: {}]
  %s1 = inlined_call_operand.vmem [shape: bf16[128,128], index: 1, kind: input, shape index: {}]
  %s2 = inlined_call_operand.hbm [shape: f32[768,128], index: 2, kind: output, shape index: {}]
  %s3 = sld [smem:[#allocation0]]
  $region41: #{causal_self_attention.3} parent=0
    _
  %s5 = ssub.s32 1, %s3
  %s6 = scalar_select 0, %s5, %s3
  $region1: #{causal_self_attention.3} parent=0
    #allocation2 [shape = 'u8[393216]{0}', space=vmem, size = 0x60000, scoped, tag = 'output window, operand 0']
    #allocation3 [shape = 's32[2]{0}', space=sflag, size = 0x8, scoped, tag = 'scoped memory for causal_self_attention.3']
    %7 = vsyncpa [#allocation3], 0
    %s8 = scalar_lea.sflag [#allocation3], 1
    %9 = vsyncpa %s8, 0
    loop: start=0, step=1, limit=4
    $region2: #{causal_self_attention.3} parent=1 // loop_pre_header
      _
    $region3: #{causal_self_attention.3} parent=1 // loop_header
      %s11 = sphi 0, %s15
      %p12 = scmp.ge.s32.totalorder %s11, 4
      %s21 = sphi 0, %s23
      %s24 = sphi 0, %s21
      %s25 = sphi 0, %s24
      %s41 = sphi 0, %s25
      %s45 = sphi 0, %s45
      %s47 = sphi 0, %s45
      %s48 = sphi 0, %s47
      %s62 = sphi 0, %s48
      %s68 = sphi 0, %s70
      %s71 = sphi 0, %s68
      %s72 = sphi 0, %s71
      %s88 = sphi 0, %s72
    $region4: #{causal_self_attention.3} parent=1 // loop_header_branch
      %14 = sbr.rel (%p12) target = $region8
    $region5: #{causal_self_attention.3} parent=1 // loop_body
      %s16 = ssub.s32 %s11, 1
      %s17 = ssub.s32 %s11, 2
      %s18 = sadd.s32 %s11, 1
      %s19 = ssub.s32 %s11, %s18
      %p20 = scmp.eq.s32.totalorder %s19, 0
      %s22 = sadd.s32 %s21, 1
      %s23 = scalar_select %p20, %s21, %s22
      %p26 = pneg %p20
      %p27 = scmp.eq.s32.totalorder %s11, 1
      %p28 = por %p26, %p27
      %p29 = scmp.ne.s32.totalorder %s21, %s24
      %p30 = scmp.eq.s32.totalorder %s11, 0
      %p31 = por %p29, %p30
      %p32 = scmp.ne.s32.totalorder %s21, %s24
      %p33 = scmp.eq.s32.totalorder %s16, 1
      %p34 = por %p32, %p33
      %p35 = scmp.ne.s32.totalorder %s24, %s25
      %p36 = scmp.eq.s32.totalorder %s16, 0
      %p37 = por %p35, %p36
      %p38 = scmp.ne.s32.totalorder %s24, %s25
      %p39 = scmp.eq.s32.totalorder %s17, 1
      %p40 = por %p38, %p39
      %p42 = scmp.ne.s32.totalorder %s25, %s41
      %p43 = scmp.eq.s32.totalorder %s17, 0
      %p44 = por %p42, %p43
      %s46 = sadd.s32 %s45, 1
      %p49 = scmp.eq.s32.totalorder %s11, 1
      %p50 = scmp.ne.s32.totalorder %s45, %s47
      %p51 = scmp.eq.s32.totalorder %s11, 0
      %p52 = por %p50, %p51
      %p53 = scmp.ne.s32.totalorder %s45, %s47
      %p54 = scmp.eq.s32.totalorder %s16, 1
      %p55 = por %p53, %p54
      %p56 = scmp.ne.s32.totalorder %s47, %s48
      %p57 = scmp.eq.s32.totalorder %s16, 0
      %p58 = por %p56, %p57
      %p59 = scmp.ne.s32.totalorder %s47, %s48
      %p60 = scmp.eq.s32.totalorder %s17, 1
      %p61 = por %p59, %p60
      %p63 = scmp.ne.s32.totalorder %s48, %s62
      %p64 = scmp.eq.s32.totalorder %s17, 0
      %p65 = por %p63, %p64
      %s66 = ssub.s32 %s11, %s18
      %p67 = scmp.eq.s32.totalorder %s66, 0
      %s69 = sadd.s32 %s68, 1
      %s70 = scalar_select %p67, %s68, %s69
      %p73 = pneg %p67
      %p74 = scmp.eq.s32.totalorder %s11, 1
      %p75 = por %p73, %p74
      %p76 = scmp.ne.s32.totalorder %s68, %s71
      %p77 = scmp.eq.s32.totalorder %s11, 0
      %p78 = por %p76, %p77
      %p79 = scmp.ne.s32.totalorder %s68, %s71
      %p80 = scmp.eq.s32.totalorder %s16, 1
      %p81 = por %p79, %p80
      %p82 = scmp.ne.s32.totalorder %s71, %s72
      %p83 = scmp.eq.s32.totalorder %s16, 0
      %p84 = por %p82, %p83
      %p85 = scmp.ne.s32.totalorder %s71, %s72
      %p86 = scmp.eq.s32.totalorder %s17, 1
      %p87 = por %p85, %p86
      %p89 = scmp.ne.s32.totalorder %s72, %s88
      %p90 = scmp.eq.s32.totalorder %s17, 0
      %p91 = por %p89, %p90
      %p92 = scmp.le.s32.totalorder 1, %s11
      %p93 = scmp.lt.s32.totalorder %s11, 3
      %p94 = pnand %p92, %p93
      %p95 = pneg %p94
      // Predicated region
      $region9: #{causal_self_attention.3} parent=5 // pred_check
        _
      $region10: #{causal_self_attention.3} parent=5 // pred_check_branch
        %97 = sbr.rel (%p94) target = $region12
      $region11: #{causal_self_attention.3} parent=5 // pred_region
        %s98 = ssub.s32 %s11, 1
        // Predicated region
        $region13: #{causal_self_attention.3} parent=11 // pred_check
          %p99 = pneg %p58
        $region14: #{causal_self_attention.3} parent=11 // pred_check_branch
          %101 = sbr.rel (%p99) target = $region16
        $region15: #{causal_self_attention.3} parent=11 // pred_region
          _
        $region16: #{causal_self_attention.3} parent=11 // pred_fallthru
          _
      $region12: #{causal_self_attention.3} parent=5 // pred_fallthru
        _
      %p102 = scmp.lt.s32.totalorder %s11, 2
      // Predicated region
      $region17: #{causal_self_attention.3} parent=5 // pred_check
        %p103 = pneg %p102
      $region18: #{causal_self_attention.3} parent=5 // pred_check_branch
        %105 = sbr.rel (%p103) target = $region20
      $region19: #{causal_self_attention.3} parent=5 // pred_region
        // Predicated region
        $region21: #{causal_self_attention.3} parent=19 // pred_check
          %p106 = pneg %p31
        $region22: #{causal_self_attention.3} parent=19 // pred_check_branch
          %108 = sbr.rel (%p106) target = $region24
        $region23: #{causal_self_attention.3} parent=19 // pred_region
          %s109 = smul.u32 48, %s11
          %p110 = scmp.lt.s32.totalorder %s109, 95
          %s111 = scalar_select %p110, %s109, 95
          %s112 = smul.addr %s111, 4
          %s113 = scalar_lea.vmem %s0, %s112
          %s114 = smul.u32 48, %s11
        $region24: #{causal_self_attention.3} parent=19 // pred_fallthru
          _
      $region20: #{causal_self_attention.3} parent=5 // pred_fallthru
        _
      %p115 = scmp.le.s32.totalorder 1, %s11
      %p116 = scmp.lt.s32.totalorder %s11, 3
      %p117 = pnand %p115, %p116
      %p118 = pneg %p117
      // Predicated region
      $region25: #{causal_self_attention.3} parent=5 // pred_check
        _
      $region26: #{causal_self_attention.3} parent=5 // pred_check_branch
        %120 = sbr.rel (%p117) target = $region28
      $region27: #{causal_self_attention.3} parent=5 // pred_region
        %s121 = ssub.s32 %s11, 1
        %s122 = smul.u32 48, %s16
        %p123 = scmp.lt.s32.totalorder %s122, 95
        %s124 = scalar_select %p123, %s122, 95
        %s125 = smul.addr %s124, 4
        %s126 = scalar_lea.vmem %s0, %s125
        %p127 = pneg %p37
        %p128 = pneg %p34
        %p129 = pneg %p58
        %p130 = pneg %p55
        %p131 = pneg %p84
        %p132 = pneg %p81
        %s133 = sand.u32 %s71, 1
        %s134 = scalar_lea.sflag [#allocation3], %s133
        %s135 = sand.u32 %s71, 1
        %s136 = smul.addr %s135, 384
        %s137 = scalar_lea.vmem [#allocation2], %s136
        %s138 = smul.u32 48, %s16
        %p139 = scmp.lt.s32.totalorder %s138, 95
        %s140 = scalar_select %p139, %s138, 95
        %s141 = smul.addr %s140, 4
        %s142 = scalar_lea.vmem %s0, %s141
        %s143 = smul.u32 48, %s16
        %s144 = smul.u32 48, %s16
        %v146 = vld [vmem:[%s142] sm:$0xf]
        %v147 = vld [vmem:[%s142 + $0x4] sm:$0xf]
        %v148 = vld [vmem:[%s142 + $0x8] sm:$0xf]
        %v149 = vld [vmem:[%s142 + $0xc] sm:$0xf]
        %v150 = vld [vmem:[%s142 + $0x10] sm:$0xf]
        %v151 = vld [vmem:[%s142 + $0x14] sm:$0xf]
        %v152 = vld [vmem:[%s142 + $0x18] sm:$0xf]
        %v153 = vld [vmem:[%s142 + $0x1c] sm:$0xf]
        %v154 = vld [vmem:[%s142 + $0x20] sm:$0xf]
        %v155 = vld [vmem:[%s142 + $0x24] sm:$0xf]
        %v156 = vld [vmem:[%s142 + $0x28] sm:$0xf]
        %v157 = vld [vmem:[%s142 + $0x2c] sm:$0xf]
        %v158 = vld [vmem:[%s142 + $0x30] sm:$0xf]
        %v159 = vld [vmem:[%s142 + $0x34] sm:$0xf]
        %v160 = vld [vmem:[%s142 + $0x38] sm:$0xf]
        %v161 = vld [vmem:[%s142 + $0x3c] sm:$0xf]
        %v162 = vld [vmem:[%s142 + $0x40] sm:$0xf]
        %v163 = vld [vmem:[%s142 + $0x44] sm:$0xf]
        %v164 = vld [vmem:[%s142 + $0x48] sm:$0xf]
        %v165 = vld [vmem:[%s142 + $0x4c] sm:$0xf]
        %v166 = vld [vmem:[%s142 + $0x50] sm:$0xf]
        %v167 = vld [vmem:[%s142 + $0x54] sm:$0xf]
        %v168 = vld [vmem:[%s142 + $0x58] sm:$0xf]
        %v169 = vld [vmem:[%s142 + $0x5c] sm:$0xf]
        %v170 = vld [vmem:[%s142 + $0x60] sm:$0xf]
        %v171 = vld [vmem:[%s142 + $0x64] sm:$0xf]
        %v172 = vld [vmem:[%s142 + $0x68] sm:$0xf]
        %v173 = vld [vmem:[%s142 + $0x6c] sm:$0xf]
        %v174 = vld [vmem:[%s142 + $0x70] sm:$0xf]
        %v175 = vld [vmem:[%s142 + $0x74] sm:$0xf]
        %v176 = vld [vmem:[%s142 + $0x78] sm:$0xf]
        %v177 = vld [vmem:[%s142 + $0x7c] sm:$0xf]
        %v178 = vld [vmem:[%s142 + $0x80] sm:$0xf]
        %v179 = vld [vmem:[%s142 + $0x84] sm:$0xf]
        %v180 = vld [vmem:[%s142 + $0x88] sm:$0xf]
        %v181 = vld [vmem:[%s142 + $0x8c] sm:$0xf]
        %v182 = vld [vmem:[%s142 + $0x90] sm:$0xf]
        %v183 = vld [vmem:[%s142 + $0x94] sm:$0xf]
        %v184 = vld [vmem:[%s142 + $0x98] sm:$0xf]
        %v185 = vld [vmem:[%s142 + $0x9c] sm:$0xf]
        %v186 = vld [vmem:[%s142 + $0xa0] sm:$0xf]
        %v187 = vld [vmem:[%s142 + $0xa4] sm:$0xf]
        %v188 = vld [vmem:[%s142 + $0xa8] sm:$0xf]
        %v189 = vld [vmem:[%s142 + $0xac] sm:$0xf]
        %v190 = vld [vmem:[%s142 + $0xb0] sm:$0xf]
        %v191 = vld [vmem:[%s142 + $0xb4] sm:$0xf]
        %v192 = vld [vmem:[%s142 + $0xb8] sm:$0xf]
        %v193 = vld [vmem:[%s142 + $0xbc] sm:$0xf]
        %v194 = vld [vmem:[%s1] sm:$0xf]
        %v195 = vld [vmem:[%s1 + $0x4] sm:$0xf]
        %v196 = vld [vmem:[%s1 + $0x8] sm:$0xf]
        %v197 = vld [vmem:[%s1 + $0xc] sm:$0xf]
        %v198 = vld [vmem:[%s1 + $0x10] sm:$0xf]
        %v199 = vld [vmem:[%s1 + $0x14] sm:$0xf]
        %v200 = vld [vmem:[%s1 + $0x18] sm:$0xf]
        %v201 = vld [vmem:[%s1 + $0x1c] sm:$0xf]
        %v202 = vld [vmem:[%s1 + $0x20] sm:$0xf]
        %v203 = vld [vmem:[%s1 + $0x24] sm:$0xf]
        %v204 = vld [vmem:[%s1 + $0x28] sm:$0xf]
        %v205 = vld [vmem:[%s1 + $0x2c] sm:$0xf]
        %v206 = vld [vmem:[%s1 + $0x30] sm:$0xf]
        %v207 = vld [vmem:[%s1 + $0x34] sm:$0xf]
        %v208 = vld [vmem:[%s1 + $0x38] sm:$0xf]
        %v209 = vld [vmem:[%s1 + $0x3c] sm:$0xf]
        %v258 = vunpack.c.l.b16 %v146
        %v259 = vunpack.c.l.b16 %v147
        %v260 = vunpack.c.l.b16 %v148
        %v261 = vunpack.c.l.b16 %v149
        %v262 = vunpack.c.l.b16 %v150
        %v263 = vunpack.c.l.b16 %v151
        %v264 = vunpack.c.l.b16 %v152
        %v265 = vunpack.c.l.b16 %v153
        %v266 = vunpack.c.l.b16 %v154
        %v267 = vunpack.c.l.b16 %v155
        %v268 = vunpack.c.l.b16 %v156
        %v269 = vunpack.c.l.b16 %v157
        %v270 = vunpack.c.l.b16 %v158
        %v271 = vunpack.c.l.b16 %v159
        %v272 = vunpack.c.l.b16 %v160
        %v273 = vunpack.c.l.b16 %v161
        %v274 = vunpack.c.l.b16 %v162
        %v275 = vunpack.c.l.b16 %v163
        %v276 = vunpack.c.l.b16 %v164
        %v277 = vunpack.c.l.b16 %v165
        %v278 = vunpack.c.l.b16 %v166
        %v279 = vunpack.c.l.b16 %v167
        %v280 = vunpack.c.l.b16 %v168
        %v281 = vunpack.c.l.b16 %v169
        %v282 = vunpack.c.l.b16 %v170
        %v283 = vunpack.c.l.b16 %v171
        %v284 = vunpack.c.l.b16 %v172
        %v285 = vunpack.c.l.b16 %v173
        %v286 = vunpack.c.l.b16 %v174
        %v287 = vunpack.c.l.b16 %v175
        %v288 = vunpack.c.l.b16 %v176
        %v289 = vunpack.c.l.b16 %v177
        %v290 = vunpack.c.l.b16 %v178
        %v291 = vunpack.c.l.b16 %v179
        %v292 = vunpack.c.l.b16 %v180
        %v293 = vunpack.c.l.b16 %v181
        %v294 = vunpack.c.l.b16 %v182
        %v295 = vunpack.c.l.b16 %v183
        %v296 = vunpack.c.l.b16 %v184
        %v297 = vunpack.c.l.b16 %v185
        %v298 = vunpack.c.l.b16 %v186
        %v299 = vunpack.c.l.b16 %v187
        %v300 = vunpack.c.l.b16 %v188
        %v301 = vunpack.c.l.b16 %v189
        %v302 = vunpack.c.l.b16 %v190
        %v303 = vunpack.c.l.b16 %v191
        %v304 = vunpack.c.l.b16 %v192
        %v305 = vunpack.c.l.b16 %v193
        %v306 = vpack.c.b16 %v259, %v258
        %v307 = vpack.c.b16 %v261, %v260
        %v308 = vpack.c.b16 %v263, %v262
        %v309 = vpack.c.b16 %v265, %v264
        %v310 = vpack.c.b16 %v267, %v266
        %v311 = vpack.c.b16 %v269, %v268
        %v312 = vpack.c.b16 %v271, %v270
        %v313 = vpack.c.b16 %v273, %v272
        %v314 = vpack.c.b16 %v275, %v274
        %v315 = vpack.c.b16 %v277, %v276
        %v316 = vpack.c.b16 %v279, %v278
        %v317 = vpack.c.b16 %v281, %v280
        %v318 = vpack.c.b16 %v283, %v282
        %v319 = vpack.c.b16 %v285, %v284
        %v320 = vpack.c.b16 %v287, %v286
        %v321 = vpack.c.b16 %v289, %v288
        %v322 = vpack.c.b16 %v291, %v290
        %v323 = vpack.c.b16 %v293, %v292
        %v324 = vpack.c.b16 %v295, %v294
        %v325 = vpack.c.b16 %v297, %v296
        %v326 = vpack.c.b16 %v299, %v298
        %v327 = vpack.c.b16 %v301, %v300
        %v328 = vpack.c.b16 %v303, %v302
        %v329 = vpack.c.b16 %v305, %v304
        %v370 = vunpack.c.l.b16 %v194
        %v371 = vunpack.c.l.b16 %v195
        %v372 = vunpack.c.l.b16 %v196
        %v373 = vunpack.c.l.b16 %v197
        %v374 = vunpack.c.l.b16 %v198
        %v375 = vunpack.c.l.b16 %v199
        %v376 = vunpack.c.l.b16 %v200
        %v377 = vunpack.c.l.b16 %v201
        %v378 = vunpack.c.l.b16 %v202
        %v379 = vunpack.c.l.b16 %v203
        %v380 = vunpack.c.l.b16 %v204
        %v381 = vunpack.c.l.b16 %v205
        %v382 = vunpack.c.l.b16 %v206
        %v383 = vunpack.c.l.b16 %v207
        %v384 = vunpack.c.l.b16 %v208
        %v385 = vunpack.c.l.b16 %v209
        %v386 = vpack.c.b16 %v371, %v370
        %v387 = vpack.c.b16 %v373, %v372
        %v388 = vpack.c.b16 %v375, %v374
        %v389 = vpack.c.b16 %v377, %v376
        %v390 = vpack.c.b16 %v379, %v378
        %v391 = vpack.c.b16 %v381, %v380
        %v392 = vpack.c.b16 %v383, %v382
        %v393 = vpack.c.b16 %v385, %v384
        %402 = vmatprep.subr.bf16.mxu0 0
        %403 = vmatpush1.bf16.msra.mxu0 %v386
        %404 = vmatprep.subr.bf16.mxu0 0
        %405 = vmatpush1.bf16.msra.mxu0 %v387
        %406 = vmatprep.subr.bf16.mxu0 0
        %407 = vmatpush1.bf16.msra.mxu0 %v388
        %408 = vmatprep.subr.bf16.mxu0 0
        %409 = vmatpush1.bf16.msra.mxu0 %v389
        %410 = vmatprep.subr.bf16.mxu0 0
        %411 = vmatpush1.bf16.msra.mxu0 %v390
        %412 = vmatprep.subr.bf16.mxu0 0
        %413 = vmatpush1.bf16.msra.mxu0 %v391
        %414 = vmatprep.subr.bf16.mxu0 0
        %415 = vmatpush1.bf16.msra.mxu0 %v392
        %416 = vmatprep.subr.bf16.mxu0 0
        %417 = vmatpush1.bf16.msra.mxu0 %v393
        %418 = vmatprep.subr.bf16.mxu0 0
        %419 = vmatpush1.bf16.msra.mxu0 0
        %420 = vmatprep.subr.bf16.mxu0 0
        %421 = vmatpush1.bf16.msra.mxu0 0
        %422 = vmatprep.subr.bf16.mxu0 0
        %423 = vmatpush1.bf16.msra.mxu0 0
        %424 = vmatprep.subr.bf16.mxu0 0
        %425 = vmatpush1.bf16.msra.mxu0 0
        %426 = vmatprep.subr.bf16.mxu0 0
        %427 = vmatpush1.bf16.msra.mxu0 0
        %428 = vmatprep.subr.bf16.mxu0 0
        %429 = vmatpush1.bf16.msra.mxu0 0
        %430 = vmatprep.subr.bf16.mxu0 0
        %431 = vmatpush1.bf16.msra.mxu0 0
        %432 = vmatprep.subr.bf16.mxu0 0
        %433 = vmatpush1.bf16.msra.mxu0 0
        %434 = vmatprep.mubr.bf16.mxu0 0
        %435 = vmatmul.mubr.bf16.gmra.mrb[0].mxu0 %v306
        %v436 = vpop.f32.mrb[0].mxu0
        %v437 = vadd.f32 0.0, %v436
        %v438 = vpop.f32.mrb[0].mxu0
        %v439 = vpop.f32.mrb[0].mxu0
        %v440 = vadd.f32 0.0, %v439
        %v441 = vpop.f32.mrb[0].mxu0
        %442 = vmatprep.mubr.bf16.mxu0 0
        %443 = vmatmul.mubr.bf16.gmra.mrb[0].mxu0 %v307
        %v444 = vpop.f32.mrb[0].mxu0
        %v445 = vadd.f32 0.0, %v444
        %v446 = vpop.f32.mrb[0].mxu0
        %v447 = vpop.f32.mrb[0].mxu0
        %v448 = vadd.f32 0.0, %v447
        %v449 = vpop.f32.mrb[0].mxu0
        %450 = vmatprep.mubr.bf16.mxu0 0
        %451 = vmatmul.mubr.bf16.gmra.mrb[0].mxu0 %v308
        %v452 = vpop.f32.mrb[0].mxu0
        %v453 = vadd.f32 0.0, %v452
        %v454 = vpop.f32.mrb[0].mxu0
        %v455 = vpop.f32.mrb[0].mxu0
        %v456 = vadd.f32 0.0, %v455
        %v457 = vpop.f32.mrb[0].mxu0
        %458 = vmatprep.mubr.bf16.mxu0 0
        %459 = vmatmul.mubr.bf16.gmra.mrb[0].mxu0 %v309
        %v460 = vpop.f32.mrb[0].mxu0
        %v461 = vadd.f32 0.0, %v460
        %v462 = vpop.f32.mrb[0].mxu0
        %v463 = vpop.f32.mrb[0].mxu0
        %v464 = vadd.f32 0.0, %v463
        %v465 = vpop.f32.mrb[0].mxu0
        %466 = vmatprep.mubr.bf16.mxu0 0
        %467 = vmatmul.mubr.bf16.gmra.mrb[0].mxu0 %v310
        %v468 = vpop.f32.mrb[0].mxu0
        %v469 = vadd.f32 0.0, %v468
        %v470 = vpop.f32.mrb[0].mxu0
        %v471 = vpop.f32.mrb[0].mxu0
        %v472 = vadd.f32 0.0, %v471
        %v473 = vpop.f32.mrb[0].mxu0
        %474 = vmatprep.mubr.bf16.mxu0 0
        %475 = vmatmul.mubr.bf16.gmra.mrb[0].mxu0 %v311
        %v476 = vpop.f32.mrb[0].mxu0
        %v477 = vadd.f32 0.0, %v476
        %v478 = vpop.f32.mrb[0].mxu0
        %v479 = vpop.f32.mrb[0].mxu0
        %v480 = vadd.f32 0.0, %v479
        %v481 = vpop.f32.mrb[0].mxu0
        %482 = vmatprep.mubr.bf16.mxu0 0
        %483 = vmatmul.mubr.bf16.gmra.mrb[0].mxu0 %v312
        %v484 = vpop.f32.mrb[0].mxu0
        %v485 = vadd.f32 0.0, %v484
        %v486 = vpop.f32.mrb[0].mxu0
        %v487 = vpop.f32.mrb[0].mxu0
        %v488 = vadd.f32 0.0, %v487
        %v489 = vpop.f32.mrb[0].mxu0
        %490 = vmatprep.mubr.bf16.mxu0 0
        %491 = vmatmul.mubr.bf16.gmra.mrb[0].mxu0 %v313
        %v492 = vpop.f32.mrb[0].mxu0
        %v493 = vadd.f32 0.0, %v492
        %v494 = vpop.f32.mrb[0].mxu0
        %v495 = vpop.f32.mrb[0].mxu0
        %v496 = vadd.f32 0.0, %v495
        %v497 = vpop.f32.mrb[0].mxu0
        %498 = vmatprep.mubr.bf16.mxu0 0
        %499 = vmatmul.mubr.bf16.gmra.mrb[0].mxu0 %v314
        %v500 = vpop.f32.mrb[0].mxu0
        %v501 = vadd.f32 0.0, %v500
        %v502 = vpop.f32.mrb[0].mxu0
        %v503 = vpop.f32.mrb[0].mxu0
        %v504 = vadd.f32 0.0, %v503
        %v505 = vpop.f32.mrb[0].mxu0
        %506 = vmatprep.mubr.bf16.mxu0 0
        %507 = vmatmul.mubr.bf16.gmra.mrb[0].mxu0 %v315
        %v508 = vpop.f32.mrb[0].mxu0
        %v509 = vadd.f32 0.0, %v508
        %v510 = vpop.f32.mrb[0].mxu0
        %v511 = vpop.f32.mrb[0].mxu0
        %v512 = vadd.f32 0.0, %v511
        %v513 = vpop.f32.mrb[0].mxu0
        %514 = vmatprep.mubr.bf16.mxu0 0
        %515 = vmatmul.mubr.bf16.gmra.mrb[0].mxu0 %v316
        %v516 = vpop.f32.mrb[0].mxu0
        %v517 = vadd.f32 0.0, %v516
        %v518 = vpop.f32.mrb[0].mxu0
        %v519 = vpop.f32.mrb[0].mxu0
        %v520 = vadd.f32 0.0, %v519
        %v521 = vpop.f32.mrb[0].mxu0
        %522 = vmatprep.mubr.bf16.mxu0 0
        %523 = vmatmul.mubr.bf16.gmra.mrb[0].mxu0 %v317
        %v524 = vpop.f32.mrb[0].mxu0
        %v525 = vadd.f32 0.0, %v524
        %v526 = vpop.f32.mrb[0].mxu0
        %v527 = vpop.f32.mrb[0].mxu0
        %v528 = vadd.f32 0.0, %v527
        %v529 = vpop.f32.mrb[0].mxu0
        %530 = vmatprep.mubr.bf16.mxu0 0
        %531 = vmatmul.mubr.bf16.gmra.mrb[0].mxu0 %v318
        %v532 = vpop.f32.mrb[0].mxu0
        %v533 = vadd.f32 0.0, %v532
        %v534 = vpop.f32.mrb[0].mxu0
        %v535 = vpop.f32.mrb[0].mxu0
        %v536 = vadd.f32 0.0, %v535
        %v537 = vpop.f32.mrb[0].mxu0
        %538 = vmatprep.mubr.bf16.mxu0 0
        %539 = vmatmul.mubr.bf16.gmra.mrb[0].mxu0 %v319
        %v540 = vpop.f32.mrb[0].mxu0
        %v541 = vadd.f32 0.0, %v540
        %v542 = vpop.f32.mrb[0].mxu0
        %v543 = vpop.f32.mrb[0].mxu0
        %v544 = vadd.f32 0.0, %v543
        %v545 = vpop.f32.mrb[0].mxu0
        %546 = vmatprep.mubr.bf16.mxu0 0
        %547 = vmatmul.mubr.bf16.gmra.mrb[0].mxu0 %v320
        %v548 = vpop.f32.mrb[0].mxu0
        %v549 = vadd.f32 0.0, %v548
        %v550 = vpop.f32.mrb[0].mxu0
        %v551 = vpop.f32.mrb[0].mxu0
        %v552 = vadd.f32 0.0, %v551
        %v553 = vpop.f32.mrb[0].mxu0
        %554 = vmatprep.mubr.bf16.mxu0 0
        %555 = vmatmul.mubr.bf16.gmra.mrb[0].mxu0 %v321
        %v556 = vpop.f32.mrb[0].mxu0
        %v557 = vadd.f32 0.0, %v556
        %v558 = vpop.f32.mrb[0].mxu0
        %v559 = vpop.f32.mrb[0].mxu0
        %v560 = vadd.f32 0.0, %v559
        %v561 = vpop.f32.mrb[0].mxu0
        %562 = vmatprep.mubr.bf16.mxu0 0
        %563 = vmatmul.mubr.bf16.gmra.mrb[0].mxu0 %v322
        %v564 = vpop.f32.mrb[0].mxu0
        %v565 = vadd.f32 0.0, %v564
        %v566 = vpop.f32.mrb[0].mxu0
        %v567 = vpop.f32.mrb[0].mxu0
        %v568 = vadd.f32 0.0, %v567
        %v569 = vpop.f32.mrb[0].mxu0
        %570 = vmatprep.mubr.bf16.mxu0 0
        %571 = vmatmul.mubr.bf16.gmra.mrb[0].mxu0 %v323
        %v572 = vpop.f32.mrb[0].mxu0
        %v573 = vadd.f32 0.0, %v572
        %v574 = vpop.f32.mrb[0].mxu0
        %v575 = vpop.f32.mrb[0].mxu0
        %v576 = vadd.f32 0.0, %v575
        %v577 = vpop.f32.mrb[0].mxu0
        %578 = vmatprep.mubr.bf16.mxu0 0
        %579 = vmatmul.mubr.bf16.gmra.mrb[0].mxu0 %v324
        %v580 = vpop.f32.mrb[0].mxu0
        %v581 = vadd.f32 0.0, %v580
        %v582 = vpop.f32.mrb[0].mxu0
        %v583 = vpop.f32.mrb[0].mxu0
        %v584 = vadd.f32 0.0, %v583
        %v585 = vpop.f32.mrb[0].mxu0
        %586 = vmatprep.mubr.bf16.mxu0 0
        %587 = vmatmul.mubr.bf16.gmra.mrb[0].mxu0 %v325
        %v588 = vpop.f32.mrb[0].mxu0
        %v589 = vadd.f32 0.0, %v588
        %v590 = vpop.f32.mrb[0].mxu0
        %v591 = vpop.f32.mrb[0].mxu0
        %v592 = vadd.f32 0.0, %v591
        %v593 = vpop.f32.mrb[0].mxu0
        %594 = vmatprep.mubr.bf16.mxu0 0
        %595 = vmatmul.mubr.bf16.gmra.mrb[0].mxu0 %v326
        %v596 = vpop.f32.mrb[0].mxu0
        %v597 = vadd.f32 0.0, %v596
        %v598 = vpop.f32.mrb[0].mxu0
        %v599 = vpop.f32.mrb[0].mxu0
        %v600 = vadd.f32 0.0, %v599
        %v601 = vpop.f32.mrb[0].mxu0
        %602 = vmatprep.mubr.bf16.mxu0 0
        %603 = vmatmul.mubr.bf16.gmra.mrb[0].mxu0 %v327
        %v604 = vpop.f32.mrb[0].mxu0
        %v605 = vadd.f32 0.0, %v604
        %v606 = vpop.f32.mrb[0].mxu0
        %v607 = vpop.f32.mrb[0].mxu0
        %v608 = vadd.f32 0.0, %v607
        %v609 = vpop.f32.mrb[0].mxu0
        %610 = vmatprep.mubr.bf16.mxu0 0
        %611 = vmatmul.mubr.bf16.gmra.mrb[0].mxu0 %v328
        %v612 = vpop.f32.mrb[0].mxu0
        %v613 = vadd.f32 0.0, %v612
        %v614 = vpop.f32.mrb[0].mxu0
        %v615 = vpop.f32.mrb[0].mxu0
        %v616 = vadd.f32 0.0, %v615
        %v617 = vpop.f32.mrb[0].mxu0
        %618 = vmatprep.mubr.bf16.mxu0 0
        %619 = vmatmul.mubr.bf16.gmra.mrb[0].mxu0 %v329
        %v620 = vpop.f32.mrb[0].mxu0
        %v621 = vadd.f32 0.0, %v620
        %v622 = vpop.f32.mrb[0].mxu0
        %v623 = vpop.f32.mrb[0].mxu0
        %v624 = vadd.f32 0.0, %v623
        %v625 = vpop.f32.mrb[0].mxu0
        %626 = vdwg.mxu0
        %627 = vst [vmem:[%s137] sm:$0xff] %v437
        %628 = vst [vmem:[%s137 + $0x8] sm:$0xff] %v440
        %629 = vst [vmem:[%s137 + $0x10] sm:$0xff] %v445
        %630 = vst [vmem:[%s137 + $0x18] sm:$0xff] %v448
        %631 = vst [vmem:[%s137 + $0x20] sm:$0xff] %v453
        %632 = vst [vmem:[%s137 + $0x28] sm:$0xff] %v456
        %633 = vst [vmem:[%s137 + $0x30] sm:$0xff] %v461
        %634 = vst [vmem:[%s137 + $0x38] sm:$0xff] %v464
        %635 = vst [vmem:[%s137 + $0x40] sm:$0xff] %v469
        %636 = vst [vmem:[%s137 + $0x48] sm:$0xff] %v472
        %637 = vst [vmem:[%s137 + $0x50] sm:$0xff] %v477
        %638 = vst [vmem:[%s137 + $0x58] sm:$0xff] %v480
        %639 = vst [vmem:[%s137 + $0x60] sm:$0xff] %v485
        %640 = vst [vmem:[%s137 + $0x68] sm:$0xff] %v488
        %641 = vst [vmem:[%s137 + $0x70] sm:$0xff] %v493
        %642 = vst [vmem:[%s137 + $0x78] sm:$0xff] %v496
        %643 = vst [vmem:[%s137 + $0x80] sm:$0xff] %v501
        %644 = vst [vmem:[%s137 + $0x88] sm:$0xff] %v504
        %645 = vst [vmem:[%s137 + $0x90] sm:$0xff] %v509
        %646 = vst [vmem:[%s137 + $0x98] sm:$0xff] %v512
        %647 = vst [vmem:[%s137 + $0xa0] sm:$0xff] %v517
        %648 = vst [vmem:[%s137 + $0xa8] sm:$0xff] %v520
        %649 = vst [vmem:[%s137 + $0xb0] sm:$0xff] %v525
        %650 = vst [vmem:[%s137 + $0xb8] sm:$0xff] %v528
        %651 = vst [vmem:[%s137 + $0xc0] sm:$0xff] %v533
        %652 = vst [vmem:[%s137 + $0xc8] sm:$0xff] %v536
        %653 = vst [vmem:[%s137 + $0xd0] sm:$0xff] %v541
        %654 = vst [vmem:[%s137 + $0xd8] sm:$0xff] %v544
        %655 = vst [vmem:[%s137 + $0xe0] sm:$0xff] %v549
        %656 = vst [vmem:[%s137 + $0xe8] sm:$0xff] %v552
        %657 = vst [vmem:[%s137 + $0xf0] sm:$0xff] %v557
        %658 = vst [vmem:[%s137 + $0xf8] sm:$0xff] %v560
        %659 = vst [vmem:[%s137 + $0x100] sm:$0xff] %v565
        %660 = vst [vmem:[%s137 + $0x108] sm:$0xff] %v568
        %661 = vst [vmem:[%s137 + $0x110] sm:$0xff] %v573
        %662 = vst [vmem:[%s137 + $0x118] sm:$0xff] %v576
        %663 = vst [vmem:[%s137 + $0x120] sm:$0xff] %v581
        %664 = vst [vmem:[%s137 + $0x128] sm:$0xff] %v584
        %665 = vst [vmem:[%s137 + $0x130] sm:$0xff] %v589
        %666 = vst [vmem:[%s137 + $0x138] sm:$0xff] %v592
        %667 = vst [vmem:[%s137 + $0x140] sm:$0xff] %v597
        %668 = vst [vmem:[%s137 + $0x148] sm:$0xff] %v600
        %669 = vst [vmem:[%s137 + $0x150] sm:$0xff] %v605
        %670 = vst [vmem:[%s137 + $0x158] sm:$0xff] %v608
        %671 = vst [vmem:[%s137 + $0x160] sm:$0xff] %v613
        %672 = vst [vmem:[%s137 + $0x168] sm:$0xff] %v616
        %673 = vst [vmem:[%s137 + $0x170] sm:$0xff] %v621
        %674 = vst [vmem:[%s137 + $0x178] sm:$0xff] %v624
        %s675 = sand.u32 %s71, 1
        %s676 = scalar_lea.sflag [#allocation3], %s675
        %s677 = sand.u32 %s71, 1
        %s678 = smul.addr %s677, 384
        %s679 = scalar_lea.vmem [#allocation2], %s678
        // Predicated region
        $region29: #{causal_self_attention.3} parent=27 // pred_check
          %p680 = pneg %p81
        $region30: #{causal_self_attention.3} parent=27 // pred_check_branch
          %682 = sbr.rel (%p680) target = $region32
        $region31: #{causal_self_attention.3} parent=27 // pred_region
          %s683 = smul.u32 48, %s16
          %s685 = ssub.s32 6144, 6144
          %686 = vsyncadd %s676, %s685
          %s687 = smul.addr %s683, 128
          %s688 = scalar_lea.hbm %s2, %s687
          %s689 = sshll.u32 %s679, 4
          %s690 = int_to_ptr.vmem [resolvable:$true] %s689
          %695 = dma.vmem_to_hbm [thread:$0]  %s690, 6144, %s688, %s676, 128, 128, 8
        $region32: #{causal_self_attention.3} parent=27 // pred_fallthru
          _
      $region28: #{causal_self_attention.3} parent=5 // pred_fallthru
        _
      %p696 = scmp.le.s32.totalorder 2, %s11
      // Predicated region
      $region33: #{causal_self_attention.3} parent=5 // pred_check
        %p697 = pneg %p696
      $region34: #{causal_self_attention.3} parent=5 // pred_check_branch
        %699 = sbr.rel (%p697) target = $region36
      $region35: #{causal_self_attention.3} parent=5 // pred_region
        %s700 = ssub.s32 %s11, 2
        // Predicated region
        $region37: #{causal_self_attention.3} parent=35 // pred_check
          %p701 = pneg %p87
        $region38: #{causal_self_attention.3} parent=35 // pred_check_branch
          %703 = sbr.rel (%p701) target = $region40
        $region39: #{causal_self_attention.3} parent=35 // pred_region
          %s704 = sand.u32 %s72, 1
          %s705 = scalar_lea.sflag [#allocation3], %s704
          %s706 = sand.u32 %s72, 1
          %s707 = smul.addr %s706, 384
          %s708 = scalar_lea.vmem [#allocation2], %s707
          %709 = dma.done %s705, 6144
        $region40: #{causal_self_attention.3} parent=35 // pred_fallthru
          _
      $region36: #{causal_self_attention.3} parent=5 // pred_fallthru
        _
    $region6: #{causal_self_attention.3} parent=1 // loop_footer
      %s15 = sadd.s32 1, %s11
    $region7: #{causal_self_attention.3} parent=1 // loop_footer_branch
      %10 = sbr.rel target = $region3
    $region8: #{causal_self_attention.3} parent=1 // loop_exit
      _
    %710 = vsyncpa [#allocation3], 1
    %s711 = scalar_lea.sflag [#allocation3], 1
    %712 = vsyncpa %s711, 1

// kernel: causal_self_attention.2
$region0: #{causal_self_attention.2}
  #allocation0 [shape = 'u32[]', space=smem, size = 0x4, offset = 0x4, fixed_abs, tag = 'smem constant byte address 0x4 - core index']
  #allocation1 [shape = 'u32[144,128]{1,0:T(1,128)}', space=vmem, size = 0x12000, scoped, tag = 'internal scratch']
  #allocation2 [shape = 'bf16[384,128]{1,0:T(16,128)(2,1)}', space=vmem, size = 0x18000, scoped, tag = 'scratch operand']
  #allocation3 [shape = 'f32[1,384]{1,0:T(1,128)}', space=vmem, size = 0x600, scoped, tag = 'scratch operand']
  #allocation4 [shape = 'f32[1,384]{1,0:T(1,128)}', space=vmem, size = 0x600, scoped, tag = 'scratch operand']
  #allocation5 [shape = 'f32[128,384]{1,0:T(8,128)}', space=vmem, size = 0x30000, scoped, tag = 'scratch operand']
  %s0 = inlined_call_operand.vmem [shape: bf16[2,384,128], index: 0, kind: input, shape index: {}, may-alias: {0,1}]
  %s1 = inlined_call_operand.vmem [shape: bf16[2,384,128], index: 1, kind: input, shape index: {}, may-alias: {0,1}]
  %s2 = inlined_call_operand.vmem [shape: bf16[128,128], index: 2, kind: input, shape index: {}]
  %s3 = inlined_call_operand.vmem [shape: bf16[128,128], index: 3, kind: input, shape index: {}]
  %s4 = inlined_call_operand.vmem [shape: bf16[128,128], index: 4, kind: input, shape index: {}]
  %s5 = inlined_call_operand.vmem [shape: bf16[2,128,384], index: 5, kind: output, shape index: {}]
  %s6 = sld [smem:[#allocation0]]
  $region65: #{causal_self_attention.2} parent=0
    _
  %s8 = ssub.s32 1, %s6
  %s9 = scalar_select 0, %s8, %s6
  loop: start=0, step=1, limit=4
  $region2: #{causal_self_attention.2} parent=0 // loop_pre_header
    _
  $region3: #{causal_self_attention.2} parent=0 // loop_header
    %s11 = sphi 0, %s15
    %p12 = scmp.ge.s32.totalorder %s11, 4
    %s18 = sphi 0, %s37
    %s19 = sphi 0, %s33
    %s20 = sphi 0, %s29
    %s21 = sphi 0, %s18
    %s22 = sphi 0, %s19
    %s23 = sphi 0, %s20
    %s24 = sphi 0, %s21
    %s25 = sphi 0, %s22
    %s26 = sphi 0, %s23
    %s42 = sphi 0, %s44
    %s45 = sphi 0, %s42
    %s46 = sphi 0, %s45
    %s62 = sphi 0, %s46
    %s70 = sphi 0, %s72
    %s73 = sphi 0, %s70
    %s74 = sphi 0, %s73
    %s90 = sphi 0, %s74
    %s94 = sphi 0, %s94
    %s96 = sphi 0, %s94
    %s97 = sphi 0, %s96
    %s111 = sphi 0, %s97
    %s115 = sphi 0, %s115
    %s117 = sphi 0, %s115
    %s118 = sphi 0, %s117
    %s132 = sphi 0, %s118
    %s136 = sphi 0, %s136
    %s138 = sphi 0, %s136
    %s139 = sphi 0, %s138
    %s153 = sphi 0, %s139
    %s161 = sphi 0, %s163
    %s164 = sphi 0, %s161
    %s165 = sphi 0, %s164
    %s181 = sphi 0, %s165
  $region4: #{causal_self_attention.2} parent=0 // loop_header_branch
    %14 = sbr.rel (%p12) target = $region8
  $region5: #{causal_self_attention.2} parent=0 // loop_body
    %s16 = ssub.s32 %s11, 1
    %s17 = ssub.s32 %s11, 2
    %s27 = sadd.s32 1, %s20
    %p28 = scmp.ge.s32.totalorder %s27, 1
    %s29 = scalar_select %p28, 0, %s27
    %s30 = sadd.s32 1, %s19
    %s31 = scalar_select %p28, %s30, %s19
    %p32 = scmp.ge.s32.totalorder %s31, 1
    %s33 = scalar_select %p32, 0, %s31
    %s34 = sadd.s32 1, %s18
    %s35 = scalar_select %p32, %s34, %s18
    %p36 = scmp.ge.s32.totalorder %s35, 2
    %s37 = scalar_select %p36, 0, %s35
    %s38 = ssub.s32 %s18, %s37
    %s39 = ssub.s32 %s19, %s33
    %s40 = sor.u32 %s38, %s39
    %p41 = scmp.eq.s32.totalorder %s40, 0
    %s43 = sadd.s32 %s42, 1
    %s44 = scalar_select %p41, %s42, %s43
    %p47 = pneg %p41
    %p48 = scmp.eq.s32.totalorder %s11, 1
    %p49 = por %p47, %p48
    %p50 = scmp.ne.s32.totalorder %s42, %s45
    %p51 = scmp.eq.s32.totalorder %s11, 0
    %p52 = por %p50, %p51
    %p53 = scmp.ne.s32.totalorder %s42, %s45
    %p54 = scmp.eq.s32.totalorder %s16, 1
    %p55 = por %p53, %p54
    %p56 = scmp.ne.s32.totalorder %s45, %s46
    %p57 = scmp.eq.s32.totalorder %s16, 0
    %p58 = por %p56, %p57
    %p59 = scmp.ne.s32.totalorder %s45, %s46
    %p60 = scmp.eq.s32.totalorder %s17, 1
    %p61 = por %p59, %p60
    %p63 = scmp.ne.s32.totalorder %s46, %s62
    %p64 = scmp.eq.s32.totalorder %s17, 0
    %p65 = por %p63, %p64
    %s66 = ssub.s32 %s18, %s37
    %s67 = ssub.s32 %s20, %s29
    %s68 = sor.u32 %s66, %s67
    %p69 = scmp.eq.s32.totalorder %s68, 0
    %s71 = sadd.s32 %s70, 1
    %s72 = scalar_select %p69, %s70, %s71
    %p75 = pneg %p69
    %p76 = scmp.eq.s32.totalorder %s11, 1
    %p77 = por %p75, %p76
    %p78 = scmp.ne.s32.totalorder %s70, %s73
    %p79 = scmp.eq.s32.totalorder %s11, 0
    %p80 = por %p78, %p79
    %p81 = scmp.ne.s32.totalorder %s70, %s73
    %p82 = scmp.eq.s32.totalorder %s16, 1
    %p83 = por %p81, %p82
    %p84 = scmp.ne.s32.totalorder %s73, %s74
    %p85 = scmp.eq.s32.totalorder %s16, 0
    %p86 = por %p84, %p85
    %p87 = scmp.ne.s32.totalorder %s73, %s74
    %p88 = scmp.eq.s32.totalorder %s17, 1
    %p89 = por %p87, %p88
    %p91 = scmp.ne.s32.totalorder %s74, %s90
    %p92 = scmp.eq.s32.totalorder %s17, 0
    %p93 = por %p91, %p92
    %s95 = sadd.s32 %s94, 1
    %p98 = scmp.eq.s32.totalorder %s11, 1
    %p99 = scmp.ne.s32.totalorder %s94, %s96
    %p100 = scmp.eq.s32.totalorder %s11, 0
    %p101 = por %p99, %p100
    %p102 = scmp.ne.s32.totalorder %s94, %s96
    %p103 = scmp.eq.s32.totalorder %s16, 1
    %p104 = por %p102, %p103
    %p105 = scmp.ne.s32.totalorder %s96, %s97
    %p106 = scmp.eq.s32.totalorder %s16, 0
    %p107 = por %p105, %p106
    %p108 = scmp.ne.s32.totalorder %s96, %s97
    %p109 = scmp.eq.s32.totalorder %s17, 1
    %p110 = por %p108, %p109
    %p112 = scmp.ne.s32.totalorder %s97, %s111
    %p113 = scmp.eq.s32.totalorder %s17, 0
    %p114 = por %p112, %p113
    %s116 = sadd.s32 %s115, 1
    %p119 = scmp.eq.s32.totalorder %s11, 1
    %p120 = scmp.ne.s32.totalorder %s115, %s117
    %p121 = scmp.eq.s32.totalorder %s11, 0
    %p122 = por %p120, %p121
    %p123 = scmp.ne.s32.totalorder %s115, %s117
    %p124 = scmp.eq.s32.totalorder %s16, 1
    %p125 = por %p123, %p124
    %p126 = scmp.ne.s32.totalorder %s117, %s118
    %p127 = scmp.eq.s32.totalorder %s16, 0
    %p128 = por %p126, %p127
    %p129 = scmp.ne.s32.totalorder %s117, %s118
    %p130 = scmp.eq.s32.totalorder %s17, 1
    %p131 = por %p129, %p130
    %p133 = scmp.ne.s32.totalorder %s118, %s132
    %p134 = scmp.eq.s32.totalorder %s17, 0
    %p135 = por %p133, %p134
    %s137 = sadd.s32 %s136, 1
    %p140 = scmp.eq.s32.totalorder %s11, 1
    %p141 = scmp.ne.s32.totalorder %s136, %s138
    %p142 = scmp.eq.s32.totalorder %s11, 0
    %p143 = por %p141, %p142
    %p144 = scmp.ne.s32.totalorder %s136, %s138
    %p145 = scmp.eq.s32.totalorder %s16, 1
    %p146 = por %p144, %p145
    %p147 = scmp.ne.s32.totalorder %s138, %s139
    %p148 = scmp.eq.s32.totalorder %s16, 0
    %p149 = por %p147, %p148
    %p150 = scmp.ne.s32.totalorder %s138, %s139
    %p151 = scmp.eq.s32.totalorder %s17, 1
    %p152 = por %p150, %p151
    %p154 = scmp.ne.s32.totalorder %s139, %s153
    %p155 = scmp.eq.s32.totalorder %s17, 0
    %p156 = por %p154, %p155
    %s157 = ssub.s32 %s18, %s37
    %s158 = ssub.s32 %s19, %s33
    %s159 = sor.u32 %s157, %s158
    %p160 = scmp.eq.s32.totalorder %s159, 0
    %s162 = sadd.s32 %s161, 1
    %s163 = scalar_select %p160, %s161, %s162
    %p166 = pneg %p160
    %p167 = scmp.eq.s32.totalorder %s11, 1
    %p168 = por %p166, %p167
    %p169 = scmp.ne.s32.totalorder %s161, %s164
    %p170 = scmp.eq.s32.totalorder %s11, 0
    %p171 = por %p169, %p170
    %p172 = scmp.ne.s32.totalorder %s161, %s164
    %p173 = scmp.eq.s32.totalorder %s16, 1
    %p174 = por %p172, %p173
    %p175 = scmp.ne.s32.totalorder %s164, %s165
    %p176 = scmp.eq.s32.totalorder %s16, 0
    %p177 = por %p175, %p176
    %p178 = scmp.ne.s32.totalorder %s164, %s165
    %p179 = scmp.eq.s32.totalorder %s17, 1
    %p180 = por %p178, %p179
    %p182 = scmp.ne.s32.totalorder %s165, %s181
    %p183 = scmp.eq.s32.totalorder %s17, 0
    %p184 = por %p182, %p183
    %p185 = scmp.le.s32.totalorder 1, %s11
    %p186 = scmp.lt.s32.totalorder %s11, 3
    %p187 = pnand %p185, %p186
    %p188 = pneg %p187
    // Predicated region
    $region9: #{causal_self_attention.2} parent=5 // pred_check
      _
    $region10: #{causal_self_attention.2} parent=5 // pred_check_branch
      %190 = sbr.rel (%p187) target = $region12
    $region11: #{causal_self_attention.2} parent=5 // pred_region
      %s191 = ssub.s32 %s11, 1
      // Predicated region
      $region13: #{causal_self_attention.2} parent=11 // pred_check
        %p192 = pneg %p107
      $region14: #{causal_self_attention.2} parent=11 // pred_check_branch
        %194 = sbr.rel (%p192) target = $region16
      $region15: #{causal_self_attention.2} parent=11 // pred_region
        _
      $region16: #{causal_self_attention.2} parent=11 // pred_fallthru
        _
      // Predicated region
      $region17: #{causal_self_attention.2} parent=11 // pred_check
        %p195 = pneg %p128
      $region18: #{causal_self_attention.2} parent=11 // pred_check_branch
        %197 = sbr.rel (%p195) target = $region20
      $region19: #{causal_self_attention.2} parent=11 // pred_region
        _
      $region20: #{causal_self_attention.2} parent=11 // pred_fallthru
        _
      // Predicated region
      $region21: #{causal_self_attention.2} parent=11 // pred_check
        %p198 = pneg %p149
      $region22: #{causal_self_attention.2} parent=11 // pred_check_branch
        %200 = sbr.rel (%p198) target = $region24
      $region23: #{causal_self_attention.2} parent=11 // pred_region
        _
      $region24: #{causal_self_attention.2} parent=11 // pred_fallthru
        _
    $region12: #{causal_self_attention.2} parent=5 // pred_fallthru
      _
    %p201 = scmp.lt.s32.totalorder %s11, 2
    // Predicated region
    $region25: #{causal_self_attention.2} parent=5 // pred_check
      %p202 = pneg %p201
    $region26: #{causal_self_attention.2} parent=5 // pred_check_branch
      %204 = sbr.rel (%p202) target = $region28
    $region27: #{causal_self_attention.2} parent=5 // pred_region
      // Predicated region
      $region29: #{causal_self_attention.2} parent=27 // pred_check
        %p205 = pneg %p52
      $region30: #{causal_self_attention.2} parent=27 // pred_check_branch
        %207 = sbr.rel (%p205) target = $region32
      $region31: #{causal_self_attention.2} parent=27 // pred_region
        %s208 = smul.u32 48, %s19
        %p209 = scmp.lt.s32.totalorder %s18, 1
        %s210 = scalar_select %p209, %s18, 1
        %p211 = scmp.lt.s32.totalorder %s208, 47
        %s212 = scalar_select %p211, %s208, 47
        %s213 = smul.addr %s210, 48
        %s214 = sadd.s32 %s212, %s213
        %s215 = smul.addr %s214, 4
        %s216 = scalar_lea.vmem %s0, %s215
        %s217 = smul.u32 48, %s19
      $region32: #{causal_self_attention.2} parent=27 // pred_fallthru
        _
      // Predicated region
      $region33: #{causal_self_attention.2} parent=27 // pred_check
        %p218 = pneg %p80
      $region34: #{causal_self_attention.2} parent=27 // pred_check_branch
        %220 = sbr.rel (%p218) target = $region36
      $region35: #{causal_self_attention.2} parent=27 // pred_region
        %s221 = smul.u32 48, %s20
        %p222 = scmp.lt.s32.totalorder %s18, 1
        %s223 = scalar_select %p222, %s18, 1
        %p224 = scmp.lt.s32.totalorder %s221, 47
        %s225 = scalar_select %p224, %s221, 47
        %s226 = smul.addr %s223, 48
        %s227 = sadd.s32 %s225, %s226
        %s228 = smul.addr %s227, 4
        %s229 = scalar_lea.vmem %s1, %s228
        %s230 = smul.u32 48, %s20
      $region36: #{causal_self_attention.2} parent=27 // pred_fallthru
        _
    $region28: #{causal_self_attention.2} parent=5 // pred_fallthru
      _
    %p231 = scmp.le.s32.totalorder 1, %s11
    %p232 = scmp.lt.s32.totalorder %s11, 3
    %p233 = pnand %p231, %p232
    %p234 = pneg %p233
    // Predicated region
    $region37: #{causal_self_attention.2} parent=5 // pred_check
      _
    $region38: #{causal_self_attention.2} parent=5 // pred_check_branch
      %236 = sbr.rel (%p233) target = $region40
    $region39: #{causal_self_attention.2} parent=5 // pred_region
      %s237 = ssub.s32 %s11, 1
      %s238 = smul.u32 48, %s22
      %p239 = scmp.lt.s32.totalorder %s21, 1
      %s240 = scalar_select %p239, %s21, 1
      %p241 = scmp.lt.s32.totalorder %s238, 47
      %s242 = scalar_select %p241, %s238, 47
      %s243 = smul.addr %s240, 48
      %s244 = sadd.s32 %s242, %s243
      %s245 = smul.addr %s244, 4
      %s246 = scalar_lea.vmem %s0, %s245
      %p247 = pneg %p58
      %p248 = pneg %p55
      %s249 = smul.u32 48, %s23
      %p250 = scmp.lt.s32.totalorder %s21, 1
      %s251 = scalar_select %p250, %s21, 1
      %p252 = scmp.lt.s32.totalorder %s249, 47
      %s253 = scalar_select %p252, %s249, 47
      %s254 = smul.addr %s251, 48
      %s255 = sadd.s32 %s253, %s254
      %s256 = smul.addr %s255, 4
      %s257 = scalar_lea.vmem %s1, %s256
      %p258 = pneg %p86
      %p259 = pneg %p83
      %p260 = pneg %p107
      %p261 = pneg %p104
      %p262 = pneg %p128
      %p263 = pneg %p125
      %p264 = pneg %p149
      %p265 = pneg %p146
      %p266 = pneg %p177
      %p267 = pneg %p174
      %s268 = smul.u32 3, %s22
      %p269 = scmp.lt.s32.totalorder %s21, 1
      %s270 = scalar_select %p269, %s21, 1
      %p271 = scmp.lt.s32.totalorder %s268, 2
      %s272 = scalar_select %p271, %s268, 2
      %s273 = smul.addr %s270, 48
      %s274 = sadd.s32 %s272, %s273
      %s275 = smul.addr %s274, 4
      %s276 = scalar_lea.vmem %s5, %s275
      %s277 = smul.u32 48, %s22
      %p278 = scmp.lt.s32.totalorder %s21, 1
      %s279 = scalar_select %p278, %s21, 1
      %p280 = scmp.lt.s32.totalorder %s277, 47
      %s281 = scalar_select %p280, %s277, 47
      %s282 = smul.addr %s279, 48
      %s283 = sadd.s32 %s281, %s282
      %s284 = smul.addr %s283, 4
      %s285 = scalar_lea.vmem %s0, %s284
      %s286 = smul.u32 48, %s22
      %s287 = smul.u32 48, %s23
      %p288 = scmp.lt.s32.totalorder %s21, 1
      %s289 = scalar_select %p288, %s21, 1
      %p290 = scmp.lt.s32.totalorder %s287, 47
      %s291 = scalar_select %p290, %s287, 47
      %s292 = smul.addr %s289, 48
      %s293 = sadd.s32 %s291, %s292
      %s294 = smul.addr %s293, 4
      %s295 = scalar_lea.vmem %s1, %s294
      %s296 = smul.u32 48, %s23
      %s297 = smul.u32 3, %s22
      %p298 = scmp.lt.s32.totalorder %s21, 1
      %s299 = scalar_select %p298, %s21, 1
      %p300 = scmp.lt.s32.totalorder %s297, 2
      %s301 = scalar_select %p300, %s297, 2
      %s302 = smul.addr %s299, 48
      %s303 = sadd.s32 %s301, %s302
      %s304 = smul.addr %s303, 4
      %s305 = scalar_lea.vmem %s5, %s304
      %s306 = smul.u32 3, %s22
      %p308 = scmp.eq.s32.totalorder %s23, 0
      // Predicated region
      $region41: #{causal_self_attention.2} parent=39 // pred_check
        %p309 = pneg %p308
      $region42: #{causal_self_attention.2} parent=39 // pred_check_branch
        %311 = sbr.rel (%p309) target = $region44
      $region43: #{causal_self_attention.2} parent=39 // pred_region
        %v312 = vld [vmem:[%s285] sm:$0xf]
        %v313 = vld [vmem:[%s285 + $0x4] sm:$0xf]
        %v314 = vld [vmem:[%s285 + $0x8] sm:$0xf]
        %v315 = vld [vmem:[%s285 + $0xc] sm:$0xf]
        %v316 = vld [vmem:[%s285 + $0x10] sm:$0xf]
        %v317 = vld [vmem:[%s285 + $0x14] sm:$0xf]
        %v318 = vld [vmem:[%s285 + $0x18] sm:$0xf]
        %v319 = vld [vmem:[%s285 + $0x1c] sm:$0xf]
        %v320 = vld [vmem:[%s285 + $0x20] sm:$0xf]
        %v321 = vld [vmem:[%s285 + $0x24] sm:$0xf]
        %v322 = vld [vmem:[%s285 + $0x28] sm:$0xf]
        %v323 = vld [vmem:[%s285 + $0x2c] sm:$0xf]
        %v324 = vld [vmem:[%s285 + $0x30] sm:$0xf]
        %v325 = vld [vmem:[%s285 + $0x34] sm:$0xf]
        %v326 = vld [vmem:[%s285 + $0x38] sm:$0xf]
        %v327 = vld [vmem:[%s285 + $0x3c] sm:$0xf]
        %v328 = vld [vmem:[%s285 + $0x40] sm:$0xf]
        %v329 = vld [vmem:[%s285 + $0x44] sm:$0xf]
        %v330 = vld [vmem:[%s285 + $0x48] sm:$0xf]
        %v331 = vld [vmem:[%s285 + $0x4c] sm:$0xf]
        %v332 = vld [vmem:[%s285 + $0x50] sm:$0xf]
        %v333 = vld [vmem:[%s285 + $0x54] sm:$0xf]
        %v334 = vld [vmem:[%s285 + $0x58] sm:$0xf]
        %v335 = vld [vmem:[%s285 + $0x5c] sm:$0xf]
        %v336 = vld [vmem:[%s285 + $0x60] sm:$0xf]
        %v337 = vld [vmem:[%s285 + $0x64] sm:$0xf]
        %v338 = vld [vmem:[%s285 + $0x68] sm:$0xf]
        %v339 = vld [vmem:[%s285 + $0x6c] sm:$0xf]
        %v340 = vld [vmem:[%s285 + $0x70] sm:$0xf]
        %v341 = vld [vmem:[%s285 + $0x74] sm:$0xf]
        %v342 = vld [vmem:[%s285 + $0x78] sm:$0xf]
        %v343 = vld [vmem:[%s285 + $0x7c] sm:$0xf]
        %v344 = vld [vmem:[%s285 + $0x80] sm:$0xf]
        %v345 = vld [vmem:[%s285 + $0x84] sm:$0xf]
        %v346 = vld [vmem:[%s285 + $0x88] sm:$0xf]
        %v347 = vld [vmem:[%s285 + $0x8c] sm:$0xf]
        %v348 = vld [vmem:[%s285 + $0x90] sm:$0xf]
        %v349 = vld [vmem:[%s285 + $0x94] sm:$0xf]
        %v350 = vld [vmem:[%s285 + $0x98] sm:$0xf]
        %v351 = vld [vmem:[%s285 + $0x9c] sm:$0xf]
        %v352 = vld [vmem:[%s285 + $0xa0] sm:$0xf]
        %v353 = vld [vmem:[%s285 + $0xa4] sm:$0xf]
        %v354 = vld [vmem:[%s285 + $0xa8] sm:$0xf]
        %v355 = vld [vmem:[%s285 + $0xac] sm:$0xf]
        %v356 = vld [vmem:[%s285 + $0xb0] sm:$0xf]
        %v357 = vld [vmem:[%s285 + $0xb4] sm:$0xf]
        %v358 = vld [vmem:[%s285 + $0xb8] sm:$0xf]
        %v359 = vld [vmem:[%s285 + $0xbc] sm:$0xf]
        %v360 = vld [vmem:[%s2] sm:$0xf]
        %v361 = vld [vmem:[%s2 + $0x4] sm:$0xf]
        %v362 = vld [vmem:[%s2 + $0x8] sm:$0xf]
        %v363 = vld [vmem:[%s2 + $0xc] sm:$0xf]
        %v364 = vld [vmem:[%s2 + $0x10] sm:$0xf]
        %v365 = vld [vmem:[%s2 + $0x14] sm:$0xf]
        %v366 = vld [vmem:[%s2 + $0x18] sm:$0xf]
        %v367 = vld [vmem:[%s2 + $0x1c] sm:$0xf]
        %v368 = vld [vmem:[%s2 + $0x20] sm:$0xf]
        %v369 = vld [vmem:[%s2 + $0x24] sm:$0xf]
        %v370 = vld [vmem:[%s2 + $0x28] sm:$0xf]
        %v371 = vld [vmem:[%s2 + $0x2c] sm:$0xf]
        %v372 = vld [vmem:[%s2 + $0x30] sm:$0xf]
        %v373 = vld [vmem:[%s2 + $0x34] sm:$0xf]
        %v374 = vld [vmem:[%s2 + $0x38] sm:$0xf]
        %v375 = vld [vmem:[%s2 + $0x3c] sm:$0xf]
        %v424 = vunpack.c.l.b16 %v312
        %v425 = vunpack.c.l.b16 %v313
        %v426 = vunpack.c.l.b16 %v314
        %v427 = vunpack.c.l.b16 %v315
        %v428 = vunpack.c.l.b16 %v316
        %v429 = vunpack.c.l.b16 %v317
        %v430 = vunpack.c.l.b16 %v318
        %v431 = vunpack.c.l.b16 %v319
        %v432 = vunpack.c.l.b16 %v320
        %v433 = vunpack.c.l.b16 %v321
        %v434 = vunpack.c.l.b16 %v322
        %v435 = vunpack.c.l.b16 %v323
        %v436 = vunpack.c.l.b16 %v324
        %v437 = vunpack.c.l.b16 %v325
        %v438 = vunpack.c.l.b16 %v326
        %v439 = vunpack.c.l.b16 %v327
        %v440 = vunpack.c.l.b16 %v328
        %v441 = vunpack.c.l.b16 %v329
        %v442 = vunpack.c.l.b16 %v330
        %v443 = vunpack.c.l.b16 %v331
        %v444 = vunpack.c.l.b16 %v332
        %v445 = vunpack.c.l.b16 %v333
        %v446 = vunpack.c.l.b16 %v334
        %v447 = vunpack.c.l.b16 %v335
        %v448 = vunpack.c.l.b16 %v336
        %v449 = vunpack.c.l.b16 %v337
        %v450 = vunpack.c.l.b16 %v338
        %v451 = vunpack.c.l.b16 %v339
        %v452 = vunpack.c.l.b16 %v340
        %v453 = vunpack.c.l.b16 %v341
        %v454 = vunpack.c.l.b16 %v342
        %v455 = vunpack.c.l.b16 %v343
        %v456 = vunpack.c.l.b16 %v344
        %v457 = vunpack.c.l.b16 %v345
        %v458 = vunpack.c.l.b16 %v346
        %v459 = vunpack.c.l.b16 %v347
        %v460 = vunpack.c.l.b16 %v348
        %v461 = vunpack.c.l.b16 %v349
        %v462 = vunpack.c.l.b16 %v350
        %v463 = vunpack.c.l.b16 %v351
        %v464 = vunpack.c.l.b16 %v352
        %v465 = vunpack.c.l.b16 %v353
        %v466 = vunpack.c.l.b16 %v354
        %v467 = vunpack.c.l.b16 %v355
        %v468 = vunpack.c.l.b16 %v356
        %v469 = vunpack.c.l.b16 %v357
        %v470 = vunpack.c.l.b16 %v358
        %v471 = vunpack.c.l.b16 %v359
        %v472 = vpack.c.b16 %v425, %v424
        %v473 = vpack.c.b16 %v427, %v426
        %v474 = vpack.c.b16 %v429, %v428
        %v475 = vpack.c.b16 %v431, %v430
        %v476 = vpack.c.b16 %v433, %v432
        %v477 = vpack.c.b16 %v435, %v434
        %v478 = vpack.c.b16 %v437, %v436
        %v479 = vpack.c.b16 %v439, %v438
        %v480 = vpack.c.b16 %v441, %v440
        %v481 = vpack.c.b16 %v443, %v442
        %v482 = vpack.c.b16 %v445, %v444
        %v483 = vpack.c.b16 %v447, %v446
        %v484 = vpack.c.b16 %v449, %v448
        %v485 = vpack.c.b16 %v451, %v450
        %v486 = vpack.c.b16 %v453, %v452
        %v487 = vpack.c.b16 %v455, %v454
        %v488 = vpack.c.b16 %v457, %v456
        %v489 = vpack.c.b16 %v459, %v458
        %v490 = vpack.c.b16 %v461, %v460
        %v491 = vpack.c.b16 %v463, %v462
        %v492 = vpack.c.b16 %v465, %v464
        %v493 = vpack.c.b16 %v467, %v466
        %v494 = vpack.c.b16 %v469, %v468
        %v495 = vpack.c.b16 %v471, %v470
        %v536 = vunpack.c.l.b16 %v360
        %v537 = vunpack.c.l.b16 %v361
        %v538 = vunpack.c.l.b16 %v362
        %v539 = vunpack.c.l.b16 %v363
        %v540 = vunpack.c.l.b16 %v364
        %v541 = vunpack.c.l.b16 %v365
        %v542 = vunpack.c.l.b16 %v366
        %v543 = vunpack.c.l.b16 %v367
        %v544 = vunpack.c.l.b16 %v368
        %v545 = vunpack.c.l.b16 %v369
        %v546 = vunpack.c.l.b16 %v370
        %v547 = vunpack.c.l.b16 %v371
        %v548 = vunpack.c.l.b16 %v372
        %v549 = vunpack.c.l.b16 %v373
        %v550 = vunpack.c.l.b16 %v374
        %v551 = vunpack.c.l.b16 %v375
        %v552 = vpack.c.b16 %v537, %v536
        %v553 = vpack.c.b16 %v539, %v538
        %v554 = vpack.c.b16 %v541, %v540
        %v555 = vpack.c.b16 %v543, %v542
        %v556 = vpack.c.b16 %v545, %v544
        %v557 = vpack.c.b16 %v547, %v546
        %v558 = vpack.c.b16 %v549, %v548
        %v559 = vpack.c.b16 %v551, %v550
        %568 = vmatprep.subr.bf16.mxu0 0
        %569 = vmatpush1.bf16.msra.mxu0 %v552
        %570 = vmatprep.subr.bf16.mxu0 0
        %571 = vmatpush1.bf16.msra.mxu0 %v553
        %572 = vmatprep.subr.bf16.mxu0 0
        %573 = vmatpush1.bf16.msra.mxu0 %v554
        %574 = vmatprep.subr.bf16.mxu0 0
        %575 = vmatpush1.bf16.msra.mxu0 %v555
        %576 = vmatprep.subr.bf16.mxu0 0
        %577 = vmatpush1.bf16.msra.mxu0 %v556
        %578 = vmatprep.subr.bf16.mxu0 0
        %579 = vmatpush1.bf16.msra.mxu0 %v557
        %580 = vmatprep.subr.bf16.mxu0 0
        %581 = vmatpush1.bf16.msra.mxu0 %v558
        %582 = vmatprep.subr.bf16.mxu0 0
        %583 = vmatpush1.bf16.msra.mxu0 %v559
        %584 = vmatprep.subr.bf16.mxu0 0
        %585 = vmatpush1.bf16.msra.mxu0 0
        %586 = vmatprep.subr.bf16.mxu0 0
        %587 = vmatpush1.bf16.msra.mxu0 0
        %588 = vmatprep.subr.bf16.mxu0 0
        %589 = vmatpush1.bf16.msra.mxu0 0
        %590 = vmatprep.subr.bf16.mxu0 0
        %591 = vmatpush1.bf16.msra.mxu0 0
        %592 = vmatprep.subr.bf16.mxu0 0
        %593 = vmatpush1.bf16.msra.mxu0 0
        %594 = vmatprep.subr.bf16.mxu0 0
        %595 = vmatpush1.bf16.msra.mxu0 0
        %596 = vmatprep.subr.bf16.mxu0 0
        %597 = vmatpush1.bf16.msra.mxu0 0
        %598 = vmatprep.subr.bf16.mxu0 0
        %599 = vmatpush1.bf16.msra.mxu0 0
        %600 = vmatprep.mubr.bf16.mxu0 0
        %601 = vmatmul.mubr.bf16.gmra.mrb[0].mxu0 %v472
        %v602 = vpop.f32.mrb[0].mxu0
        %v603 = vadd.f32 0.0, %v602
        %v604 = vpop.f32.mrb[0].mxu0
        %v605 = vpop.f32.mrb[0].mxu0
        %v606 = vadd.f32 0.0, %v605
        %v607 = vpop.f32.mrb[0].mxu0
        %608 = vmatprep.mubr.bf16.mxu0 0
        %609 = vmatmul.mubr.bf16.gmra.mrb[0].mxu0 %v473
        %v610 = vpop.f32.mrb[0].mxu0
        %v611 = vadd.f32 0.0, %v610
        %v612 = vpop.f32.mrb[0].mxu0
        %v613 = vpop.f32.mrb[0].mxu0
        %v614 = vadd.f32 0.0, %v613
        %v615 = vpop.f32.mrb[0].mxu0
        %616 = vmatprep.mubr.bf16.mxu0 0
        %617 = vmatmul.mubr.bf16.gmra.mrb[0].mxu0 %v474
        %v618 = vpop.f32.mrb[0].mxu0
        %v619 = vadd.f32 0.0, %v618
        %v620 = vpop.f32.mrb[0].mxu0
        %v621 = vpop.f32.mrb[0].mxu0
        %v622 = vadd.f32 0.0, %v621
        %v623 = vpop.f32.mrb[0].mxu0
        %624 = vmatprep.mubr.bf16.mxu0 0
        %625 = vmatmul.mubr.bf16.gmra.mrb[0].mxu0 %v475
        %v626 = vpop.f32.mrb[0].mxu0
        %v627 = vadd.f32 0.0, %v626
        %v628 = vpop.f32.mrb[0].mxu0
        %v629 = vpop.f32.mrb[0].mxu0
        %v630 = vadd.f32 0.0, %v629
        %v631 = vpop.f32.mrb[0].mxu0
        %632 = vmatprep.mubr.bf16.mxu0 0
        %633 = vmatmul.mubr.bf16.gmra.mrb[0].mxu0 %v476
        %v634 = vpop.f32.mrb[0].mxu0
        %v635 = vadd.f32 0.0, %v634
        %v636 = vpop.f32.mrb[0].mxu0
        %v637 = vpop.f32.mrb[0].mxu0
        %v638 = vadd.f32 0.0, %v637
        %v639 = vpop.f32.mrb[0].mxu0
        %640 = vmatprep.mubr.bf16.mxu0 0
        %641 = vmatmul.mubr.bf16.gmra.mrb[0].mxu0 %v477
        %v642 = vpop.f32.mrb[0].mxu0
        %v643 = vadd.f32 0.0, %v642
        %v644 = vpop.f32.mrb[0].mxu0
        %v645 = vpop.f32.mrb[0].mxu0
        %v646 = vadd.f32 0.0, %v645
        %v647 = vpop.f32.mrb[0].mxu0
        %648 = vmatprep.mubr.bf16.mxu0 0
        %649 = vmatmul.mubr.bf16.gmra.mrb[0].mxu0 %v478
        %v650 = vpop.f32.mrb[0].mxu0
        %v651 = vadd.f32 0.0, %v650
        %v652 = vpop.f32.mrb[0].mxu0
        %v653 = vpop.f32.mrb[0].mxu0
        %v654 = vadd.f32 0.0, %v653
        %v655 = vpop.f32.mrb[0].mxu0
        %656 = vmatprep.mubr.bf16.mxu0 0
        %657 = vmatmul.mubr.bf16.gmra.mrb[0].mxu0 %v479
        %v658 = vpop.f32.mrb[0].mxu0
        %v659 = vadd.f32 0.0, %v658
        %v660 = vpop.f32.mrb[0].mxu0
        %v661 = vpop.f32.mrb[0].mxu0
        %v662 = vadd.f32 0.0, %v661
        %v663 = vpop.f32.mrb[0].mxu0
        %664 = vmatprep.mubr.bf16.mxu0 0
        %665 = vmatmul.mubr.bf16.gmra.mrb[0].mxu0 %v480
        %v666 = vpop.f32.mrb[0].mxu0
        %v667 = vadd.f32 0.0, %v666
        %v668 = vpop.f32.mrb[0].mxu0
        %v669 = vpop.f32.mrb[0].mxu0
        %v670 = vadd.f32 0.0, %v669
        %v671 = vpop.f32.mrb[0].mxu0
        %672 = vmatprep.mubr.bf16.mxu0 0
        %673 = vmatmul.mubr.bf16.gmra.mrb[0].mxu0 %v481
        %v674 = vpop.f32.mrb[0].mxu0
        %v675 = vadd.f32 0.0, %v674
        %v676 = vpop.f32.mrb[0].mxu0
        %v677 = vpop.f32.mrb[0].mxu0
        %v678 = vadd.f32 0.0, %v677
        %v679 = vpop.f32.mrb[0].mxu0
        %680 = vmatprep.mubr.bf16.mxu0 0
        %681 = vmatmul.mubr.bf16.gmra.mrb[0].mxu0 %v482
        %v682 = vpop.f32.mrb[0].mxu0
        %v683 = vadd.f32 0.0, %v682
        %v684 = vpop.f32.mrb[0].mxu0
        %v685 = vpop.f32.mrb[0].mxu0
        %v686 = vadd.f32 0.0, %v685
        %v687 = vpop.f32.mrb[0].mxu0
        %688 = vmatprep.mubr.bf16.mxu0 0
        %689 = vmatmul.mubr.bf16.gmra.mrb[0].mxu0 %v483
        %v690 = vpop.f32.mrb[0].mxu0
        %v691 = vadd.f32 0.0, %v690
        %v692 = vpop.f32.mrb[0].mxu0
        %v693 = vpop.f32.mrb[0].mxu0
        %v694 = vadd.f32 0.0, %v693
        %v695 = vpop.f32.mrb[0].mxu0
        %696 = vmatprep.mubr.bf16.mxu0 0
        %697 = vmatmul.mubr.bf16.gmra.mrb[0].mxu0 %v484
        %v698 = vpop.f32.mrb[0].mxu0
        %v699 = vadd.f32 0.0, %v698
        %v700 = vpop.f32.mrb[0].mxu0
        %v701 = vpop.f32.mrb[0].mxu0
        %v702 = vadd.f32 0.0, %v701
        %v703 = vpop.f32.mrb[0].mxu0
        %704 = vmatprep.mubr.bf16.mxu0 0
        %705 = vmatmul.mubr.bf16.gmra.mrb[0].mxu0 %v485
        %v706 = vpop.f32.mrb[0].mxu0
        %v707 = vadd.f32 0.0, %v706
        %v708 = vpop.f32.mrb[0].mxu0
        %v709 = vpop.f32.mrb[0].mxu0
        %v710 = vadd.f32 0.0, %v709
        %v711 = vpop.f32.mrb[0].mxu0
        %712 = vmatprep.mubr.bf16.mxu0 0
        %713 = vmatmul.mubr.bf16.gmra.mrb[0].mxu0 %v486
        %v714 = vpop.f32.mrb[0].mxu0
        %v715 = vadd.f32 0.0, %v714
        %v716 = vpop.f32.mrb[0].mxu0
        %v717 = vpop.f32.mrb[0].mxu0
        %v718 = vadd.f32 0.0, %v717
        %v719 = vpop.f32.mrb[0].mxu0
        %720 = vmatprep.mubr.bf16.mxu0 0
        %721 = vmatmul.mubr.bf16.gmra.mrb[0].mxu0 %v487
        %v722 = vpop.f32.mrb[0].mxu0
        %v723 = vadd.f32 0.0, %v722
        %v724 = vpop.f32.mrb[0].mxu0
        %v725 = vpop.f32.mrb[0].mxu0
        %v726 = vadd.f32 0.0, %v725
        %v727 = vpop.f32.mrb[0].mxu0
        %728 = vmatprep.mubr.bf16.mxu0 0
        %729 = vmatmul.mubr.bf16.gmra.mrb[0].mxu0 %v488
        %v730 = vpop.f32.mrb[0].mxu0
        %v731 = vadd.f32 0.0, %v730
        %v732 = vpop.f32.mrb[0].mxu0
        %v733 = vpop.f32.mrb[0].mxu0
        %v734 = vadd.f32 0.0, %v733
        %v735 = vpop.f32.mrb[0].mxu0
        %736 = vmatprep.mubr.bf16.mxu0 0
        %737 = vmatmul.mubr.bf16.gmra.mrb[0].mxu0 %v489
        %v738 = vpop.f32.mrb[0].mxu0
        %v739 = vadd.f32 0.0, %v738
        %v740 = vpop.f32.mrb[0].mxu0
        %v741 = vpop.f32.mrb[0].mxu0
        %v742 = vadd.f32 0.0, %v741
        %v743 = vpop.f32.mrb[0].mxu0
        %744 = vmatprep.mubr.bf16.mxu0 0
        %745 = vmatmul.mubr.bf16.gmra.mrb[0].mxu0 %v490
        %v746 = vpop.f32.mrb[0].mxu0
        %v747 = vadd.f32 0.0, %v746
        %v748 = vpop.f32.mrb[0].mxu0
        %v749 = vpop.f32.mrb[0].mxu0
        %v750 = vadd.f32 0.0, %v749
        %v751 = vpop.f32.mrb[0].mxu0
        %752 = vmatprep.mubr.bf16.mxu0 0
        %753 = vmatmul.mubr.bf16.gmra.mrb[0].mxu0 %v491
        %v754 = vpop.f32.mrb[0].mxu0
        %v755 = vadd.f32 0.0, %v754
        %v756 = vpop.f32.mrb[0].mxu0
        %v757 = vpop.f32.mrb[0].mxu0
        %v758 = vadd.f32 0.0, %v757
        %v759 = vpop.f32.mrb[0].mxu0
        %760 = vmatprep.mubr.bf16.mxu0 0
        %761 = vmatmul.mubr.bf16.gmra.mrb[0].mxu0 %v492
        %v762 = vpop.f32.mrb[0].mxu0
        %v763 = vadd.f32 0.0, %v762
        %v764 = vpop.f32.mrb[0].mxu0
        %v765 = vpop.f32.mrb[0].mxu0
        %v766 = vadd.f32 0.0, %v765
        %v767 = vpop.f32.mrb[0].mxu0
        %768 = vmatprep.mubr.bf16.mxu0 0
        %769 = vmatmul.mubr.bf16.gmra.mrb[0].mxu0 %v493
        %v770 = vpop.f32.mrb[0].mxu0
        %v771 = vadd.f32 0.0, %v770
        %v772 = vpop.f32.mrb[0].mxu0
        %v773 = vpop.f32.mrb[0].mxu0
        %v774 = vadd.f32 0.0, %v773
        %v775 = vpop.f32.mrb[0].mxu0
        %776 = vmatprep.mubr.bf16.mxu0 0
        %777 = vmatmul.mubr.bf16.gmra.mrb[0].mxu0 %v494
        %v778 = vpop.f32.mrb[0].mxu0
        %v779 = vadd.f32 0.0, %v778
        %v780 = vpop.f32.mrb[0].mxu0
        %v781 = vpop.f32.mrb[0].mxu0
        %v782 = vadd.f32 0.0, %v781
        %v783 = vpop.f32.mrb[0].mxu0
        %784 = vmatprep.mubr.bf16.mxu0 0
        %785 = vmatmul.mubr.bf16.gmra.mrb[0].mxu0 %v495
        %v786 = vpop.f32.mrb[0].mxu0
        %v787 = vadd.f32 0.0, %v786
        %v788 = vpop.f32.mrb[0].mxu0
        %v789 = vpop.f32.mrb[0].mxu0
        %v790 = vadd.f32 0.0, %v789
        %v791 = vpop.f32.mrb[0].mxu0
        %792 = vdwg.mxu0
        %v793 = vmul.f32 %v603, 0.088388346
        %v794 = vmul.f32 %v606, 0.088388346
        %v795 = vmul.f32 %v611, 0.088388346
        %v796 = vmul.f32 %v614, 0.088388346
        %v797 = vmul.f32 %v619, 0.088388346
        %v798 = vmul.f32 %v622, 0.088388346
        %v799 = vmul.f32 %v627, 0.088388346
        %v800 = vmul.f32 %v630, 0.088388346
        %v801 = vmul.f32 %v635, 0.088388346
        %v802 = vmul.f32 %v638, 0.088388346
        %v803 = vmul.f32 %v643, 0.088388346
        %v804 = vmul.f32 %v646, 0.088388346
        %v805 = vmul.f32 %v651, 0.088388346
        %v806 = vmul.f32 %v654, 0.088388346
        %v807 = vmul.f32 %v659, 0.088388346
        %v808 = vmul.f32 %v662, 0.088388346
        %v809 = vmul.f32 %v667, 0.088388346
        %v810 = vmul.f32 %v670, 0.088388346
        %v811 = vmul.f32 %v675, 0.088388346
        %v812 = vmul.f32 %v678, 0.088388346
        %v813 = vmul.f32 %v683, 0.088388346
        %v814 = vmul.f32 %v686, 0.088388346
        %v815 = vmul.f32 %v691, 0.088388346
        %v816 = vmul.f32 %v694, 0.088388346
        %v817 = vmul.f32 %v699, 0.088388346
        %v818 = vmul.f32 %v702, 0.088388346
        %v819 = vmul.f32 %v707, 0.088388346
        %v820 = vmul.f32 %v710, 0.088388346
        %v821 = vmul.f32 %v715, 0.088388346
        %v822 = vmul.f32 %v718, 0.088388346
        %v823 = vmul.f32 %v723, 0.088388346
        %v824 = vmul.f32 %v726, 0.088388346
        %v825 = vmul.f32 %v731, 0.088388346
        %v826 = vmul.f32 %v734, 0.088388346
        %v827 = vmul.f32 %v739, 0.088388346
        %v828 = vmul.f32 %v742, 0.088388346
        %v829 = vmul.f32 %v747, 0.088388346
        %v830 = vmul.f32 %v750, 0.088388346
        %v831 = vmul.f32 %v755, 0.088388346
        %v832 = vmul.f32 %v758, 0.088388346
        %v833 = vmul.f32 %v763, 0.088388346
        %v834 = vmul.f32 %v766, 0.088388346
        %v835 = vmul.f32 %v771, 0.088388346
        %v836 = vmul.f32 %v774, 0.088388346
        %v837 = vmul.f32 %v779, 0.088388346
        %v838 = vmul.f32 %v782, 0.088388346
        %v839 = vmul.f32 %v787, 0.088388346
        %v840 = vmul.f32 %v790, 0.088388346
        %v841 = vpack.c.bf16 %v794, %v793
        %v842 = vpack.c.bf16 %v796, %v795
        %v843 = vpack.c.bf16 %v798, %v797
        %v844 = vpack.c.bf16 %v800, %v799
        %v845 = vpack.c.bf16 %v802, %v801
        %v846 = vpack.c.bf16 %v804, %v803
        %v847 = vpack.c.bf16 %v806, %v805
        %v848 = vpack.c.bf16 %v808, %v807
        %v849 = vpack.c.bf16 %v810, %v809
        %v850 = vpack.c.bf16 %v812, %v811
        %v851 = vpack.c.bf16 %v814, %v813
        %v852 = vpack.c.bf16 %v816, %v815
        %v853 = vpack.c.bf16 %v818, %v817
        %v854 = vpack.c.bf16 %v820, %v819
        %v855 = vpack.c.bf16 %v822, %v821
        %v856 = vpack.c.bf16 %v824, %v823
        %v857 = vpack.c.bf16 %v826, %v825
        %v858 = vpack.c.bf16 %v828, %v827
        %v859 = vpack.c.bf16 %v830, %v829
        %v860 = vpack.c.bf16 %v832, %v831
        %v861 = vpack.c.bf16 %v834, %v833
        %v862 = vpack.c.bf16 %v836, %v835
        %v863 = vpack.c.bf16 %v838, %v837
        %v864 = vpack.c.bf16 %v840, %v839
        %865 = vst [vmem:[#allocation2] sm:$0xff] %v841
        %866 = vst [vmem:[#allocation2 + $0x8] sm:$0xff] %v842
        %867 = vst [vmem:[#allocation2 + $0x10] sm:$0xff] %v843
        %868 = vst [vmem:[#allocation2 + $0x18] sm:$0xff] %v844
        %869 = vst [vmem:[#allocation2 + $0x20] sm:$0xff] %v845
        %870 = vst [vmem:[#allocation2 + $0x28] sm:$0xff] %v846
        %871 = vst [vmem:[#allocation2 + $0x30] sm:$0xff] %v847
        %872 = vst [vmem:[#allocation2 + $0x38] sm:$0xff] %v848
        %873 = vst [vmem:[#allocation2 + $0x40] sm:$0xff] %v849
        %874 = vst [vmem:[#allocation2 + $0x48] sm:$0xff] %v850
        %875 = vst [vmem:[#allocation2 + $0x50] sm:$0xff] %v851
        %876 = vst [vmem:[#allocation2 + $0x58] sm:$0xff] %v852
        %877 = vst [vmem:[#allocation2 + $0x60] sm:$0xff] %v853
        %878 = vst [vmem:[#allocation2 + $0x68] sm:$0xff] %v854
        %879 = vst [vmem:[#allocation2 + $0x70] sm:$0xff] %v855
        %880 = vst [vmem:[#allocation2 + $0x78] sm:$0xff] %v856
        %881 = vst [vmem:[#allocation2 + $0x80] sm:$0xff] %v857
        %882 = vst [vmem:[#allocation2 + $0x88] sm:$0xff] %v858
        %883 = vst [vmem:[#allocation2 + $0x90] sm:$0xff] %v859
        %884 = vst [vmem:[#allocation2 + $0x98] sm:$0xff] %v860
        %885 = vst [vmem:[#allocation2 + $0xa0] sm:$0xff] %v861
        %886 = vst [vmem:[#allocation2 + $0xa8] sm:$0xff] %v862
        %887 = vst [vmem:[#allocation2 + $0xb0] sm:$0xff] %v863
        %888 = vst [vmem:[#allocation2 + $0xb8] sm:$0xff] %v864
        %v889 = vlaneseq
        %vm890 = vcmp.ge.s32.totalorder %v889, 0
        %vm891 = vcmp.lt.s32.totalorder %v889, 384
        %vm892 = vmand %vm890, %vm891
        %893 = vst.msk [vmem:[#allocation3] sm:$0x7] %vm892, -inf
        %894 = vst.msk [vmem:[#allocation4] sm:$0x7] %vm892, 0.0
        %895 = vst [vmem:[#allocation5] sm:$0xff] 0.0
        %896 = vst [vmem:[#allocation5 + $0x8] sm:$0xff] 0.0
        %897 = vst [vmem:[#allocation5 + $0x10] sm:$0xff] 0.0
        %898 = vst [vmem:[#allocation5 + $0x18] sm:$0xff] 0.0
        %899 = vst [vmem:[#allocation5 + $0x20] sm:$0xff] 0.0
        %900 = vst [vmem:[#allocation5 + $0x28] sm:$0xff] 0.0
        %901 = vst [vmem:[#allocation5 + $0x30] sm:$0xff] 0.0
        %902 = vst [vmem:[#allocation5 + $0x38] sm:$0xff] 0.0
        %903 = vst [vmem:[#allocation5 + $0x40] sm:$0xff] 0.0
        %904 = vst [vmem:[#allocation5 + $0x48] sm:$0xff] 0.0
        %905 = vst [vmem:[#allocation5 + $0x50] sm:$0xff] 0.0
        %906 = vst [vmem:[#allocation5 + $0x58] sm:$0xff] 0.0
        %907 = vst [vmem:[#allocation5 + $0x60] sm:$0xff] 0.0
        %908 = vst [vmem:[#allocation5 + $0x68] sm:$0xff] 0.0
        %909 = vst [vmem:[#allocation5 + $0x70] sm:$0xff] 0.0
        %910 = vst [vmem:[#allocation5 + $0x78] sm:$0xff] 0.0
        %911 = vst [vmem:[#allocation5 + $0x80] sm:$0xff] 0.0
        %912 = vst [vmem:[#allocation5 + $0x88] sm:$0xff] 0.0
        %913 = vst [vmem:[#allocation5 + $0x90] sm:$0xff] 0.0
        %914 = vst [vmem:[#allocation5 + $0x98] sm:$0xff] 0.0
        %915 = vst [vmem:[#allocation5 + $0xa0] sm:$0xff] 0.0
        %916 = vst [vmem:[#allocation5 + $0xa8] sm:$0xff] 0.0
        %917 = vst [vmem:[#allocation5 + $0xb0] sm:$0xff] 0.0
        %918 = vst [vmem:[#allocation5 + $0xb8] sm:$0xff] 0.0
        %919 = vst [vmem:[#allocation5 + $0xc0] sm:$0xff] 0.0
        %920 = vst [vmem:[#allocation5 + $0xc8] sm:$0xff] 0.0
        %921 = vst [vmem:[#allocation5 + $0xd0] sm:$0xff] 0.0
        %922 = vst [vmem:[#allocation5 + $0xd8] sm:$0xff] 0.0
        %923 = vst [vmem:[#allocation5 + $0xe0] sm:$0xff] 0.0
        %924 = vst [vmem:[#allocation5 + $0xe8] sm:$0xff] 0.0
        %925 = vst [vmem:[#allocation5 + $0xf0] sm:$0xff] 0.0
        %926 = vst [vmem:[#allocation5 + $0xf8] sm:$0xff] 0.0
        %927 = vst [vmem:[#allocation5 + $0x100] sm:$0xff] 0.0
        %928 = vst [vmem:[#allocation5 + $0x108] sm:$0xff] 0.0
        %929 = vst [vmem:[#allocation5 + $0x110] sm:$0xff] 0.0
        %930 = vst [vmem:[#allocation5 + $0x118] sm:$0xff] 0.0
        %931 = vst [vmem:[#allocation5 + $0x120] sm:$0xff] 0.0
        %932 = vst [vmem:[#allocation5 + $0x128] sm:$0xff] 0.0
        %933 = vst [vmem:[#allocation5 + $0x130] sm:$0xff] 0.0
        %934 = vst [vmem:[#allocation5 + $0x138] sm:$0xff] 0.0
        %935 = vst [vmem:[#allocation5 + $0x140] sm:$0xff] 0.0
        %936 = vst [vmem:[#allocation5 + $0x148] sm:$0xff] 0.0
        %937 = vst [vmem:[#allocation5 + $0x150] sm:$0xff] 0.0
        %938 = vst [vmem:[#allocation5 + $0x158] sm:$0xff] 0.0
        %939 = vst [vmem:[#allocation5 + $0x160] sm:$0xff] 0.0
        %940 = vst [vmem:[#allocation5 + $0x168] sm:$0xff] 0.0
        %941 = vst [vmem:[#allocation5 + $0x170] sm:$0xff] 0.0
        %942 = vst [vmem:[#allocation5 + $0x178] sm:$0xff] 0.0
      $region44: #{causal_self_attention.2} parent=39 // pred_fallthru
        _
      %s943 = smul.u32 %s23, 384
      %s944 = sadd.s32 %s22, 1
      %s945 = smul.u32 %s944, 384
      %p946 = scmp.lt.s32.totalorder %s943, %s945
      // Predicated region
      $region45: #{causal_self_attention.2} parent=39 // pred_check
        %p947 = pneg %p946
      $region46: #{causal_self_attention.2} parent=39 // pred_check_branch
        %949 = sbr.rel (%p947) target = $region48
      $region47: #{causal_self_attention.2} parent=39 // pred_region
        %v950 = vld [vmem:[%s295] sm:$0xf]
        %v951 = vld [vmem:[%s295 + $0x4] sm:$0xf]
        %v952 = vld [vmem:[%s295 + $0x8] sm:$0xf]
        %v953 = vld [vmem:[%s295 + $0xc] sm:$0xf]
        %v954 = vld [vmem:[%s295 + $0x10] sm:$0xf]
        %v955 = vld [vmem:[%s295 + $0x14] sm:$0xf]
        %v956 = vld [vmem:[%s295 + $0x18] sm:$0xf]
        %v957 = vld [vmem:[%s295 + $0x1c] sm:$0xf]
        %v958 = vld [vmem:[%s295 + $0x20] sm:$0xf]
        %v959 = vld [vmem:[%s295 + $0x24] sm:$0xf]
        %v960 = vld [vmem:[%s295 + $0x28] sm:$0xf]
        %v961 = vld [vmem:[%s295 + $0x2c] sm:$0xf]
        %v962 = vld [vmem:[%s295 + $0x30] sm:$0xf]
        %v963 = vld [vmem:[%s295 + $0x34] sm:$0xf]
        %v964 = vld [vmem:[%s295 + $0x38] sm:$0xf]
        %v965 = vld [vmem:[%s295 + $0x3c] sm:$0xf]
        %v966 = vld [vmem:[%s295 + $0x40] sm:$0xf]
        %v967 = vld [vmem:[%s295 + $0x44] sm:$0xf]
        %v968 = vld [vmem:[%s295 + $0x48] sm:$0xf]
        %v969 = vld [vmem:[%s295 + $0x4c] sm:$0xf]
        %v970 = vld [vmem:[%s295 + $0x50] sm:$0xf]
        %v971 = vld [vmem:[%s295 + $0x54] sm:$0xf]
        %v972 = vld [vmem:[%s295 + $0x58] sm:$0xf]
        %v973 = vld [vmem:[%s295 + $0x5c] sm:$0xf]
        %v974 = vld [vmem:[%s295 + $0x60] sm:$0xf]
        %v975 = vld [vmem:[%s295 + $0x64] sm:$0xf]
        %v976 = vld [vmem:[%s295 + $0x68] sm:$0xf]
        %v977 = vld [vmem:[%s295 + $0x6c] sm:$0xf]
        %v978 = vld [vmem:[%s295 + $0x70] sm:$0xf]
        %v979 = vld [vmem:[%s295 + $0x74] sm:$0xf]
        %v980 = vld [vmem:[%s295 + $0x78] sm:$0xf]
        %v981 = vld [vmem:[%s295 + $0x7c] sm:$0xf]
        %v982 = vld [vmem:[%s295 + $0x80] sm:$0xf]
        %v983 = vld [vmem:[%s295 + $0x84] sm:$0xf]
        %v984 = vld [vmem:[%s295 + $0x88] sm:$0xf]
        %v985 = vld [vmem:[%s295 + $0x8c] sm:$0xf]
        %v986 = vld [vmem:[%s295 + $0x90] sm:$0xf]
        %v987 = vld [vmem:[%s295 + $0x94] sm:$0xf]
        %v988 = vld [vmem:[%s295 + $0x98] sm:$0xf]
        %v989 = vld [vmem:[%s295 + $0x9c] sm:$0xf]
        %v990 = vld [vmem:[%s295 + $0xa0] sm:$0xf]
        %v991 = vld [vmem:[%s295 + $0xa4] sm:$0xf]
        %v992 = vld [vmem:[%s295 + $0xa8] sm:$0xf]
        %v993 = vld [vmem:[%s295 + $0xac] sm:$0xf]
        %v994 = vld [vmem:[%s295 + $0xb0] sm:$0xf]
        %v995 = vld [vmem:[%s295 + $0xb4] sm:$0xf]
        %v996 = vld [vmem:[%s295 + $0xb8] sm:$0xf]
        %v997 = vld [vmem:[%s295 + $0xbc] sm:$0xf]
        %v998 = vld [vmem:[%s3] sm:$0xf]
        %v999 = vld [vmem:[%s3 + $0x4] sm:$0xf]
        %v1000 = vld [vmem:[%s3 + $0x8] sm:$0xf]
        %v1001 = vld [vmem:[%s3 + $0xc] sm:$0xf]
        %v1002 = vld [vmem:[%s3 + $0x10] sm:$0xf]
        %v1003 = vld [vmem:[%s3 + $0x14] sm:$0xf]
        %v1004 = vld [vmem:[%s3 + $0x18] sm:$0xf]
        %v1005 = vld [vmem:[%s3 + $0x1c] sm:$0xf]
        %v1006 = vld [vmem:[%s3 + $0x20] sm:$0xf]
        %v1007 = vld [vmem:[%s3 + $0x24] sm:$0xf]
        %v1008 = vld [vmem:[%s3 + $0x28] sm:$0xf]
        %v1009 = vld [vmem:[%s3 + $0x2c] sm:$0xf]
        %v1010 = vld [vmem:[%s3 + $0x30] sm:$0xf]
        %v1011 = vld [vmem:[%s3 + $0x34] sm:$0xf]
        %v1012 = vld [vmem:[%s3 + $0x38] sm:$0xf]
        %v1013 = vld [vmem:[%s3 + $0x3c] sm:$0xf]
        %v1062 = vunpack.c.l.b16 %v950
        %v1063 = vunpack.c.l.b16 %v951
        %v1064 = vunpack.c.l.b16 %v952
        %v1065 = vunpack.c.l.b16 %v953
        %v1066 = vunpack.c.l.b16 %v954
        %v1067 = vunpack.c.l.b16 %v955
        %v1068 = vunpack.c.l.b16 %v956
        %v1069 = vunpack.c.l.b16 %v957
        %v1070 = vunpack.c.l.b16 %v958
        %v1071 = vunpack.c.l.b16 %v959
        %v1072 = vunpack.c.l.b16 %v960
        %v1073 = vunpack.c.l.b16 %v961
        %v1074 = vunpack.c.l.b16 %v962
        %v1075 = vunpack.c.l.b16 %v963
        %v1076 = vunpack.c.l.b16 %v964
        %v1077 = vunpack.c.l.b16 %v965
        %v1078 = vunpack.c.l.b16 %v966
        %v1079 = vunpack.c.l.b16 %v967
        %v1080 = vunpack.c.l.b16 %v968
        %v1081 = vunpack.c.l.b16 %v969
        %v1082 = vunpack.c.l.b16 %v970
        %v1083 = vunpack.c.l.b16 %v971
        %v1084 = vunpack.c.l.b16 %v972
        %v1085 = vunpack.c.l.b16 %v973
        %v1086 = vunpack.c.l.b16 %v974
        %v1087 = vunpack.c.l.b16 %v975
        %v1088 = vunpack.c.l.b16 %v976
        %v1089 = vunpack.c.l.b16 %v977
        %v1090 = vunpack.c.l.b16 %v978
        %v1091 = vunpack.c.l.b16 %v979
        %v1092 = vunpack.c.l.b16 %v980
        %v1093 = vunpack.c.l.b16 %v981
        %v1094 = vunpack.c.l.b16 %v982
        %v1095 = vunpack.c.l.b16 %v983
        %v1096 = vunpack.c.l.b16 %v984
        %v1097 = vunpack.c.l.b16 %v985
        %v1098 = vunpack.c.l.b16 %v986
        %v1099 = vunpack.c.l.b16 %v987
        %v1100 = vunpack.c.l.b16 %v988
        %v1101 = vunpack.c.l.b16 %v989
        %v1102 = vunpack.c.l.b16 %v990
        %v1103 = vunpack.c.l.b16 %v991
        %v1104 = vunpack.c.l.b16 %v992
        %v1105 = vunpack.c.l.b16 %v993
        %v1106 = vunpack.c.l.b16 %v994
        %v1107 = vunpack.c.l.b16 %v995
        %v1108 = vunpack.c.l.b16 %v996
        %v1109 = vunpack.c.l.b16 %v997
        %v1110 = vpack.c.b16 %v1063, %v1062
        %v1111 = vpack.c.b16 %v1065, %v1064
        %v1112 = vpack.c.b16 %v1067, %v1066
        %v1113 = vpack.c.b16 %v1069, %v1068
        %v1114 = vpack.c.b16 %v1071, %v1070
        %v1115 = vpack.c.b16 %v1073, %v1072
        %v1116 = vpack.c.b16 %v1075, %v1074
        %v1117 = vpack.c.b16 %v1077, %v1076
        %v1118 = vpack.c.b16 %v1079, %v1078
        %v1119 = vpack.c.b16 %v1081, %v1080
        %v1120 = vpack.c.b16 %v1083, %v1082
        %v1121 = vpack.c.b16 %v1085, %v1084
        %v1122 = vpack.c.b16 %v1087, %v1086
        %v1123 = vpack.c.b16 %v1089, %v1088
        %v1124 = vpack.c.b16 %v1091, %v1090
        %v1125 = vpack.c.b16 %v1093, %v1092
        %v1126 = vpack.c.b16 %v1095, %v1094
        %v1127 = vpack.c.b16 %v1097, %v1096
        %v1128 = vpack.c.b16 %v1099, %v1098
        %v1129 = vpack.c.b16 %v1101, %v1100
        %v1130 = vpack.c.b16 %v1103, %v1102
        %v1131 = vpack.c.b16 %v1105, %v1104
        %v1132 = vpack.c.b16 %v1107, %v1106
        %v1133 = vpack.c.b16 %v1109, %v1108
        %v1174 = vunpack.c.l.b16 %v998
        %v1175 = vunpack.c.l.b16 %v999
        %v1176 = vunpack.c.l.b16 %v1000
        %v1177 = vunpack.c.l.b16 %v1001
        %v1178 = vunpack.c.l.b16 %v1002
        %v1179 = vunpack.c.l.b16 %v1003
        %v1180 = vunpack.c.l.b16 %v1004
        %v1181 = vunpack.c.l.b16 %v1005
        %v1182 = vunpack.c.l.b16 %v1006
        %v1183 = vunpack.c.l.b16 %v1007
        %v1184 = vunpack.c.l.b16 %v1008
        %v1185 = vunpack.c.l.b16 %v1009
        %v1186 = vunpack.c.l.b16 %v1010
        %v1187 = vunpack.c.l.b16 %v1011
        %v1188 = vunpack.c.l.b16 %v1012
        %v1189 = vunpack.c.l.b16 %v1013
        %v1190 = vpack.c.b16 %v1175, %v1174
        %v1191 = vpack.c.b16 %v1177, %v1176
        %v1192 = vpack.c.b16 %v1179, %v1178
        %v1193 = vpack.c.b16 %v1181, %v1180
        %v1194 = vpack.c.b16 %v1183, %v1182
        %v1195 = vpack.c.b16 %v1185, %v1184
        %v1196 = vpack.c.b16 %v1187, %v1186
        %v1197 = vpack.c.b16 %v1189, %v1188
        %1206 = vmatprep.subr.bf16.mxu0 0
        %1207 = vmatpush1.bf16.msra.mxu0 %v1190
        %1208 = vmatprep.subr.bf16.mxu0 0
        %1209 = vmatpush1.bf16.msra.mxu0 %v1191
        %1210 = vmatprep.subr.bf16.mxu0 0
        %1211 = vmatpush1.bf16.msra.mxu0 %v1192
        %1212 = vmatprep.subr.bf16.mxu0 0
        %1213 = vmatpush1.bf16.msra.mxu0 %v1193
        %1214 = vmatprep.subr.bf16.mxu0 0
        %1215 = vmatpush1.bf16.msra.mxu0 %v1194
        %1216 = vmatprep.subr.bf16.mxu0 0
        %1217 = vmatpush1.bf16.msra.mxu0 %v1195
        %1218 = vmatprep.subr.bf16.mxu0 0
        %1219 = vmatpush1.bf16.msra.mxu0 %v1196
        %1220 = vmatprep.subr.bf16.mxu0 0
        %1221 = vmatpush1.bf16.msra.mxu0 %v1197
        %1222 = vmatprep.subr.bf16.mxu0 0
        %1223 = vmatpush1.bf16.msra.mxu0 0
        %1224 = vmatprep.subr.bf16.mxu0 0
        %1225 = vmatpush1.bf16.msra.mxu0 0
        %1226 = vmatprep.subr.bf16.mxu0 0
        %1227 = vmatpush1.bf16.msra.mxu0 0
        %1228 = vmatprep.subr.bf16.mxu0 0
        %1229 = vmatpush1.bf16.msra.mxu0 0
        %1230 = vmatprep.subr.bf16.mxu0 0
        %1231 = vmatpush1.bf16.msra.mxu0 0
        %1232 = vmatprep.subr.bf16.mxu0 0
        %1233 = vmatpush1.bf16.msra.mxu0 0
        %1234 = vmatprep.subr.bf16.mxu0 0
        %1235 = vmatpush1.bf16.msra.mxu0 0
        %1236 = vmatprep.subr.bf16.mxu0 0
        %1237 = vmatpush1.bf16.msra.mxu0 0
        %1238 = vmatprep.mubr.bf16.mxu0 0
        %1239 = vmatmul.mubr.bf16.gmra.mrb[0].mxu0 %v1110
        %v1240 = vpop.f32.mrb[0].mxu0
        %v1241 = vadd.f32 0.0, %v1240
        %v1242 = vpop.f32.mrb[0].mxu0
        %v1243 = vpop.f32.mrb[0].mxu0
        %v1244 = vadd.f32 0.0, %v1243
        %v1245 = vpop.f32.mrb[0].mxu0
        %1246 = vmatprep.mubr.bf16.mxu0 0
        %1247 = vmatmul.mubr.bf16.gmra.mrb[0].mxu0 %v1111
        %v1248 = vpop.f32.mrb[0].mxu0
        %v1249 = vadd.f32 0.0, %v1248
        %v1250 = vpop.f32.mrb[0].mxu0
        %v1251 = vpop.f32.mrb[0].mxu0
        %v1252 = vadd.f32 0.0, %v1251
        %v1253 = vpop.f32.mrb[0].mxu0
        %1254 = vmatprep.mubr.bf16.mxu0 0
        %1255 = vmatmul.mubr.bf16.gmra.mrb[0].mxu0 %v1112
        %v1256 = vpop.f32.mrb[0].mxu0
        %v1257 = vadd.f32 0.0, %v1256
        %v1258 = vpop.f32.mrb[0].mxu0
        %v1259 = vpop.f32.mrb[0].mxu0
        %v1260 = vadd.f32 0.0, %v1259
        %v1261 = vpop.f32.mrb[0].mxu0
        %1262 = vmatprep.mubr.bf16.mxu0 0
        %1263 = vmatmul.mubr.bf16.gmra.mrb[0].mxu0 %v1113
        %v1264 = vpop.f32.mrb[0].mxu0
        %v1265 = vadd.f32 0.0, %v1264
        %v1266 = vpop.f32.mrb[0].mxu0
        %v1267 = vpop.f32.mrb[0].mxu0
        %v1268 = vadd.f32 0.0, %v1267
        %v1269 = vpop.f32.mrb[0].mxu0
        %1270 = vmatprep.mubr.bf16.mxu0 0
        %1271 = vmatmul.mubr.bf16.gmra.mrb[0].mxu0 %v1114
        %v1272 = vpop.f32.mrb[0].mxu0
        %v1273 = vadd.f32 0.0, %v1272
        %v1274 = vpop.f32.mrb[0].mxu0
        %v1275 = vpop.f32.mrb[0].mxu0
        %v1276 = vadd.f32 0.0, %v1275
        %v1277 = vpop.f32.mrb[0].mxu0
        %1278 = vmatprep.mubr.bf16.mxu0 0
        %1279 = vmatmul.mubr.bf16.gmra.mrb[0].mxu0 %v1115
        %v1280 = vpop.f32.mrb[0].mxu0
        %v1281 = vadd.f32 0.0, %v1280
        %v1282 = vpop.f32.mrb[0].mxu0
        %v1283 = vpop.f32.mrb[0].mxu0
        %v1284 = vadd.f32 0.0, %v1283
        %v1285 = vpop.f32.mrb[0].mxu0
        %1286 = vmatprep.mubr.bf16.mxu0 0
        %1287 = vmatmul.mubr.bf16.gmra.mrb[0].mxu0 %v1116
        %v1288 = vpop.f32.mrb[0].mxu0
        %v1289 = vadd.f32 0.0, %v1288
        %v1290 = vpop.f32.mrb[0].mxu0
        %v1291 = vpop.f32.mrb[0].mxu0
        %v1292 = vadd.f32 0.0, %v1291
        %v1293 = vpop.f32.mrb[0].mxu0
        %1294 = vmatprep.mubr.bf16.mxu0 0
        %1295 = vmatmul.mubr.bf16.gmra.mrb[0].mxu0 %v1117
        %v1296 = vpop.f32.mrb[0].mxu0
        %v1297 = vadd.f32 0.0, %v1296
        %v1298 = vpop.f32.mrb[0].mxu0
        %v1299 = vpop.f32.mrb[0].mxu0
        %v1300 = vadd.f32 0.0, %v1299
        %v1301 = vpop.f32.mrb[0].mxu0
        %1302 = vmatprep.mubr.bf16.mxu0 0
        %1303 = vmatmul.mubr.bf16.gmra.mrb[0].mxu0 %v1118
        %v1304 = vpop.f32.mrb[0].mxu0
        %v1305 = vadd.f32 0.0, %v1304
        %v1306 = vpop.f32.mrb[0].mxu0
        %v1307 = vpop.f32.mrb[0].mxu0
        %v1308 = vadd.f32 0.0, %v1307
        %v1309 = vpop.f32.mrb[0].mxu0
        %1310 = vmatprep.mubr.bf16.mxu0 0
        %1311 = vmatmul.mubr.bf16.gmra.mrb[0].mxu0 %v1119
        %v1312 = vpop.f32.mrb[0].mxu0
        %v1313 = vadd.f32 0.0, %v1312
        %v1314 = vpop.f32.mrb[0].mxu0
        %v1315 = vpop.f32.mrb[0].mxu0
        %v1316 = vadd.f32 0.0, %v1315
        %v1317 = vpop.f32.mrb[0].mxu0
        %1318 = vmatprep.mubr.bf16.mxu0 0
        %1319 = vmatmul.mubr.bf16.gmra.mrb[0].mxu0 %v1120
        %v1320 = vpop.f32.mrb[0].mxu0
        %v1321 = vadd.f32 0.0, %v1320
        %v1322 = vpop.f32.mrb[0].mxu0
        %v1323 = vpop.f32.mrb[0].mxu0
        %v1324 = vadd.f32 0.0, %v1323
        %v1325 = vpop.f32.mrb[0].mxu0
        %1326 = vmatprep.mubr.bf16.mxu0 0
        %1327 = vmatmul.mubr.bf16.gmra.mrb[0].mxu0 %v1121
        %v1328 = vpop.f32.mrb[0].mxu0
        %v1329 = vadd.f32 0.0, %v1328
        %v1330 = vpop.f32.mrb[0].mxu0
        %v1331 = vpop.f32.mrb[0].mxu0
        %v1332 = vadd.f32 0.0, %v1331
        %v1333 = vpop.f32.mrb[0].mxu0
        %1334 = vmatprep.mubr.bf16.mxu0 0
        %1335 = vmatmul.mubr.bf16.gmra.mrb[0].mxu0 %v1122
        %v1336 = vpop.f32.mrb[0].mxu0
        %v1337 = vadd.f32 0.0, %v1336
        %v1338 = vpop.f32.mrb[0].mxu0
        %v1339 = vpop.f32.mrb[0].mxu0
        %v1340 = vadd.f32 0.0, %v1339
        %v1341 = vpop.f32.mrb[0].mxu0
        %1342 = vmatprep.mubr.bf16.mxu0 0
        %1343 = vmatmul.mubr.bf16.gmra.mrb[0].mxu0 %v1123
        %v1344 = vpop.f32.mrb[0].mxu0
        %v1345 = vadd.f32 0.0, %v1344
        %v1346 = vpop.f32.mrb[0].mxu0
        %v1347 = vpop.f32.mrb[0].mxu0
        %v1348 = vadd.f32 0.0, %v1347
        %v1349 = vpop.f32.mrb[0].mxu0
        %1350 = vmatprep.mubr.bf16.mxu0 0
        %1351 = vmatmul.mubr.bf16.gmra.mrb[0].mxu0 %v1124
        %v1352 = vpop.f32.mrb[0].mxu0
        %v1353 = vadd.f32 0.0, %v1352
        %v1354 = vpop.f32.mrb[0].mxu0
        %v1355 = vpop.f32.mrb[0].mxu0
        %v1356 = vadd.f32 0.0, %v1355
        %v1357 = vpop.f32.mrb[0].mxu0
        %1358 = vmatprep.mubr.bf16.mxu0 0
        %1359 = vmatmul.mubr.bf16.gmra.mrb[0].mxu0 %v1125
        %v1360 = vpop.f32.mrb[0].mxu0
        %v1361 = vadd.f32 0.0, %v1360
        %v1362 = vpop.f32.mrb[0].mxu0
        %v1363 = vpop.f32.mrb[0].mxu0
        %v1364 = vadd.f32 0.0, %v1363
        %v1365 = vpop.f32.mrb[0].mxu0
        %1366 = vmatprep.mubr.bf16.mxu0 0
        %1367 = vmatmul.mubr.bf16.gmra.mrb[0].mxu0 %v1126
        %v1368 = vpop.f32.mrb[0].mxu0
        %v1369 = vadd.f32 0.0, %v1368
        %v1370 = vpop.f32.mrb[0].mxu0
        %v1371 = vpop.f32.mrb[0].mxu0
        %v1372 = vadd.f32 0.0, %v1371
        %v1373 = vpop.f32.mrb[0].mxu0
        %1374 = vmatprep.mubr.bf16.mxu0 0
        %1375 = vmatmul.mubr.bf16.gmra.mrb[0].mxu0 %v1127
        %v1376 = vpop.f32.mrb[0].mxu0
        %v1377 = vadd.f32 0.0, %v1376
        %v1378 = vpop.f32.mrb[0].mxu0
        %v1379 = vpop.f32.mrb[0].mxu0
        %v1380 = vadd.f32 0.0, %v1379
        %v1381 = vpop.f32.mrb[0].mxu0
        %1382 = vmatprep.mubr.bf16.mxu0 0
        %1383 = vmatmul.mubr.bf16.gmra.mrb[0].mxu0 %v1128
        %v1384 = vpop.f32.mrb[0].mxu0
        %v1385 = vadd.f32 0.0, %v1384
        %v1386 = vpop.f32.mrb[0].mxu0
        %v1387 = vpop.f32.mrb[0].mxu0
        %v1388 = vadd.f32 0.0, %v1387
        %v1389 = vpop.f32.mrb[0].mxu0
        %1390 = vmatprep.mubr.bf16.mxu0 0
        %1391 = vmatmul.mubr.bf16.gmra.mrb[0].mxu0 %v1129
        %v1392 = vpop.f32.mrb[0].mxu0
        %v1393 = vadd.f32 0.0, %v1392
        %v1394 = vpop.f32.mrb[0].mxu0
        %v1395 = vpop.f32.mrb[0].mxu0
        %v1396 = vadd.f32 0.0, %v1395
        %v1397 = vpop.f32.mrb[0].mxu0
        %1398 = vmatprep.mubr.bf16.mxu0 0
        %1399 = vmatmul.mubr.bf16.gmra.mrb[0].mxu0 %v1130
        %v1400 = vpop.f32.mrb[0].mxu0
        %v1401 = vadd.f32 0.0, %v1400
        %v1402 = vpop.f32.mrb[0].mxu0
        %v1403 = vpop.f32.mrb[0].mxu0
        %v1404 = vadd.f32 0.0, %v1403
        %v1405 = vpop.f32.mrb[0].mxu0
        %1406 = vmatprep.mubr.bf16.mxu0 0
        %1407 = vmatmul.mubr.bf16.gmra.mrb[0].mxu0 %v1131
        %v1408 = vpop.f32.mrb[0].mxu0
        %v1409 = vadd.f32 0.0, %v1408
        %v1410 = vpop.f32.mrb[0].mxu0
        %v1411 = vpop.f32.mrb[0].mxu0
        %v1412 = vadd.f32 0.0, %v1411
        %v1413 = vpop.f32.mrb[0].mxu0
        %1414 = vmatprep.mubr.bf16.mxu0 0
        %1415 = vmatmul.mubr.bf16.gmra.mrb[0].mxu0 %v1132
        %v1416 = vpop.f32.mrb[0].mxu0
        %v1417 = vadd.f32 0.0, %v1416
        %v1418 = vpop.f32.mrb[0].mxu0
        %v1419 = vpop.f32.mrb[0].mxu0
        %v1420 = vadd.f32 0.0, %v1419
        %v1421 = vpop.f32.mrb[0].mxu0
        %1422 = vmatprep.mubr.bf16.mxu0 0
        %1423 = vmatmul.mubr.bf16.gmra.mrb[0].mxu0 %v1133
        %v1424 = vpop.f32.mrb[0].mxu0
        %v1425 = vadd.f32 0.0, %v1424
        %v1426 = vpop.f32.mrb[0].mxu0
        %v1427 = vpop.f32.mrb[0].mxu0
        %v1428 = vadd.f32 0.0, %v1427
        %v1429 = vpop.f32.mrb[0].mxu0
        %1430 = vdwg.mxu0
        %v1431 = vpack.c.bf16 %v1244, %v1241
        %v1432 = vpack.c.bf16 %v1252, %v1249
        %v1433 = vpack.c.bf16 %v1260, %v1257
        %v1434 = vpack.c.bf16 %v1268, %v1265
        %v1435 = vpack.c.bf16 %v1276, %v1273
        %v1436 = vpack.c.bf16 %v1284, %v1281
        %v1437 = vpack.c.bf16 %v1292, %v1289
        %v1438 = vpack.c.bf16 %v1300, %v1297
        %v1439 = vpack.c.bf16 %v1308, %v1305
        %v1440 = vpack.c.bf16 %v1316, %v1313
        %v1441 = vpack.c.bf16 %v1324, %v1321
        %v1442 = vpack.c.bf16 %v1332, %v1329
        %v1443 = vpack.c.bf16 %v1340, %v1337
        %v1444 = vpack.c.bf16 %v1348, %v1345
        %v1445 = vpack.c.bf16 %v1356, %v1353
        %v1446 = vpack.c.bf16 %v1364, %v1361
        %v1447 = vpack.c.bf16 %v1372, %v1369
        %v1448 = vpack.c.bf16 %v1380, %v1377
        %v1449 = vpack.c.bf16 %v1388, %v1385
        %v1450 = vpack.c.bf16 %v1396, %v1393
        %v1451 = vpack.c.bf16 %v1404, %v1401
        %v1452 = vpack.c.bf16 %v1412, %v1409
        %v1453 = vpack.c.bf16 %v1420, %v1417
        %v1454 = vpack.c.bf16 %v1428, %v1425
        %v1455 = vld [vmem:[%s4] sm:$0xf]
        %v1456 = vld [vmem:[%s4 + $0x4] sm:$0xf]
        %v1457 = vld [vmem:[%s4 + $0x8] sm:$0xf]
        %v1458 = vld [vmem:[%s4 + $0xc] sm:$0xf]
        %v1459 = vld [vmem:[%s4 + $0x10] sm:$0xf]
        %v1460 = vld [vmem:[%s4 + $0x14] sm:$0xf]
        %v1461 = vld [vmem:[%s4 + $0x18] sm:$0xf]
        %v1462 = vld [vmem:[%s4 + $0x1c] sm:$0xf]
        %v1463 = vld [vmem:[%s4 + $0x20] sm:$0xf]
        %v1464 = vld [vmem:[%s4 + $0x24] sm:$0xf]
        %v1465 = vld [vmem:[%s4 + $0x28] sm:$0xf]
        %v1466 = vld [vmem:[%s4 + $0x2c] sm:$0xf]
        %v1467 = vld [vmem:[%s4 + $0x30] sm:$0xf]
        %v1468 = vld [vmem:[%s4 + $0x34] sm:$0xf]
        %v1469 = vld [vmem:[%s4 + $0x38] sm:$0xf]
        %v1470 = vld [vmem:[%s4 + $0x3c] sm:$0xf]
        %v1487 = vunpack.c.l.b16 %v1455
        %v1488 = vunpack.c.l.b16 %v1456
        %v1489 = vunpack.c.l.b16 %v1457
        %v1490 = vunpack.c.l.b16 %v1458
        %v1491 = vunpack.c.l.b16 %v1459
        %v1492 = vunpack.c.l.b16 %v1460
        %v1493 = vunpack.c.l.b16 %v1461
        %v1494 = vunpack.c.l.b16 %v1462
        %v1495 = vunpack.c.l.b16 %v1463
        %v1496 = vunpack.c.l.b16 %v1464
        %v1497 = vunpack.c.l.b16 %v1465
        %v1498 = vunpack.c.l.b16 %v1466
        %v1499 = vunpack.c.l.b16 %v1467
        %v1500 = vunpack.c.l.b16 %v1468
        %v1501 = vunpack.c.l.b16 %v1469
        %v1502 = vunpack.c.l.b16 %v1470
        %v1503 = vpack.c.b16 %v1488, %v1487
        %v1504 = vpack.c.b16 %v1490, %v1489
        %v1505 = vpack.c.b16 %v1492, %v1491
        %v1506 = vpack.c.b16 %v1494, %v1493
        %v1507 = vpack.c.b16 %v1496, %v1495
        %v1508 = vpack.c.b16 %v1498, %v1497
        %v1509 = vpack.c.b16 %v1500, %v1499
        %v1510 = vpack.c.b16 %v1502, %v1501
        %1519 = vmatprep.subr.bf16.mxu0 0
        %1520 = vmatpush1.bf16.xpose.msra.mxu0 %v1110
        %1521 = vmatprep.subr.bf16.mxu0 0
        %1522 = vmatpush1.bf16.xpose.msra.mxu0 %v1111
        %1523 = vmatprep.subr.bf16.mxu0 0
        %1524 = vmatpush1.bf16.xpose.msra.mxu0 %v1112
        %1525 = vmatprep.subr.bf16.mxu0 0
        %1526 = vmatpush1.bf16.xpose.msra.mxu0 %v1113
        %1527 = vmatprep.subr.bf16.mxu0 0
        %1528 = vmatpush1.bf16.xpose.msra.mxu0 %v1114
        %1529 = vmatprep.subr.bf16.mxu0 0
        %1530 = vmatpush1.bf16.xpose.msra.mxu0 %v1115
        %1531 = vmatprep.subr.bf16.mxu0 0
        %1532 = vmatpush1.bf16.xpose.msra.mxu0 %v1116
        %1533 = vmatprep.subr.bf16.mxu0 0
        %1534 = vmatpush1.bf16.xpose.msra.mxu0 %v1117
        %1535 = vmatprep.subr.bf16.mxu0 0
        %1536 = vmatpush1.bf16.xpose.msra.mxu0 %v1118
        %1537 = vmatprep.subr.bf16.mxu0 0
        %1538 = vmatpush1.bf16.xpose.msra.mxu0 %v1119
        %1539 = vmatprep.subr.bf16.mxu0 0
        %1540 = vmatpush1.bf16.xpose.msra.mxu0 %v1120
        %1541 = vmatprep.subr.bf16.mxu0 0
        %1542 = vmatpush1.bf16.xpose.msra.mxu0 %v1121
        %1543 = vmatprep.subr.bf16.mxu0 0
        %1544 = vmatpush1.bf16.xpose.msra.mxu0 %v1122
        %1545 = vmatprep.subr.bf16.mxu0 0
        %1546 = vmatpush1.bf16.xpose.msra.mxu0 %v1123
        %1547 = vmatprep.subr.bf16.mxu0 0
        %1548 = vmatpush1.bf16.xpose.msra.mxu0 %v1124
        %1549 = vmatprep.subr.bf16.mxu0 0
        %1550 = vmatpush1.bf16.xpose.msra.mxu0 %v1125
        %1551 = vmatprep.mubr.bf16.mxu0 0
        %1552 = vmatmul.mubr.bf16.gmra.mrb[0].mxu0 %v1503
        %v1553 = vpop.f32.mrb[0].mxu0
        %v1554 = vadd.f32 0.0, %v1553
        %v1555 = vpop.f32.mrb[0].mxu0
        %v1556 = vadd.f32 0.0, %v1555
        %v1557 = vpop.f32.mrb[0].mxu0
        %v1558 = vadd.f32 0.0, %v1557
        %v1559 = vpop.f32.mrb[0].mxu0
        %v1560 = vadd.f32 0.0, %v1559
        %1561 = vmatprep.mubr.bf16.mxu0 0
        %1562 = vmatmul.mubr.bf16.gmra.mrb[0].mxu0 %v1504
        %v1563 = vpop.f32.mrb[0].mxu0
        %v1564 = vadd.f32 0.0, %v1563
        %v1565 = vpop.f32.mrb[0].mxu0
        %v1566 = vadd.f32 0.0, %v1565
        %v1567 = vpop.f32.mrb[0].mxu0
        %v1568 = vadd.f32 0.0, %v1567
        %v1569 = vpop.f32.mrb[0].mxu0
        %v1570 = vadd.f32 0.0, %v1569
        %1571 = vmatprep.mubr.bf16.mxu0 0
        %1572 = vmatmul.mubr.bf16.gmra.mrb[0].mxu0 %v1505
        %v1573 = vpop.f32.mrb[0].mxu0
        %v1574 = vadd.f32 0.0, %v1573
        %v1575 = vpop.f32.mrb[0].mxu0
        %v1576 = vadd.f32 0.0, %v1575
        %v1577 = vpop.f32.mrb[0].mxu0
        %v1578 = vadd.f32 0.0, %v1577
        %v1579 = vpop.f32.mrb[0].mxu0
        %v1580 = vadd.f32 0.0, %v1579
        %1581 = vmatprep.mubr.bf16.mxu0 0
        %1582 = vmatmul.mubr.bf16.gmra.mrb[0].mxu0 %v1506
        %v1583 = vpop.f32.mrb[0].mxu0
        %v1584 = vadd.f32 0.0, %v1583
        %v1585 = vpop.f32.mrb[0].mxu0
        %v1586 = vadd.f32 0.0, %v1585
        %v1587 = vpop.f32.mrb[0].mxu0
        %v1588 = vadd.f32 0.0, %v1587
        %v1589 = vpop.f32.mrb[0].mxu0
        %v1590 = vadd.f32 0.0, %v1589
        %1591 = vmatprep.mubr.bf16.mxu0 0
        %1592 = vmatmul.mubr.bf16.gmra.mrb[0].mxu0 %v1507
        %v1593 = vpop.f32.mrb[0].mxu0
        %v1594 = vadd.f32 0.0, %v1593
        %v1595 = vpop.f32.mrb[0].mxu0
        %v1596 = vadd.f32 0.0, %v1595
        %v1597 = vpop.f32.mrb[0].mxu0
        %v1598 = vadd.f32 0.0, %v1597
        %v1599 = vpop.f32.mrb[0].mxu0
        %v1600 = vadd.f32 0.0, %v1599
        %1601 = vmatprep.mubr.bf16.mxu0 0
        %1602 = vmatmul.mubr.bf16.gmra.mrb[0].mxu0 %v1508
        %v1603 = vpop.f32.mrb[0].mxu0
        %v1604 = vadd.f32 0.0, %v1603
        %v1605 = vpop.f32.mrb[0].mxu0
        %v1606 = vadd.f32 0.0, %v1605
        %v1607 = vpop.f32.mrb[0].mxu0
        %v1608 = vadd.f32 0.0, %v1607
        %v1609 = vpop.f32.mrb[0].mxu0
        %v1610 = vadd.f32 0.0, %v1609
        %1611 = vmatprep.mubr.bf16.mxu0 0
        %1612 = vmatmul.mubr.bf16.gmra.mrb[0].mxu0 %v1509
        %v1613 = vpop.f32.mrb[0].mxu0
        %v1614 = vadd.f32 0.0, %v1613
        %v1615 = vpop.f32.mrb[0].mxu0
        %v1616 = vadd.f32 0.0, %v1615
        %v1617 = vpop.f32.mrb[0].mxu0
        %v1618 = vadd.f32 0.0, %v1617
        %v1619 = vpop.f32.mrb[0].mxu0
        %v1620 = vadd.f32 0.0, %v1619
        %1621 = vmatprep.mubr.bf16.mxu0 0
        %1622 = vmatmul.mubr.bf16.gmra.mrb[0].mxu0 %v1510
        %v1623 = vpop.f32.mrb[0].mxu0
        %v1624 = vadd.f32 0.0, %v1623
        %v1625 = vpop.f32.mrb[0].mxu0
        %v1626 = vadd.f32 0.0, %v1625
        %v1627 = vpop.f32.mrb[0].mxu0
        %v1628 = vadd.f32 0.0, %v1627
        %v1629 = vpop.f32.mrb[0].mxu0
        %v1630 = vadd.f32 0.0, %v1629
        %1631 = vdwg.mxu0
        %1632 = vmatprep.subr.bf16.mxu0 0
        %1633 = vmatpush1.bf16.xpose.msra.mxu0 %v1126
        %1634 = vmatprep.subr.bf16.mxu0 0
        %1635 = vmatpush1.bf16.xpose.msra.mxu0 %v1127
        %1636 = vmatprep.subr.bf16.mxu0 0
        %1637 = vmatpush1.bf16.xpose.msra.mxu0 %v1128
        %1638 = vmatprep.subr.bf16.mxu0 0
        %1639 = vmatpush1.bf16.xpose.msra.mxu0 %v1129
        %1640 = vmatprep.subr.bf16.mxu0 0
        %1641 = vmatpush1.bf16.xpose.msra.mxu0 %v1130
        %1642 = vmatprep.subr.bf16.mxu0 0
        %1643 = vmatpush1.bf16.xpose.msra.mxu0 %v1131
        %1644 = vmatprep.subr.bf16.mxu0 0
        %1645 = vmatpush1.bf16.xpose.msra.mxu0 %v1132
        %1646 = vmatprep.subr.bf16.mxu0 0
        %1647 = vmatpush1.bf16.xpose.msra.mxu0 %v1133
        %1648 = vmatprep.subr.bf16.mxu0 0
        %1649 = vmatpush1.bf16.xpose.msra.mxu0 0
        %1650 = vmatprep.subr.bf16.mxu0 0
        %1651 = vmatpush1.bf16.xpose.msra.mxu0 0
        %1652 = vmatprep.subr.bf16.mxu0 0
        %1653 = vmatpush1.bf16.xpose.msra.mxu0 0
        %1654 = vmatprep.subr.bf16.mxu0 0
        %1655 = vmatpush1.bf16.xpose.msra.mxu0 0
        %1656 = vmatprep.subr.bf16.mxu0 0
        %1657 = vmatpush1.bf16.xpose.msra.mxu0 0
        %1658 = vmatprep.subr.bf16.mxu0 0
        %1659 = vmatpush1.bf16.xpose.msra.mxu0 0
        %1660 = vmatprep.subr.bf16.mxu0 0
        %1661 = vmatpush1.bf16.xpose.msra.mxu0 0
        %1662 = vmatprep.subr.bf16.mxu0 0
        %1663 = vmatpush1.bf16.xpose.msra.mxu0 0
        %1664 = vmatprep.mubr.bf16.mxu0 0
        %1665 = vmatmul.mubr.bf16.gmra.mrb[0].mxu0 %v1503
        %v1666 = vpop.f32.mrb[0].mxu0
        %v1667 = vadd.f32 0.0, %v1666
        %v1668 = vpop.f32.mrb[0].mxu0
        %v1669 = vpop.f32.mrb[0].mxu0
        %v1670 = vadd.f32 0.0, %v1669
        %v1671 = vpop.f32.mrb[0].mxu0
        %1672 = vmatprep.mubr.bf16.mxu0 0
        %1673 = vmatmul.mubr.bf16.gmra.mrb[0].mxu0 %v1504
        %v1674 = vpop.f32.mrb[0].mxu0
        %v1675 = vadd.f32 0.0, %v1674
        %v1676 = vpop.f32.mrb[0].mxu0
        %v1677 = vpop.f32.mrb[0].mxu0
        %v1678 = vadd.f32 0.0, %v1677
        %v1679 = vpop.f32.mrb[0].mxu0
        %1680 = vmatprep.mubr.bf16.mxu0 0
        %1681 = vmatmul.mubr.bf16.gmra.mrb[0].mxu0 %v1505
        %v1682 = vpop.f32.mrb[0].mxu0
        %v1683 = vadd.f32 0.0, %v1682
        %v1684 = vpop.f32.mrb[0].mxu0
        %v1685 = vpop.f32.mrb[0].mxu0
        %v1686 = vadd.f32 0.0, %v1685
        %v1687 = vpop.f32.mrb[0].mxu0
        %1688 = vmatprep.mubr.bf16.mxu0 0
        %1689 = vmatmul.mubr.bf16.gmra.mrb[0].mxu0 %v1506
        %v1690 = vpop.f32.mrb[0].mxu0
        %v1691 = vadd.f32 0.0, %v1690
        %v1692 = vpop.f32.mrb[0].mxu0
        %v1693 = vpop.f32.mrb[0].mxu0
        %v1694 = vadd.f32 0.0, %v1693
        %v1695 = vpop.f32.mrb[0].mxu0
        %1696 = vmatprep.mubr.bf16.mxu0 0
        %1697 = vmatmul.mubr.bf16.gmra.mrb[0].mxu0 %v1507
        %v1698 = vpop.f32.mrb[0].mxu0
        %v1699 = vadd.f32 0.0, %v1698
        %v1700 = vpop.f32.mrb[0].mxu0
        %v1701 = vpop.f32.mrb[0].mxu0
        %v1702 = vadd.f32 0.0, %v1701
        %v1703 = vpop.f32.mrb[0].mxu0
        %1704 = vmatprep.mubr.bf16.mxu0 0
        %1705 = vmatmul.mubr.bf16.gmra.mrb[0].mxu0 %v1508
        %v1706 = vpop.f32.mrb[0].mxu0
        %v1707 = vadd.f32 0.0, %v1706
        %v1708 = vpop.f32.mrb[0].mxu0
        %v1709 = vpop.f32.mrb[0].mxu0
        %v1710 = vadd.f32 0.0, %v1709
        %v1711 = vpop.f32.mrb[0].mxu0
        %1712 = vmatprep.mubr.bf16.mxu0 0
        %1713 = vmatmul.mubr.bf16.gmra.mrb[0].mxu0 %v1509
        %v1714 = vpop.f32.mrb[0].mxu0
        %v1715 = vadd.f32 0.0, %v1714
        %v1716 = vpop.f32.mrb[0].mxu0
        %v1717 = vpop.f32.mrb[0].mxu0
        %v1718 = vadd.f32 0.0, %v1717
        %v1719 = vpop.f32.mrb[0].mxu0
        %1720 = vmatprep.mubr.bf16.mxu0 0
        %1721 = vmatmul.mubr.bf16.gmra.mrb[0].mxu0 %v1510
        %v1722 = vpop.f32.mrb[0].mxu0
        %v1723 = vadd.f32 0.0, %v1722
        %v1724 = vpop.f32.mrb[0].mxu0
        %v1725 = vpop.f32.mrb[0].mxu0
        %v1726 = vadd.f32 0.0, %v1725
        %v1727 = vpop.f32.mrb[0].mxu0
        %1728 = vdwg.mxu0
        %v1729 = vpack.c.bf16 %v1558, %v1554
        %v1730 = vpack.c.bf16 %v1560, %v1556
        %v1731 = vpack.c.bf16 %v1670, %v1667
        %v1732 = vpack.c.bf16 %v1568, %v1564
        %v1733 = vpack.c.bf16 %v1570, %v1566
        %v1734 = vpack.c.bf16 %v1678, %v1675
        %v1735 = vpack.c.bf16 %v1578, %v1574
        %v1736 = vpack.c.bf16 %v1580, %v1576
        %v1737 = vpack.c.bf16 %v1686, %v1683
        %v1738 = vpack.c.bf16 %v1588, %v1584
        %v1739 = vpack.c.bf16 %v1590, %v1586
        %v1740 = vpack.c.bf16 %v1694, %v1691
        %v1741 = vpack.c.bf16 %v1598, %v1594
        %v1742 = vpack.c.bf16 %v1600, %v1596
        %v1743 = vpack.c.bf16 %v1702, %v1699
        %v1744 = vpack.c.bf16 %v1608, %v1604
        %v1745 = vpack.c.bf16 %v1610, %v1606
        %v1746 = vpack.c.bf16 %v1710, %v1707
        %v1747 = vpack.c.bf16 %v1618, %v1614
        %v1748 = vpack.c.bf16 %v1620, %v1616
        %v1749 = vpack.c.bf16 %v1718, %v1715
        %v1750 = vpack.c.bf16 %v1628, %v1624
        %v1751 = vpack.c.bf16 %v1630, %v1626
        %v1752 = vpack.c.bf16 %v1726, %v1723
        %v1753 = vld [vmem:[#allocation2] sm:$0xff]
        %v1754 = vld [vmem:[#allocation2 + $0x8] sm:$0xff]
        %v1755 = vld [vmem:[#allocation2 + $0x10] sm:$0xff]
        %v1756 = vld [vmem:[#allocation2 + $0x18] sm:$0xff]
        %v1757 = vld [vmem:[#allocation2 + $0x20] sm:$0xff]
        %v1758 = vld [vmem:[#allocation2 + $0x28] sm:$0xff]
        %v1759 = vld [vmem:[#allocation2 + $0x30] sm:$0xff]
        %v1760 = vld [vmem:[#allocation2 + $0x38] sm:$0xff]
        %v1761 = vld [vmem:[#allocation2 + $0x40] sm:$0xff]
        %v1762 = vld [vmem:[#allocation2 + $0x48] sm:$0xff]
        %v1763 = vld [vmem:[#allocation2 + $0x50] sm:$0xff]
        %v1764 = vld [vmem:[#allocation2 + $0x58] sm:$0xff]
        %v1765 = vld [vmem:[#allocation2 + $0x60] sm:$0xff]
        %v1766 = vld [vmem:[#allocation2 + $0x68] sm:$0xff]
        %v1767 = vld [vmem:[#allocation2 + $0x70] sm:$0xff]
        %v1768 = vld [vmem:[#allocation2 + $0x78] sm:$0xff]
        %v1769 = vld [vmem:[#allocation2 + $0x80] sm:$0xff]
        %v1770 = vld [vmem:[#allocation2 + $0x88] sm:$0xff]
        %v1771 = vld [vmem:[#allocation2 + $0x90] sm:$0xff]
        %v1772 = vld [vmem:[#allocation2 + $0x98] sm:$0xff]
        %v1773 = vld [vmem:[#allocation2 + $0xa0] sm:$0xff]
        %v1774 = vld [vmem:[#allocation2 + $0xa8] sm:$0xff]
        %v1775 = vld [vmem:[#allocation2 + $0xb0] sm:$0xff]
        %v1776 = vld [vmem:[#allocation2 + $0xb8] sm:$0xff]
        %v1777 = vlaneseq
        %v1778 = vshrl.u32 %v1777, 7
        %v1779 = vadd.s32 %v1778, 8
        %v1780 = vadd.s32 %v1778, 16
        %v1781 = vadd.s32 %v1778, 24
        %v1782 = vadd.s32 %v1778, 32
        %v1783 = vadd.s32 %v1778, 40
        %v1784 = vadd.s32 %v1778, 48
        %v1785 = vadd.s32 %v1778, 56
        %v1786 = vadd.s32 %v1778, 64
        %v1787 = vadd.s32 %v1778, 72
        %v1788 = vadd.s32 %v1778, 80
        %v1789 = vadd.s32 %v1778, 88
        %v1790 = vadd.s32 %v1778, 96
        %v1791 = vadd.s32 %v1778, 104
        %v1792 = vadd.s32 %v1778, 112
        %v1793 = vadd.s32 %v1778, 120
        %v1794 = vadd.s32 %v1778, 128
        %v1795 = vadd.s32 %v1778, 136
        %v1796 = vadd.s32 %v1778, 144
        %v1797 = vadd.s32 %v1778, 152
        %v1798 = vadd.s32 %v1778, 160
        %v1799 = vadd.s32 %v1778, 168
        %v1800 = vadd.s32 %v1778, 176
        %v1801 = vadd.s32 %v1778, 184
        %v1802 = vadd.s32 %v1778, 192
        %v1803 = vadd.s32 %v1778, 200
        %v1804 = vadd.s32 %v1778, 208
        %v1805 = vadd.s32 %v1778, 216
        %v1806 = vadd.s32 %v1778, 224
        %v1807 = vadd.s32 %v1778, 232
        %v1808 = vadd.s32 %v1778, 240
        %v1809 = vadd.s32 %v1778, 248
        %v1810 = vadd.s32 %v1778, 256
        %v1811 = vadd.s32 %v1778, 264
        %v1812 = vadd.s32 %v1778, 272
        %v1813 = vadd.s32 %v1778, 280
        %v1814 = vadd.s32 %v1778, 288
        %v1815 = vadd.s32 %v1778, 296
        %v1816 = vadd.s32 %v1778, 304
        %v1817 = vadd.s32 %v1778, 312
        %v1818 = vadd.s32 %v1778, 320
        %v1819 = vadd.s32 %v1778, 328
        %v1820 = vadd.s32 %v1778, 336
        %v1821 = vadd.s32 %v1778, 344
        %v1822 = vadd.s32 %v1778, 352
        %v1823 = vadd.s32 %v1778, 360
        %v1824 = vadd.s32 %v1778, 368
        %v1825 = vadd.s32 %v1778, 376
        %v1826 = vstv %s943
        %v1827 = vadd.s32 %v1826, %v1778
        %v1828 = vadd.s32 %v1826, %v1779
        %v1829 = vadd.s32 %v1826, %v1780
        %v1830 = vadd.s32 %v1826, %v1781
        %v1831 = vadd.s32 %v1826, %v1782
        %v1832 = vadd.s32 %v1826, %v1783
        %v1833 = vadd.s32 %v1826, %v1784
        %v1834 = vadd.s32 %v1826, %v1785
        %v1835 = vadd.s32 %v1826, %v1786
        %v1836 = vadd.s32 %v1826, %v1787
        %v1837 = vadd.s32 %v1826, %v1788
        %v1838 = vadd.s32 %v1826, %v1789
        %v1839 = vadd.s32 %v1826, %v1790
        %v1840 = vadd.s32 %v1826, %v1791
        %v1841 = vadd.s32 %v1826, %v1792
        %v1842 = vadd.s32 %v1826, %v1793
        %v1843 = vadd.s32 %v1826, %v1794
        %v1844 = vadd.s32 %v1826, %v1795
        %v1845 = vadd.s32 %v1826, %v1796
        %v1846 = vadd.s32 %v1826, %v1797
        %v1847 = vadd.s32 %v1826, %v1798
        %v1848 = vadd.s32 %v1826, %v1799
        %v1849 = vadd.s32 %v1826, %v1800
        %v1850 = vadd.s32 %v1826, %v1801
        %v1851 = vadd.s32 %v1826, %v1802
        %v1852 = vadd.s32 %v1826, %v1803
        %v1853 = vadd.s32 %v1826, %v1804
        %v1854 = vadd.s32 %v1826, %v1805
        %v1855 = vadd.s32 %v1826, %v1806
        %v1856 = vadd.s32 %v1826, %v1807
        %v1857 = vadd.s32 %v1826, %v1808
        %v1858 = vadd.s32 %v1826, %v1809
        %v1859 = vadd.s32 %v1826, %v1810
        %v1860 = vadd.s32 %v1826, %v1811
        %v1861 = vadd.s32 %v1826, %v1812
        %v1862 = vadd.s32 %v1826, %v1813
        %v1863 = vadd.s32 %v1826, %v1814
        %v1864 = vadd.s32 %v1826, %v1815
        %v1865 = vadd.s32 %v1826, %v1816
        %v1866 = vadd.s32 %v1826, %v1817
        %v1867 = vadd.s32 %v1826, %v1818
        %v1868 = vadd.s32 %v1826, %v1819
        %v1869 = vadd.s32 %v1826, %v1820
        %v1870 = vadd.s32 %v1826, %v1821
        %v1871 = vadd.s32 %v1826, %v1822
        %v1872 = vadd.s32 %v1826, %v1823
        %v1873 = vadd.s32 %v1826, %v1824
        %v1874 = vadd.s32 %v1826, %v1825
        %s1875 = smul.u32 %s22, 384
        %v1876 = vlaneseq
        %v1877 = vand.u32 %v1876, 127
        %v1878 = vadd.s32 %v1877, 128
        %v1879 = vadd.s32 %v1877, 256
        %v1880 = vstv %s1875
        %v1881 = vadd.s32 %v1880, %v1877
        %v1882 = vadd.s32 %v1880, %v1878
        %v1883 = vadd.s32 %v1880, %v1879
        %vm1884 = vcmp.le.s32.totalorder %v1827, %v1881
        %vm1885 = vcmp.le.s32.totalorder %v1827, %v1882
        %vm1886 = vcmp.le.s32.totalorder %v1827, %v1883
        %vm1887 = vcmp.le.s32.totalorder %v1828, %v1881
        %vm1888 = vcmp.le.s32.totalorder %v1828, %v1882
        %vm1889 = vcmp.le.s32.totalorder %v1828, %v1883
        %vm1890 = vcmp.le.s32.totalorder %v1829, %v1881
        %vm1891 = vcmp.le.s32.totalorder %v1829, %v1882
        %vm1892 = vcmp.le.s32.totalorder %v1829, %v1883
        %vm1893 = vcmp.le.s32.totalorder %v1830, %v1881
        %vm1894 = vcmp.le.s32.totalorder %v1830, %v1882
        %vm1895 = vcmp.le.s32.totalorder %v1830, %v1883
        %vm1896 = vcmp.le.s32.totalorder %v1831, %v1881
        %vm1897 = vcmp.le.s32.totalorder %v1831, %v1882
        %vm1898 = vcmp.le.s32.totalorder %v1831, %v1883
        %vm1899 = vcmp.le.s32.totalorder %v1832, %v1881
        %vm1900 = vcmp.le.s32.totalorder %v1832, %v1882
        %vm1901 = vcmp.le.s32.totalorder %v1832, %v1883
        %vm1902 = vcmp.le.s32.totalorder %v1833, %v1881
        %vm1903 = vcmp.le.s32.totalorder %v1833, %v1882
        %vm1904 = vcmp.le.s32.totalorder %v1833, %v1883
        %vm1905 = vcmp.le.s32.totalorder %v1834, %v1881
        %vm1906 = vcmp.le.s32.totalorder %v1834, %v1882
        %vm1907 = vcmp.le.s32.totalorder %v1834, %v1883
        %vm1908 = vcmp.le.s32.totalorder %v1835, %v1881
        %vm1909 = vcmp.le.s32.totalorder %v1835, %v1882
        %vm1910 = vcmp.le.s32.totalorder %v1835, %v1883
        %vm1911 = vcmp.le.s32.totalorder %v1836, %v1881
        %vm1912 = vcmp.le.s32.totalorder %v1836, %v1882
        %vm1913 = vcmp.le.s32.totalorder %v1836, %v1883
        %vm1914 = vcmp.le.s32.totalorder %v1837, %v1881
        %vm1915 = vcmp.le.s32.totalorder %v1837, %v1882
        %vm1916 = vcmp.le.s32.totalorder %v1837, %v1883
        %vm1917 = vcmp.le.s32.totalorder %v1838, %v1881
        %vm1918 = vcmp.le.s32.totalorder %v1838, %v1882
        %vm1919 = vcmp.le.s32.totalorder %v1838, %v1883
        %vm1920 = vcmp.le.s32.totalorder %v1839, %v1881
        %vm1921 = vcmp.le.s32.totalorder %v1839, %v1882
        %vm1922 = vcmp.le.s32.totalorder %v1839, %v1883
        %vm1923 = vcmp.le.s32.totalorder %v1840, %v1881
        %vm1924 = vcmp.le.s32.totalorder %v1840, %v1882
        %vm1925 = vcmp.le.s32.totalorder %v1840, %v1883
        %vm1926 = vcmp.le.s32.totalorder %v1841, %v1881
        %vm1927 = vcmp.le.s32.totalorder %v1841, %v1882
        %vm1928 = vcmp.le.s32.totalorder %v1841, %v1883
        %vm1929 = vcmp.le.s32.totalorder %v1842, %v1881
        %vm1930 = vcmp.le.s32.totalorder %v1842, %v1882
        %vm1931 = vcmp.le.s32.totalorder %v1842, %v1883
        %vm1932 = vcmp.le.s32.totalorder %v1843, %v1881
        %vm1933 = vcmp.le.s32.totalorder %v1843, %v1882
        %vm1934 = vcmp.le.s32.totalorder %v1843, %v1883
        %vm1935 = vcmp.le.s32.totalorder %v1844, %v1881
        %vm1936 = vcmp.le.s32.totalorder %v1844, %v1882
        %vm1937 = vcmp.le.s32.totalorder %v1844, %v1883
        %vm1938 = vcmp.le.s32.totalorder %v1845, %v1881
        %vm1939 = vcmp.le.s32.totalorder %v1845, %v1882
        %vm1940 = vcmp.le.s32.totalorder %v1845, %v1883
        %vm1941 = vcmp.le.s32.totalorder %v1846, %v1881
        %vm1942 = vcmp.le.s32.totalorder %v1846, %v1882
        %vm1943 = vcmp.le.s32.totalorder %v1846, %v1883
        %vm1944 = vcmp.le.s32.totalorder %v1847, %v1881
        %vm1945 = vcmp.le.s32.totalorder %v1847, %v1882
        %vm1946 = vcmp.le.s32.totalorder %v1847, %v1883
        %vm1947 = vcmp.le.s32.totalorder %v1848, %v1881
        %vm1948 = vcmp.le.s32.totalorder %v1848, %v1882
        %vm1949 = vcmp.le.s32.totalorder %v1848, %v1883
        %vm1950 = vcmp.le.s32.totalorder %v1849, %v1881
        %vm1951 = vcmp.le.s32.totalorder %v1849, %v1882
        %vm1952 = vcmp.le.s32.totalorder %v1849, %v1883
        %vm1953 = vcmp.le.s32.totalorder %v1850, %v1881
        %vm1954 = vcmp.le.s32.totalorder %v1850, %v1882
        %vm1955 = vcmp.le.s32.totalorder %v1850, %v1883
        %vm1956 = vcmp.le.s32.totalorder %v1851, %v1881
        %vm1957 = vcmp.le.s32.totalorder %v1851, %v1882
        %vm1958 = vcmp.le.s32.totalorder %v1851, %v1883
        %vm1959 = vcmp.le.s32.totalorder %v1852, %v1881
        %vm1960 = vcmp.le.s32.totalorder %v1852, %v1882
        %vm1961 = vcmp.le.s32.totalorder %v1852, %v1883
        %vm1962 = vcmp.le.s32.totalorder %v1853, %v1881
        %vm1963 = vcmp.le.s32.totalorder %v1853, %v1882
        %vm1964 = vcmp.le.s32.totalorder %v1853, %v1883
        %vm1965 = vcmp.le.s32.totalorder %v1854, %v1881
        %vm1966 = vcmp.le.s32.totalorder %v1854, %v1882
        %vm1967 = vcmp.le.s32.totalorder %v1854, %v1883
        %vm1968 = vcmp.le.s32.totalorder %v1855, %v1881
        %vm1969 = vcmp.le.s32.totalorder %v1855, %v1882
        %vm1970 = vcmp.le.s32.totalorder %v1855, %v1883
        %vm1971 = vcmp.le.s32.totalorder %v1856, %v1881
        %vm1972 = vcmp.le.s32.totalorder %v1856, %v1882
        %vm1973 = vcmp.le.s32.totalorder %v1856, %v1883
        %vm1974 = vcmp.le.s32.totalorder %v1857, %v1881
        %vm1975 = vcmp.le.s32.totalorder %v1857, %v1882
        %vm1976 = vcmp.le.s32.totalorder %v1857, %v1883
        %vm1977 = vcmp.le.s32.totalorder %v1858, %v1881
        %vm1978 = vcmp.le.s32.totalorder %v1858, %v1882
        %vm1979 = vcmp.le.s32.totalorder %v1858, %v1883
        %vm1980 = vcmp.le.s32.totalorder %v1859, %v1881
        %vm1981 = vcmp.le.s32.totalorder %v1859, %v1882
        %vm1982 = vcmp.le.s32.totalorder %v1859, %v1883
        %vm1983 = vcmp.le.s32.totalorder %v1860, %v1881
        %vm1984 = vcmp.le.s32.totalorder %v1860, %v1882
        %vm1985 = vcmp.le.s32.totalorder %v1860, %v1883
        %vm1986 = vcmp.le.s32.totalorder %v1861, %v1881
        %vm1987 = vcmp.le.s32.totalorder %v1861, %v1882
        %vm1988 = vcmp.le.s32.totalorder %v1861, %v1883
        %vm1989 = vcmp.le.s32.totalorder %v1862, %v1881
        %vm1990 = vcmp.le.s32.totalorder %v1862, %v1882
        %vm1991 = vcmp.le.s32.totalorder %v1862, %v1883
        %vm1992 = vcmp.le.s32.totalorder %v1863, %v1881
        %vm1993 = vcmp.le.s32.totalorder %v1863, %v1882
        %vm1994 = vcmp.le.s32.totalorder %v1863, %v1883
        %vm1995 = vcmp.le.s32.totalorder %v1864, %v1881
        %vm1996 = vcmp.le.s32.totalorder %v1864, %v1882
        %vm1997 = vcmp.le.s32.totalorder %v1864, %v1883
        %vm1998 = vcmp.le.s32.totalorder %v1865, %v1881
        %vm1999 = vcmp.le.s32.totalorder %v1865, %v1882
        %vm2000 = vcmp.le.s32.totalorder %v1865, %v1883
        %vm2001 = vcmp.le.s32.totalorder %v1866, %v1881
        %vm2002 = vcmp.le.s32.totalorder %v1866, %v1882
        %vm2003 = vcmp.le.s32.totalorder %v1866, %v1883
        %vm2004 = vcmp.le.s32.totalorder %v1867, %v1881
        %vm2005 = vcmp.le.s32.totalorder %v1867, %v1882
        %vm2006 = vcmp.le.s32.totalorder %v1867, %v1883
        %vm2007 = vcmp.le.s32.totalorder %v1868, %v1881
        %vm2008 = vcmp.le.s32.totalorder %v1868, %v1882
        %vm2009 = vcmp.le.s32.totalorder %v1868, %v1883
        %vm2010 = vcmp.le.s32.totalorder %v1869, %v1881
        %vm2011 = vcmp.le.s32.totalorder %v1869, %v1882
        %vm2012 = vcmp.le.s32.totalorder %v1869, %v1883
        %vm2013 = vcmp.le.s32.totalorder %v1870, %v1881
        %vm2014 = vcmp.le.s32.totalorder %v1870, %v1882
        %vm2015 = vcmp.le.s32.totalorder %v1870, %v1883
        %vm2016 = vcmp.le.s32.totalorder %v1871, %v1881
        %vm2017 = vcmp.le.s32.totalorder %v1871, %v1882
        %vm2018 = vcmp.le.s32.totalorder %v1871, %v1883
        %vm2019 = vcmp.le.s32.totalorder %v1872, %v1881
        %vm2020 = vcmp.le.s32.totalorder %v1872, %v1882
        %vm2021 = vcmp.le.s32.totalorder %v1872, %v1883
        %vm2022 = vcmp.le.s32.totalorder %v1873, %v1881
        %vm2023 = vcmp.le.s32.totalorder %v1873, %v1882
        %vm2024 = vcmp.le.s32.totalorder %v1873, %v1883
        %vm2025 = vcmp.le.s32.totalorder %v1874, %v1881
        %vm2026 = vcmp.le.s32.totalorder %v1874, %v1882
        %vm2027 = vcmp.le.s32.totalorder %v1874, %v1883
        %v2028 = vsel %vm1884, 0.0, -1e+09
        %v2029 = vsel %vm1885, 0.0, -1e+09
        %v2030 = vsel %vm1886, 0.0, -1e+09
        %v2031 = vsel %vm1887, 0.0, -1e+09
        %v2032 = vsel %vm1888, 0.0, -1e+09
        %v2033 = vsel %vm1889, 0.0, -1e+09
        %v2034 = vsel %vm1890, 0.0, -1e+09
        %v2035 = vsel %vm1891, 0.0, -1e+09
        %v2036 = vsel %vm1892, 0.0, -1e+09
        %v2037 = vsel %vm1893, 0.0, -1e+09
        %v2038 = vsel %vm1894, 0.0, -1e+09
        %v2039 = vsel %vm1895, 0.0, -1e+09
        %v2040 = vsel %vm1896, 0.0, -1e+09
        %v2041 = vsel %vm1897, 0.0, -1e+09
        %v2042 = vsel %vm1898, 0.0, -1e+09
        %v2043 = vsel %vm1899, 0.0, -1e+09
        %v2044 = vsel %vm1900, 0.0, -1e+09
        %v2045 = vsel %vm1901, 0.0, -1e+09
        %v2046 = vsel %vm1902, 0.0, -1e+09
        %v2047 = vsel %vm1903, 0.0, -1e+09
        %v2048 = vsel %vm1904, 0.0, -1e+09
        %v2049 = vsel %vm1905, 0.0, -1e+09
        %v2050 = vsel %vm1906, 0.0, -1e+09
        %v2051 = vsel %vm1907, 0.0, -1e+09
        %v2052 = vsel %vm1908, 0.0, -1e+09
        %v2053 = vsel %vm1909, 0.0, -1e+09
        %v2054 = vsel %vm1910, 0.0, -1e+09
        %v2055 = vsel %vm1911, 0.0, -1e+09
        %v2056 = vsel %vm1912, 0.0, -1e+09
        %v2057 = vsel %vm1913, 0.0, -1e+09
        %v2058 = vsel %vm1914, 0.0, -1e+09
        %v2059 = vsel %vm1915, 0.0, -1e+09
        %v2060 = vsel %vm1916, 0.0, -1e+09
        %v2061 = vsel %vm1917, 0.0, -1e+09
        %v2062 = vsel %vm1918, 0.0, -1e+09
        %v2063 = vsel %vm1919, 0.0, -1e+09
        %v2064 = vsel %vm1920, 0.0, -1e+09
        %v2065 = vsel %vm1921, 0.0, -1e+09
        %v2066 = vsel %vm1922, 0.0, -1e+09
        %v2067 = vsel %vm1923, 0.0, -1e+09
        %v2068 = vsel %vm1924, 0.0, -1e+09
        %v2069 = vsel %vm1925, 0.0, -1e+09
        %v2070 = vsel %vm1926, 0.0, -1e+09
        %v2071 = vsel %vm1927, 0.0, -1e+09
        %v2072 = vsel %vm1928, 0.0, -1e+09
        %v2073 = vsel %vm1929, 0.0, -1e+09
        %v2074 = vsel %vm1930, 0.0, -1e+09
        %v2075 = vsel %vm1931, 0.0, -1e+09
        %v2076 = vsel %vm1932, 0.0, -1e+09
        %v2077 = vsel %vm1933, 0.0, -1e+09
        %v2078 = vsel %vm1934, 0.0, -1e+09
        %v2079 = vsel %vm1935, 0.0, -1e+09
        %v2080 = vsel %vm1936, 0.0, -1e+09
        %v2081 = vsel %vm1937, 0.0, -1e+09
        %v2082 = vsel %vm1938, 0.0, -1e+09
        %v2083 = vsel %vm1939, 0.0, -1e+09
        %v2084 = vsel %vm1940, 0.0, -1e+09
        %v2085 = vsel %vm1941, 0.0, -1e+09
        %v2086 = vsel %vm1942, 0.0, -1e+09
        %v2087 = vsel %vm1943, 0.0, -1e+09
        %v2088 = vsel %vm1944, 0.0, -1e+09
        %v2089 = vsel %vm1945, 0.0, -1e+09
        %v2090 = vsel %vm1946, 0.0, -1e+09
        %v2091 = vsel %vm1947, 0.0, -1e+09
        %v2092 = vsel %vm1948, 0.0, -1e+09
        %v2093 = vsel %vm1949, 0.0, -1e+09
        %v2094 = vsel %vm1950, 0.0, -1e+09
        %v2095 = vsel %vm1951, 0.0, -1e+09
        %v2096 = vsel %vm1952, 0.0, -1e+09
        %v2097 = vsel %vm1953, 0.0, -1e+09
        %v2098 = vsel %vm1954, 0.0, -1e+09
        %v2099 = vsel %vm1955, 0.0, -1e+09
        %v2100 = vsel %vm1956, 0.0, -1e+09
        %v2101 = vsel %vm1957, 0.0, -1e+09
        %v2102 = vsel %vm1958, 0.0, -1e+09
        %v2103 = vsel %vm1959, 0.0, -1e+09
        %v2104 = vsel %vm1960, 0.0, -1e+09
        %v2105 = vsel %vm1961, 0.0, -1e+09
        %v2106 = vsel %vm1962, 0.0, -1e+09
        %v2107 = vsel %vm1963, 0.0, -1e+09
        %v2108 = vsel %vm1964, 0.0, -1e+09
        %v2109 = vsel %vm1965, 0.0, -1e+09
        %v2110 = vsel %vm1966, 0.0, -1e+09
        %v2111 = vsel %vm1967, 0.0, -1e+09
        %v2112 = vsel %vm1968, 0.0, -1e+09
        %v2113 = vsel %vm1969, 0.0, -1e+09
        %v2114 = vsel %vm1970, 0.0, -1e+09
        %v2115 = vsel %vm1971, 0.0, -1e+09
        %v2116 = vsel %vm1972, 0.0, -1e+09
        %v2117 = vsel %vm1973, 0.0, -1e+09
        %v2118 = vsel %vm1974, 0.0, -1e+09
        %v2119 = vsel %vm1975, 0.0, -1e+09
        %v2120 = vsel %vm1976, 0.0, -1e+09
        %v2121 = vsel %vm1977, 0.0, -1e+09
        %v2122 = vsel %vm1978, 0.0, -1e+09
        %v2123 = vsel %vm1979, 0.0, -1e+09
        %v2124 = vsel %vm1980, 0.0, -1e+09
        %v2125 = vsel %vm1981, 0.0, -1e+09
        %v2126 = vsel %vm1982, 0.0, -1e+09
        %v2127 = vsel %vm1983, 0.0, -1e+09
        %v2128 = vsel %vm1984, 0.0, -1e+09
        %v2129 = vsel %vm1985, 0.0, -1e+09
        %v2130 = vsel %vm1986, 0.0, -1e+09
        %v2131 = vsel %vm1987, 0.0, -1e+09
        %v2132 = vsel %vm1988, 0.0, -1e+09
        %v2133 = vsel %vm1989, 0.0, -1e+09
        %v2134 = vsel %vm1990, 0.0, -1e+09
        %v2135 = vsel %vm1991, 0.0, -1e+09
        %v2136 = vsel %vm1992, 0.0, -1e+09
        %v2137 = vsel %vm1993, 0.0, -1e+09
        %v2138 = vsel %vm1994, 0.0, -1e+09
        %v2139 = vsel %vm1995, 0.0, -1e+09
        %v2140 = vsel %vm1996, 0.0, -1e+09
        %v2141 = vsel %vm1997, 0.0, -1e+09
        %v2142 = vsel %vm1998, 0.0, -1e+09
        %v2143 = vsel %vm1999, 0.0, -1e+09
        %v2144 = vsel %vm2000, 0.0, -1e+09
        %v2145 = vsel %vm2001, 0.0, -1e+09
        %v2146 = vsel %vm2002, 0.0, -1e+09
        %v2147 = vsel %vm2003, 0.0, -1e+09
        %v2148 = vsel %vm2004, 0.0, -1e+09
        %v2149 = vsel %vm2005, 0.0, -1e+09
        %v2150 = vsel %vm2006, 0.0, -1e+09
        %v2151 = vsel %vm2007, 0.0, -1e+09
        %v2152 = vsel %vm2008, 0.0, -1e+09
        %v2153 = vsel %vm2009, 0.0, -1e+09
        %v2154 = vsel %vm2010, 0.0, -1e+09
        %v2155 = vsel %vm2011, 0.0, -1e+09
        %v2156 = vsel %vm2012, 0.0, -1e+09
        %v2157 = vsel %vm2013, 0.0, -1e+09
        %v2158 = vsel %vm2014, 0.0, -1e+09
        %v2159 = vsel %vm2015, 0.0, -1e+09
        %v2160 = vsel %vm2016, 0.0, -1e+09
        %v2161 = vsel %vm2017, 0.0, -1e+09
        %v2162 = vsel %vm2018, 0.0, -1e+09
        %v2163 = vsel %vm2019, 0.0, -1e+09
        %v2164 = vsel %vm2020, 0.0, -1e+09
        %v2165 = vsel %vm2021, 0.0, -1e+09
        %v2166 = vsel %vm2022, 0.0, -1e+09
        %v2167 = vsel %vm2023, 0.0, -1e+09
        %v2168 = vsel %vm2024, 0.0, -1e+09
        %v2169 = vsel %vm2025, 0.0, -1e+09
        %v2170 = vsel %vm2026, 0.0, -1e+09
        %v2171 = vsel %vm2027, 0.0, -1e+09
        %2172 = vmatprep.subr.bf16.mxu0 0
        %2173 = vmatpush1.bf16.xpose.msra.mxu0 %v1753
        %2174 = vmatprep.subr.bf16.mxu0 0
        %2175 = vmatpush1.bf16.xpose.msra.mxu0 %v1754
        %2176 = vmatprep.subr.bf16.mxu0 0
        %2177 = vmatpush1.bf16.xpose.msra.mxu0 %v1755
        %2178 = vmatprep.subr.bf16.mxu0 0
        %2179 = vmatpush1.bf16.xpose.msra.mxu0 %v1756
        %2180 = vmatprep.subr.bf16.mxu0 0
        %2181 = vmatpush1.bf16.xpose.msra.mxu0 %v1757
        %2182 = vmatprep.subr.bf16.mxu0 0
        %2183 = vmatpush1.bf16.xpose.msra.mxu0 %v1758
        %2184 = vmatprep.subr.bf16.mxu0 0
        %2185 = vmatpush1.bf16.xpose.msra.mxu0 %v1759
        %2186 = vmatprep.subr.bf16.mxu0 0
        %2187 = vmatpush1.bf16.xpose.msra.mxu0 %v1760
        %2188 = vmatprep.subr.bf16.mxu0 0
        %2189 = vmatpush1.bf16.xpose.msra.mxu0 %v1761
        %2190 = vmatprep.subr.bf16.mxu0 0
        %2191 = vmatpush1.bf16.xpose.msra.mxu0 %v1762
        %2192 = vmatprep.subr.bf16.mxu0 0
        %2193 = vmatpush1.bf16.xpose.msra.mxu0 %v1763
        %2194 = vmatprep.subr.bf16.mxu0 0
        %2195 = vmatpush1.bf16.xpose.msra.mxu0 %v1764
        %2196 = vmatprep.subr.bf16.mxu0 0
        %2197 = vmatpush1.bf16.xpose.msra.mxu0 %v1765
        %2198 = vmatprep.subr.bf16.mxu0 0
        %2199 = vmatpush1.bf16.xpose.msra.mxu0 %v1766
        %2200 = vmatprep.subr.bf16.mxu0 0
        %2201 = vmatpush1.bf16.xpose.msra.mxu0 %v1767
        %2202 = vmatprep.subr.bf16.mxu0 0
        %2203 = vmatpush1.bf16.xpose.msra.mxu0 %v1768
        %2204 = vmatprep.mubr.bf16.mxu0 0
        %2205 = vmatmul.mubr.bf16.gmra.mrb[0].mxu0 %v1431
        %v2206 = vpop.f32.mrb[0].mxu0
        %v2207 = vadd.f32 %v2028, %v2206
        %v2208 = vpop.f32.mrb[0].mxu0
        %v2209 = vadd.f32 %v2029, %v2208
        %v2210 = vpop.f32.mrb[0].mxu0
        %v2211 = vadd.f32 %v2031, %v2210
        %v2212 = vpop.f32.mrb[0].mxu0
        %v2213 = vadd.f32 %v2032, %v2212
        %2214 = vmatprep.mubr.bf16.mxu0 0
        %2215 = vmatmul.mubr.bf16.gmra.mrb[0].mxu0 %v1432
        %v2216 = vpop.f32.mrb[0].mxu0
        %v2217 = vadd.f32 %v2034, %v2216
        %v2218 = vpop.f32.mrb[0].mxu0
        %v2219 = vadd.f32 %v2035, %v2218
        %v2220 = vpop.f32.mrb[0].mxu0
        %v2221 = vadd.f32 %v2037, %v2220
        %v2222 = vpop.f32.mrb[0].mxu0
        %v2223 = vadd.f32 %v2038, %v2222
        %2224 = vmatprep.mubr.bf16.mxu0 0
        %2225 = vmatmul.mubr.bf16.gmra.mrb[0].mxu0 %v1433
        %v2226 = vpop.f32.mrb[0].mxu0
        %v2227 = vadd.f32 %v2040, %v2226
        %v2228 = vpop.f32.mrb[0].mxu0
        %v2229 = vadd.f32 %v2041, %v2228
        %v2230 = vpop.f32.mrb[0].mxu0
        %v2231 = vadd.f32 %v2043, %v2230
        %v2232 = vpop.f32.mrb[0].mxu0
        %v2233 = vadd.f32 %v2044, %v2232
        %2234 = vmatprep.mubr.bf16.mxu0 0
        %2235 = vmatmul.mubr.bf16.gmra.mrb[0].mxu0 %v1434
        %v2236 = vpop.f32.mrb[0].mxu0
        %v2237 = vadd.f32 %v2046, %v2236
        %v2238 = vpop.f32.mrb[0].mxu0
        %v2239 = vadd.f32 %v2047, %v2238
        %v2240 = vpop.f32.mrb[0].mxu0
        %v2241 = vadd.f32 %v2049, %v2240
        %v2242 = vpop.f32.mrb[0].mxu0
        %v2243 = vadd.f32 %v2050, %v2242
        %2244 = vmatprep.mubr.bf16.mxu0 0
        %2245 = vmatmul.mubr.bf16.gmra.mrb[0].mxu0 %v1435
        %v2246 = vpop.f32.mrb[0].mxu0
        %v2247 = vadd.f32 %v2052, %v2246
        %v2248 = vpop.f32.mrb[0].mxu0
        %v2249 = vadd.f32 %v2053, %v2248
        %v2250 = vpop.f32.mrb[0].mxu0
        %v2251 = vadd.f32 %v2055, %v2250
        %v2252 = vpop.f32.mrb[0].mxu0
        %v2253 = vadd.f32 %v2056, %v2252
        %2254 = vmatprep.mubr.bf16.mxu0 0
        %2255 = vmatmul.mubr.bf16.gmra.mrb[0].mxu0 %v1436
        %v2256 = vpop.f32.mrb[0].mxu0
        %v2257 = vadd.f32 %v2058, %v2256
        %v2258 = vpop.f32.mrb[0].mxu0
        %v2259 = vadd.f32 %v2059, %v2258
        %v2260 = vpop.f32.mrb[0].mxu0
        %v2261 = vadd.f32 %v2061, %v2260
        %v2262 = vpop.f32.mrb[0].mxu0
        %v2263 = vadd.f32 %v2062, %v2262
        %2264 = vmatprep.mubr.bf16.mxu0 0
        %2265 = vmatmul.mubr.bf16.gmra.mrb[0].mxu0 %v1437
        %v2266 = vpop.f32.mrb[0].mxu0
        %v2267 = vadd.f32 %v2064, %v2266
        %v2268 = vpop.f32.mrb[0].mxu0
        %v2269 = vadd.f32 %v2065, %v2268
        %v2270 = vpop.f32.mrb[0].mxu0
        %v2271 = vadd.f32 %v2067, %v2270
        %v2272 = vpop.f32.mrb[0].mxu0
        %v2273 = vadd.f32 %v2068, %v2272
        %2274 = vmatprep.mubr.bf16.mxu0 0
        %2275 = vmatmul.mubr.bf16.gmra.mrb[0].mxu0 %v1438
        %v2276 = vpop.f32.mrb[0].mxu0
        %v2277 = vadd.f32 %v2070, %v2276
        %v2278 = vpop.f32.mrb[0].mxu0
        %v2279 = vadd.f32 %v2071, %v2278
        %v2280 = vpop.f32.mrb[0].mxu0
        %v2281 = vadd.f32 %v2073, %v2280
        %v2282 = vpop.f32.mrb[0].mxu0
        %v2283 = vadd.f32 %v2074, %v2282
        %2284 = vmatprep.mubr.bf16.mxu0 0
        %2285 = vmatmul.mubr.bf16.gmra.mrb[0].mxu0 %v1439
        %v2286 = vpop.f32.mrb[0].mxu0
        %v2287 = vadd.f32 %v2076, %v2286
        %v2288 = vpop.f32.mrb[0].mxu0
        %v2289 = vadd.f32 %v2077, %v2288
        %v2290 = vpop.f32.mrb[0].mxu0
        %v2291 = vadd.f32 %v2079, %v2290
        %v2292 = vpop.f32.mrb[0].mxu0
        %v2293 = vadd.f32 %v2080, %v2292
        %2294 = vmatprep.mubr.bf16.mxu0 0
        %2295 = vmatmul.mubr.bf16.gmra.mrb[0].mxu0 %v1440
        %v2296 = vpop.f32.mrb[0].mxu0
        %v2297 = vadd.f32 %v2082, %v2296
        %v2298 = vpop.f32.mrb[0].mxu0
        %v2299 = vadd.f32 %v2083, %v2298
        %v2300 = vpop.f32.mrb[0].mxu0
        %v2301 = vadd.f32 %v2085, %v2300
        %v2302 = vpop.f32.mrb[0].mxu0
        %v2303 = vadd.f32 %v2086, %v2302
        %2304 = vmatprep.mubr.bf16.mxu0 0
        %2305 = vmatmul.mubr.bf16.gmra.mrb[0].mxu0 %v1441
        %v2306 = vpop.f32.mrb[0].mxu0
        %v2307 = vadd.f32 %v2088, %v2306
        %v2308 = vpop.f32.mrb[0].mxu0
        %v2309 = vadd.f32 %v2089, %v2308
        %v2310 = vpop.f32.mrb[0].mxu0
        %v2311 = vadd.f32 %v2091, %v2310
        %v2312 = vpop.f32.mrb[0].mxu0
        %v2313 = vadd.f32 %v2092, %v2312
        %2314 = vmatprep.mubr.bf16.mxu0 0
        %2315 = vmatmul.mubr.bf16.gmra.mrb[0].mxu0 %v1442
        %v2316 = vpop.f32.mrb[0].mxu0
        %v2317 = vadd.f32 %v2094, %v2316
        %v2318 = vpop.f32.mrb[0].mxu0
        %v2319 = vadd.f32 %v2095, %v2318
        %v2320 = vpop.f32.mrb[0].mxu0
        %v2321 = vadd.f32 %v2097, %v2320
        %v2322 = vpop.f32.mrb[0].mxu0
        %v2323 = vadd.f32 %v2098, %v2322
        %2324 = vmatprep.mubr.bf16.mxu0 0
        %2325 = vmatmul.mubr.bf16.gmra.mrb[0].mxu0 %v1443
        %v2326 = vpop.f32.mrb[0].mxu0
        %v2327 = vadd.f32 %v2100, %v2326
        %v2328 = vpop.f32.mrb[0].mxu0
        %v2329 = vadd.f32 %v2101, %v2328
        %v2330 = vpop.f32.mrb[0].mxu0
        %v2331 = vadd.f32 %v2103, %v2330
        %v2332 = vpop.f32.mrb[0].mxu0
        %v2333 = vadd.f32 %v2104, %v2332
        %2334 = vmatprep.mubr.bf16.mxu0 0
        %2335 = vmatmul.mubr.bf16.gmra.mrb[0].mxu0 %v1444
        %v2336 = vpop.f32.mrb[0].mxu0
        %v2337 = vadd.f32 %v2106, %v2336
        %v2338 = vpop.f32.mrb[0].mxu0
        %v2339 = vadd.f32 %v2107, %v2338
        %v2340 = vpop.f32.mrb[0].mxu0
        %v2341 = vadd.f32 %v2109, %v2340
        %v2342 = vpop.f32.mrb[0].mxu0
        %v2343 = vadd.f32 %v2110, %v2342
        %2344 = vmatprep.mubr.bf16.mxu0 0
        %2345 = vmatmul.mubr.bf16.gmra.mrb[0].mxu0 %v1445
        %v2346 = vpop.f32.mrb[0].mxu0
        %v2347 = vadd.f32 %v2112, %v2346
        %v2348 = vpop.f32.mrb[0].mxu0
        %v2349 = vadd.f32 %v2113, %v2348
        %v2350 = vpop.f32.mrb[0].mxu0
        %v2351 = vadd.f32 %v2115, %v2350
        %v2352 = vpop.f32.mrb[0].mxu0
        %v2353 = vadd.f32 %v2116, %v2352
        %2354 = vmatprep.mubr.bf16.mxu0 0
        %2355 = vmatmul.mubr.bf16.gmra.mrb[0].mxu0 %v1446
        %v2356 = vpop.f32.mrb[0].mxu0
        %v2357 = vadd.f32 %v2118, %v2356
        %v2358 = vpop.f32.mrb[0].mxu0
        %v2359 = vadd.f32 %v2119, %v2358
        %v2360 = vpop.f32.mrb[0].mxu0
        %v2361 = vadd.f32 %v2121, %v2360
        %v2362 = vpop.f32.mrb[0].mxu0
        %v2363 = vadd.f32 %v2122, %v2362
        %2364 = vmatprep.mubr.bf16.mxu0 0
        %2365 = vmatmul.mubr.bf16.gmra.mrb[0].mxu0 %v1447
        %v2366 = vpop.f32.mrb[0].mxu0
        %v2367 = vadd.f32 %v2124, %v2366
        %v2368 = vpop.f32.mrb[0].mxu0
        %v2369 = vadd.f32 %v2125, %v2368
        %v2370 = vpop.f32.mrb[0].mxu0
        %v2371 = vadd.f32 %v2127, %v2370
        %v2372 = vpop.f32.mrb[0].mxu0
        %v2373 = vadd.f32 %v2128, %v2372
        %2374 = vmatprep.mubr.bf16.mxu0 0
        %2375 = vmatmul.mubr.bf16.gmra.mrb[0].mxu0 %v1448
        %v2376 = vpop.f32.mrb[0].mxu0
        %v2377 = vadd.f32 %v2130, %v2376
        %v2378 = vpop.f32.mrb[0].mxu0
        %v2379 = vadd.f32 %v2131, %v2378
        %v2380 = vpop.f32.mrb[0].mxu0
        %v2381 = vadd.f32 %v2133, %v2380
        %v2382 = vpop.f32.mrb[0].mxu0
        %v2383 = vadd.f32 %v2134, %v2382
        %2384 = vmatprep.mubr.bf16.mxu0 0
        %2385 = vmatmul.mubr.bf16.gmra.mrb[0].mxu0 %v1449
        %v2386 = vpop.f32.mrb[0].mxu0
        %v2387 = vadd.f32 %v2136, %v2386
        %v2388 = vpop.f32.mrb[0].mxu0
        %v2389 = vadd.f32 %v2137, %v2388
        %v2390 = vpop.f32.mrb[0].mxu0
        %v2391 = vadd.f32 %v2139, %v2390
        %v2392 = vpop.f32.mrb[0].mxu0
        %v2393 = vadd.f32 %v2140, %v2392
        %2394 = vmatprep.mubr.bf16.mxu0 0
        %2395 = vmatmul.mubr.bf16.gmra.mrb[0].mxu0 %v1450
        %v2396 = vpop.f32.mrb[0].mxu0
        %v2397 = vadd.f32 %v2142, %v2396
        %v2398 = vpop.f32.mrb[0].mxu0
        %v2399 = vadd.f32 %v2143, %v2398
        %v2400 = vpop.f32.mrb[0].mxu0
        %v2401 = vadd.f32 %v2145, %v2400
        %v2402 = vpop.f32.mrb[0].mxu0
        %v2403 = vadd.f32 %v2146, %v2402
        %2404 = vmatprep.mubr.bf16.mxu0 0
        %2405 = vmatmul.mubr.bf16.gmra.mrb[0].mxu0 %v1451
        %v2406 = vpop.f32.mrb[0].mxu0
        %v2407 = vadd.f32 %v2148, %v2406
        %v2408 = vpop.f32.mrb[0].mxu0
        %v2409 = vadd.f32 %v2149, %v2408
        %v2410 = vpop.f32.mrb[0].mxu0
        %v2411 = vadd.f32 %v2151, %v2410
        %v2412 = vpop.f32.mrb[0].mxu0
        %v2413 = vadd.f32 %v2152, %v2412
        %2414 = vmatprep.mubr.bf16.mxu0 0
        %2415 = vmatmul.mubr.bf16.gmra.mrb[0].mxu0 %v1452
        %v2416 = vpop.f32.mrb[0].mxu0
        %v2417 = vadd.f32 %v2154, %v2416
        %v2418 = vpop.f32.mrb[0].mxu0
        %v2419 = vadd.f32 %v2155, %v2418
        %v2420 = vpop.f32.mrb[0].mxu0
        %v2421 = vadd.f32 %v2157, %v2420
        %v2422 = vpop.f32.mrb[0].mxu0
        %v2423 = vadd.f32 %v2158, %v2422
        %2424 = vmatprep.mubr.bf16.mxu0 0
        %2425 = vmatmul.mubr.bf16.gmra.mrb[0].mxu0 %v1453
        %v2426 = vpop.f32.mrb[0].mxu0
        %v2427 = vadd.f32 %v2160, %v2426
        %v2428 = vpop.f32.mrb[0].mxu0
        %v2429 = vadd.f32 %v2161, %v2428
        %v2430 = vpop.f32.mrb[0].mxu0
        %v2431 = vadd.f32 %v2163, %v2430
        %v2432 = vpop.f32.mrb[0].mxu0
        %v2433 = vadd.f32 %v2164, %v2432
        %2434 = vmatprep.mubr.bf16.mxu0 0
        %2435 = vmatmul.mubr.bf16.gmra.mrb[0].mxu0 %v1454
        %v2436 = vpop.f32.mrb[0].mxu0
        %v2437 = vadd.f32 %v2166, %v2436
        %v2438 = vpop.f32.mrb[0].mxu0
        %v2439 = vadd.f32 %v2167, %v2438
        %v2440 = vpop.f32.mrb[0].mxu0
        %v2441 = vadd.f32 %v2169, %v2440
        %v2442 = vpop.f32.mrb[0].mxu0
        %v2443 = vadd.f32 %v2170, %v2442
        %2444 = vdwg.mxu0
        %2445 = vmatprep.subr.bf16.mxu0 0
        %2446 = vmatpush1.bf16.xpose.msra.mxu0 %v1769
        %2447 = vmatprep.subr.bf16.mxu0 0
        %2448 = vmatpush1.bf16.xpose.msra.mxu0 %v1770
        %2449 = vmatprep.subr.bf16.mxu0 0
        %2450 = vmatpush1.bf16.xpose.msra.mxu0 %v1771
        %2451 = vmatprep.subr.bf16.mxu0 0
        %2452 = vmatpush1.bf16.xpose.msra.mxu0 %v1772
        %2453 = vmatprep.subr.bf16.mxu0 0
        %2454 = vmatpush1.bf16.xpose.msra.mxu0 %v1773
        %2455 = vmatprep.subr.bf16.mxu0 0
        %2456 = vmatpush1.bf16.xpose.msra.mxu0 %v1774
        %2457 = vmatprep.subr.bf16.mxu0 0
        %2458 = vmatpush1.bf16.xpose.msra.mxu0 %v1775
        %2459 = vmatprep.subr.bf16.mxu0 0
        %2460 = vmatpush1.bf16.xpose.msra.mxu0 %v1776
        %2461 = vmatprep.subr.bf16.mxu0 0
        %2462 = vmatpush1.bf16.xpose.msra.mxu0 0
        %2463 = vmatprep.subr.bf16.mxu0 0
        %2464 = vmatpush1.bf16.xpose.msra.mxu0 0
        %2465 = vmatprep.subr.bf16.mxu0 0
        %2466 = vmatpush1.bf16.xpose.msra.mxu0 0
        %2467 = vmatprep.subr.bf16.mxu0 0
        %2468 = vmatpush1.bf16.xpose.msra.mxu0 0
        %2469 = vmatprep.subr.bf16.mxu0 0
        %2470 = vmatpush1.bf16.xpose.msra.mxu0 0
        %2471 = vmatprep.subr.bf16.mxu0 0
        %2472 = vmatpush1.bf16.xpose.msra.mxu0 0
        %2473 = vmatprep.subr.bf16.mxu0 0
        %2474 = vmatpush1.bf16.xpose.msra.mxu0 0
        %2475 = vmatprep.subr.bf16.mxu0 0
        %2476 = vmatpush1.bf16.xpose.msra.mxu0 0
        %2477 = vmatprep.mubr.bf16.mxu0 0
        %2478 = vmatmul.mubr.bf16.gmra.mrb[0].mxu0 %v1431
        %v2479 = vpop.f32.mrb[0].mxu0
        %v2480 = vadd.f32 %v2030, %v2479
        %v2481 = vpop.f32.mrb[0].mxu0
        %v2482 = vpop.f32.mrb[0].mxu0
        %v2483 = vadd.f32 %v2033, %v2482
        %v2484 = vpop.f32.mrb[0].mxu0
        %2485 = vmatprep.mubr.bf16.mxu0 0
        %2486 = vmatmul.mubr.bf16.gmra.mrb[0].mxu0 %v1432
        %v2487 = vpop.f32.mrb[0].mxu0
        %v2488 = vadd.f32 %v2036, %v2487
        %v2489 = vpop.f32.mrb[0].mxu0
        %v2490 = vpop.f32.mrb[0].mxu0
        %v2491 = vadd.f32 %v2039, %v2490
        %v2492 = vpop.f32.mrb[0].mxu0
        %2493 = vmatprep.mubr.bf16.mxu0 0
        %2494 = vmatmul.mubr.bf16.gmra.mrb[0].mxu0 %v1433
        %v2495 = vpop.f32.mrb[0].mxu0
        %v2496 = vadd.f32 %v2042, %v2495
        %v2497 = vpop.f32.mrb[0].mxu0
        %v2498 = vpop.f32.mrb[0].mxu0
        %v2499 = vadd.f32 %v2045, %v2498
        %v2500 = vpop.f32.mrb[0].mxu0
        %2501 = vmatprep.mubr.bf16.mxu0 0
        %2502 = vmatmul.mubr.bf16.gmra.mrb[0].mxu0 %v1434
        %v2503 = vpop.f32.mrb[0].mxu0
        %v2504 = vadd.f32 %v2048, %v2503
        %v2505 = vpop.f32.mrb[0].mxu0
        %v2506 = vpop.f32.mrb[0].mxu0
        %v2507 = vadd.f32 %v2051, %v2506
        %v2508 = vpop.f32.mrb[0].mxu0
        %2509 = vmatprep.mubr.bf16.mxu0 0
        %2510 = vmatmul.mubr.bf16.gmra.mrb[0].mxu0 %v1435
        %v2511 = vpop.f32.mrb[0].mxu0
        %v2512 = vadd.f32 %v2054, %v2511
        %v2513 = vpop.f32.mrb[0].mxu0
        %v2514 = vpop.f32.mrb[0].mxu0
        %v2515 = vadd.f32 %v2057, %v2514
        %v2516 = vpop.f32.mrb[0].mxu0
        %2517 = vmatprep.mubr.bf16.mxu0 0
        %2518 = vmatmul.mubr.bf16.gmra.mrb[0].mxu0 %v1436
        %v2519 = vpop.f32.mrb[0].mxu0
        %v2520 = vadd.f32 %v2060, %v2519
        %v2521 = vpop.f32.mrb[0].mxu0
        %v2522 = vpop.f32.mrb[0].mxu0
        %v2523 = vadd.f32 %v2063, %v2522
        %v2524 = vpop.f32.mrb[0].mxu0
        %2525 = vmatprep.mubr.bf16.mxu0 0
        %2526 = vmatmul.mubr.bf16.gmra.mrb[0].mxu0 %v1437
        %v2527 = vpop.f32.mrb[0].mxu0
        %v2528 = vadd.f32 %v2066, %v2527
        %v2529 = vpop.f32.mrb[0].mxu0
        %v2530 = vpop.f32.mrb[0].mxu0
        %v2531 = vadd.f32 %v2069, %v2530
        %v2532 = vpop.f32.mrb[0].mxu0
        %2533 = vmatprep.mubr.bf16.mxu0 0
        %2534 = vmatmul.mubr.bf16.gmra.mrb[0].mxu0 %v1438
        %v2535 = vpop.f32.mrb[0].mxu0
        %v2536 = vadd.f32 %v2072, %v2535
        %v2537 = vpop.f32.mrb[0].mxu0
        %v2538 = vpop.f32.mrb[0].mxu0
        %v2539 = vadd.f32 %v2075, %v2538
        %v2540 = vpop.f32.mrb[0].mxu0
        %2541 = vmatprep.mubr.bf16.mxu0 0
        %2542 = vmatmul.mubr.bf16.gmra.mrb[0].mxu0 %v1439
        %v2543 = vpop.f32.mrb[0].mxu0
        %v2544 = vadd.f32 %v2078, %v2543
        %v2545 = vpop.f32.mrb[0].mxu0
        %v2546 = vpop.f32.mrb[0].mxu0
        %v2547 = vadd.f32 %v2081, %v2546
        %v2548 = vpop.f32.mrb[0].mxu0
        %2549 = vmatprep.mubr.bf16.mxu0 0
        %2550 = vmatmul.mubr.bf16.gmra.mrb[0].mxu0 %v1440
        %v2551 = vpop.f32.mrb[0].mxu0
        %v2552 = vadd.f32 %v2084, %v2551
        %v2553 = vpop.f32.mrb[0].mxu0
        %v2554 = vpop.f32.mrb[0].mxu0
        %v2555 = vadd.f32 %v2087, %v2554
        %v2556 = vpop.f32.mrb[0].mxu0
        %2557 = vmatprep.mubr.bf16.mxu0 0
        %2558 = vmatmul.mubr.bf16.gmra.mrb[0].mxu0 %v1441
        %v2559 = vpop.f32.mrb[0].mxu0
        %v2560 = vadd.f32 %v2090, %v2559
        %v2561 = vpop.f32.mrb[0].mxu0
        %v2562 = vpop.f32.mrb[0].mxu0
        %v2563 = vadd.f32 %v2093, %v2562
        %v2564 = vpop.f32.mrb[0].mxu0
        %2565 = vmatprep.mubr.bf16.mxu0 0
        %2566 = vmatmul.mubr.bf16.gmra.mrb[0].mxu0 %v1442
        %v2567 = vpop.f32.mrb[0].mxu0
        %v2568 = vadd.f32 %v2096, %v2567
        %v2569 = vpop.f32.mrb[0].mxu0
        %v2570 = vpop.f32.mrb[0].mxu0
        %v2571 = vadd.f32 %v2099, %v2570
        %v2572 = vpop.f32.mrb[0].mxu0
        %2573 = vmatprep.mubr.bf16.mxu0 0
        %2574 = vmatmul.mubr.bf16.gmra.mrb[0].mxu0 %v1443
        %v2575 = vpop.f32.mrb[0].mxu0
        %v2576 = vadd.f32 %v2102, %v2575
        %v2577 = vpop.f32.mrb[0].mxu0
        %v2578 = vpop.f32.mrb[0].mxu0
        %v2579 = vadd.f32 %v2105, %v2578
        %v2580 = vpop.f32.mrb[0].mxu0
        %2581 = vmatprep.mubr.bf16.mxu0 0
        %2582 = vmatmul.mubr.bf16.gmra.mrb[0].mxu0 %v1444
        %v2583 = vpop.f32.mrb[0].mxu0
        %v2584 = vadd.f32 %v2108, %v2583
        %v2585 = vpop.f32.mrb[0].mxu0
        %v2586 = vpop.f32.mrb[0].mxu0
        %v2587 = vadd.f32 %v2111, %v2586
        %v2588 = vpop.f32.mrb[0].mxu0
        %2589 = vmatprep.mubr.bf16.mxu0 0
        %2590 = vmatmul.mubr.bf16.gmra.mrb[0].mxu0 %v1445
        %v2591 = vpop.f32.mrb[0].mxu0
        %v2592 = vadd.f32 %v2114, %v2591
        %v2593 = vpop.f32.mrb[0].mxu0
        %v2594 = vpop.f32.mrb[0].mxu0
        %v2595 = vadd.f32 %v2117, %v2594
        %v2596 = vpop.f32.mrb[0].mxu0
        %2597 = vmatprep.mubr.bf16.mxu0 0
        %2598 = vmatmul.mubr.bf16.gmra.mrb[0].mxu0 %v1446
        %v2599 = vpop.f32.mrb[0].mxu0
        %v2600 = vadd.f32 %v2120, %v2599
        %v2601 = vpop.f32.mrb[0].mxu0
        %v2602 = vpop.f32.mrb[0].mxu0
        %v2603 = vadd.f32 %v2123, %v2602
        %v2604 = vpop.f32.mrb[0].mxu0
        %2605 = vmatprep.mubr.bf16.mxu0 0
        %2606 = vmatmul.mubr.bf16.gmra.mrb[0].mxu0 %v1447
        %v2607 = vpop.f32.mrb[0].mxu0
        %v2608 = vadd.f32 %v2126, %v2607
        %v2609 = vpop.f32.mrb[0].mxu0
        %v2610 = vpop.f32.mrb[0].mxu0
        %v2611 = vadd.f32 %v2129, %v2610
        %v2612 = vpop.f32.mrb[0].mxu0
        %2613 = vmatprep.mubr.bf16.mxu0 0
        %2614 = vmatmul.mubr.bf16.gmra.mrb[0].mxu0 %v1448
        %v2615 = vpop.f32.mrb[0].mxu0
        %v2616 = vadd.f32 %v2132, %v2615
        %v2617 = vpop.f32.mrb[0].mxu0
        %v2618 = vpop.f32.mrb[0].mxu0
        %v2619 = vadd.f32 %v2135, %v2618
        %v2620 = vpop.f32.mrb[0].mxu0
        %2621 = vmatprep.mubr.bf16.mxu0 0
        %2622 = vmatmul.mubr.bf16.gmra.mrb[0].mxu0 %v1449
        %v2623 = vpop.f32.mrb[0].mxu0
        %v2624 = vadd.f32 %v2138, %v2623
        %v2625 = vpop.f32.mrb[0].mxu0
        %v2626 = vpop.f32.mrb[0].mxu0
        %v2627 = vadd.f32 %v2141, %v2626
        %v2628 = vpop.f32.mrb[0].mxu0
        %2629 = vmatprep.mubr.bf16.mxu0 0
        %2630 = vmatmul.mubr.bf16.gmra.mrb[0].mxu0 %v1450
        %v2631 = vpop.f32.mrb[0].mxu0
        %v2632 = vadd.f32 %v2144, %v2631
        %v2633 = vpop.f32.mrb[0].mxu0
        %v2634 = vpop.f32.mrb[0].mxu0
        %v2635 = vadd.f32 %v2147, %v2634
        %v2636 = vpop.f32.mrb[0].mxu0
        %2637 = vmatprep.mubr.bf16.mxu0 0
        %2638 = vmatmul.mubr.bf16.gmra.mrb[0].mxu0 %v1451
        %v2639 = vpop.f32.mrb[0].mxu0
        %v2640 = vadd.f32 %v2150, %v2639
        %v2641 = vpop.f32.mrb[0].mxu0
        %v2642 = vpop.f32.mrb[0].mxu0
        %v2643 = vadd.f32 %v2153, %v2642
        %v2644 = vpop.f32.mrb[0].mxu0
        %2645 = vmatprep.mubr.bf16.mxu0 0
        %2646 = vmatmul.mubr.bf16.gmra.mrb[0].mxu0 %v1452
        %v2647 = vpop.f32.mrb[0].mxu0
        %v2648 = vadd.f32 %v2156, %v2647
        %v2649 = vpop.f32.mrb[0].mxu0
        %v2650 = vpop.f32.mrb[0].mxu0
        %v2651 = vadd.f32 %v2159, %v2650
        %v2652 = vpop.f32.mrb[0].mxu0
        %2653 = vmatprep.mubr.bf16.mxu0 0
        %2654 = vmatmul.mubr.bf16.gmra.mrb[0].mxu0 %v1453
        %v2655 = vpop.f32.mrb[0].mxu0
        %v2656 = vadd.f32 %v2162, %v2655
        %v2657 = vpop.f32.mrb[0].mxu0
        %v2658 = vpop.f32.mrb[0].mxu0
        %v2659 = vadd.f32 %v2165, %v2658
        %v2660 = vpop.f32.mrb[0].mxu0
        %2661 = vmatprep.mubr.bf16.mxu0 0
        %2662 = vmatmul.mubr.bf16.gmra.mrb[0].mxu0 %v1454
        %v2663 = vpop.f32.mrb[0].mxu0
        %v2664 = vadd.f32 %v2168, %v2663
        %v2665 = vpop.f32.mrb[0].mxu0
        %v2666 = vpop.f32.mrb[0].mxu0
        %v2667 = vadd.f32 %v2171, %v2666
        %v2668 = vpop.f32.mrb[0].mxu0
        %2669 = vdwg.mxu0
        %v2670 = vld [vmem:[#allocation3] sm:$0x7]
        %v2671 = vmax.f32 %v2207, %v2217
        %v2672 = vmax.f32 %v2211, %v2221
        %v2673 = vmax.f32 %v2671, %v2227
        %v2674 = vmax.f32 %v2672, %v2231
        %v2675 = vmax.f32 %v2673, %v2237
        %v2676 = vmax.f32 %v2674, %v2241
        %v2677 = vmax.f32 %v2675, %v2247
        %v2678 = vmax.f32 %v2676, %v2251
        %v2679 = vmax.f32 %v2677, %v2257
        %v2680 = vmax.f32 %v2678, %v2261
        %v2681 = vmax.f32 %v2679, %v2267
        %v2682 = vmax.f32 %v2680, %v2271
        %v2683 = vmax.f32 %v2681, %v2277
        %v2684 = vmax.f32 %v2682, %v2281
        %v2685 = vmax.f32 %v2683, %v2287
        %v2686 = vmax.f32 %v2684, %v2291
        %v2687 = vmax.f32 %v2685, %v2297
        %v2688 = vmax.f32 %v2686, %v2301
        %v2689 = vmax.f32 %v2687, %v2307
        %v2690 = vmax.f32 %v2688, %v2311
        %v2691 = vmax.f32 %v2689, %v2317
        %v2692 = vmax.f32 %v2690, %v2321
        %v2693 = vmax.f32 %v2691, %v2327
        %v2694 = vmax.f32 %v2692, %v2331
        %v2695 = vmax.f32 %v2693, %v2337
        %v2696 = vmax.f32 %v2694, %v2341
        %v2697 = vmax.f32 %v2695, %v2347
        %v2698 = vmax.f32 %v2696, %v2351
        %v2699 = vmax.f32 %v2697, %v2357
        %v2700 = vmax.f32 %v2698, %v2361
        %v2701 = vmax.f32 %v2699, %v2367
        %v2702 = vmax.f32 %v2700, %v2371
        %v2703 = vmax.f32 %v2701, %v2377
        %v2704 = vmax.f32 %v2702, %v2381
        %v2705 = vmax.f32 %v2703, %v2387
        %v2706 = vmax.f32 %v2704, %v2391
        %v2707 = vmax.f32 %v2705, %v2397
        %v2708 = vmax.f32 %v2706, %v2401
        %v2709 = vmax.f32 %v2707, %v2407
        %v2710 = vmax.f32 %v2708, %v2411
        %v2711 = vmax.f32 %v2709, %v2417
        %v2712 = vmax.f32 %v2710, %v2421
        %v2713 = vmax.f32 %v2711, %v2427
        %v2714 = vmax.f32 %v2712, %v2431
        %v2715 = vmax.f32 %v2713, %v2437
        %v2716 = vmax.f32 %v2714, %v2441
        %v2717 = vmax.f32 %v2715, %v2716
        %v2718 = vrot.slane %v2717, 4
        %v2719 = vmax.f32 %v2717, %v2718
        %v2720 = vrot.slane %v2719, 2
        %v2721 = vmax.f32 %v2719, %v2720
        %v2722 = vrot.slane %v2721, 1
        %v2723 = vmax.f32 %v2721, %v2722
        %v2724 = vmax.f32 %v2209, %v2219
        %v2725 = vmax.f32 %v2213, %v2223
        %v2726 = vmax.f32 %v2724, %v2229
        %v2727 = vmax.f32 %v2725, %v2233
        %v2728 = vmax.f32 %v2726, %v2239
        %v2729 = vmax.f32 %v2727, %v2243
        %v2730 = vmax.f32 %v2728, %v2249
        %v2731 = vmax.f32 %v2729, %v2253
        %v2732 = vmax.f32 %v2730, %v2259
        %v2733 = vmax.f32 %v2731, %v2263
        %v2734 = vmax.f32 %v2732, %v2269
        %v2735 = vmax.f32 %v2733, %v2273
        %v2736 = vmax.f32 %v2734, %v2279
        %v2737 = vmax.f32 %v2735, %v2283
        %v2738 = vmax.f32 %v2736, %v2289
        %v2739 = vmax.f32 %v2737, %v2293
        %v2740 = vmax.f32 %v2738, %v2299
        %v2741 = vmax.f32 %v2739, %v2303
        %v2742 = vmax.f32 %v2740, %v2309
        %v2743 = vmax.f32 %v2741, %v2313
        %v2744 = vmax.f32 %v2742, %v2319
        %v2745 = vmax.f32 %v2743, %v2323
        %v2746 = vmax.f32 %v2744, %v2329
        %v2747 = vmax.f32 %v2745, %v2333
        %v2748 = vmax.f32 %v2746, %v2339
        %v2749 = vmax.f32 %v2747, %v2343
        %v2750 = vmax.f32 %v2748, %v2349
        %v2751 = vmax.f32 %v2749, %v2353
        %v2752 = vmax.f32 %v2750, %v2359
        %v2753 = vmax.f32 %v2751, %v2363
        %v2754 = vmax.f32 %v2752, %v2369
        %v2755 = vmax.f32 %v2753, %v2373
        %v2756 = vmax.f32 %v2754, %v2379
        %v2757 = vmax.f32 %v2755, %v2383
        %v2758 = vmax.f32 %v2756, %v2389
        %v2759 = vmax.f32 %v2757, %v2393
        %v2760 = vmax.f32 %v2758, %v2399
        %v2761 = vmax.f32 %v2759, %v2403
        %v2762 = vmax.f32 %v2760, %v2409
        %v2763 = vmax.f32 %v2761, %v2413
        %v2764 = vmax.f32 %v2762, %v2419
        %v2765 = vmax.f32 %v2763, %v2423
        %v2766 = vmax.f32 %v2764, %v2429
        %v2767 = vmax.f32 %v2765, %v2433
        %v2768 = vmax.f32 %v2766, %v2439
        %v2769 = vmax.f32 %v2767, %v2443
        %v2770 = vmax.f32 %v2768, %v2769
        %v2771 = vrot.slane %v2770, 4
        %v2772 = vmax.f32 %v2770, %v2771
        %v2773 = vrot.slane %v2772, 2
        %v2774 = vmax.f32 %v2772, %v2773
        %v2775 = vrot.slane %v2774, 1
        %v2776 = vmax.f32 %v2774, %v2775
        %v2777 = vmax.f32 %v2480, %v2488
        %v2778 = vmax.f32 %v2483, %v2491
        %v2779 = vmax.f32 %v2777, %v2496
        %v2780 = vmax.f32 %v2778, %v2499
        %v2781 = vmax.f32 %v2779, %v2504
        %v2782 = vmax.f32 %v2780, %v2507
        %v2783 = vmax.f32 %v2781, %v2512
        %v2784 = vmax.f32 %v2782, %v2515
        %v2785 = vmax.f32 %v2783, %v2520
        %v2786 = vmax.f32 %v2784, %v2523
        %v2787 = vmax.f32 %v2785, %v2528
        %v2788 = vmax.f32 %v2786, %v2531
        %v2789 = vmax.f32 %v2787, %v2536
        %v2790 = vmax.f32 %v2788, %v2539
        %v2791 = vmax.f32 %v2789, %v2544
        %v2792 = vmax.f32 %v2790, %v2547
        %v2793 = vmax.f32 %v2791, %v2552
        %v2794 = vmax.f32 %v2792, %v2555
        %v2795 = vmax.f32 %v2793, %v2560
        %v2796 = vmax.f32 %v2794, %v2563
        %v2797 = vmax.f32 %v2795, %v2568
        %v2798 = vmax.f32 %v2796, %v2571
        %v2799 = vmax.f32 %v2797, %v2576
        %v2800 = vmax.f32 %v2798, %v2579
        %v2801 = vmax.f32 %v2799, %v2584
        %v2802 = vmax.f32 %v2800, %v2587
        %v2803 = vmax.f32 %v2801, %v2592
        %v2804 = vmax.f32 %v2802, %v2595
        %v2805 = vmax.f32 %v2803, %v2600
        %v2806 = vmax.f32 %v2804, %v2603
        %v2807 = vmax.f32 %v2805, %v2608
        %v2808 = vmax.f32 %v2806, %v2611
        %v2809 = vmax.f32 %v2807, %v2616
        %v2810 = vmax.f32 %v2808, %v2619
        %v2811 = vmax.f32 %v2809, %v2624
        %v2812 = vmax.f32 %v2810, %v2627
        %v2813 = vmax.f32 %v2811, %v2632
        %v2814 = vmax.f32 %v2812, %v2635
        %v2815 = vmax.f32 %v2813, %v2640
        %v2816 = vmax.f32 %v2814, %v2643
        %v2817 = vmax.f32 %v2815, %v2648
        %v2818 = vmax.f32 %v2816, %v2651
        %v2819 = vmax.f32 %v2817, %v2656
        %v2820 = vmax.f32 %v2818, %v2659
        %v2821 = vmax.f32 %v2819, %v2664
        %v2822 = vmax.f32 %v2820, %v2667
        %v2823 = vmax.f32 %v2821, %v2822
        %v2824 = vrot.slane %v2823, 4
        %v2825 = vmax.f32 %v2823, %v2824
        %v2826 = vrot.slane %v2825, 2
        %v2827 = vmax.f32 %v2825, %v2826
        %v2828 = vrot.slane %v2827, 1
        %v2829 = vmax.f32 %v2827, %v2828
        %v2833 = vcombine.low %v2723, %v2776
        %v2835 = vunpack.c.l.s4 1966171168
        %v2836 = vunpack.c.0.s8 %v2835
        %v2837 = vlaneseq
        %v2838 = vshrl.u32 %v2837, 7
        %v2839 = vsub.s32 %v2836, %v2838
        %v2840 = vrot.slane %v2833, %v2839
        %v2842 = vunpack.c.l.s4 1966171168
        %v2843 = vunpack.c.0.s8 %v2842
        %v2844 = vlaneseq
        %v2845 = vshrl.u32 %v2844, 7
        %v2846 = vsub.s32 %v2843, %v2845
        %v2847 = vrot.slane %v2829, %v2846
        %v2848 = vcombine.low %v2840, %v2847
        %v2850 = vunpack.c.l.s4 1966171168
        %v2851 = vunpack.c.0.s8 %v2850
        %v2852 = vlaneseq
        %v2853 = vshrl.u32 %v2852, 7
        %v2854 = vsub.s32 %v2851, %v2853
        %v2855 = vrot.slane %v2848, %v2854
        %v2857 = vmax.f32 %v2670, %v2855
        %v2858 = vsub.f32 %v2670, %v2857
        %v2859 = vmul.f32 %v2858, 1.442695
        %v2860 = vpow.pop %v2859
        %v2862 = vlaneseq
        %v2863 = vshrl.u32 %v2862, 7
        %v2864 = vsub.s32 0, %v2863
        %v2865 = vrot.slane %v2857, %v2864
        %v2866 = vlaneseq
        %v2867 = vshrl.u32 %v2866, 7
        %v2868 = vsub.s32 1, %v2867
        %v2869 = vrot.slane %v2857, %v2868
        %v2870 = vlaneseq
        %v2871 = vshrl.u32 %v2870, 7
        %v2872 = vsub.s32 2, %v2871
        %v2873 = vrot.slane %v2857, %v2872
        %v2877 = vsub.f32 %v2207, %v2865
        %v2878 = vsub.f32 %v2209, %v2869
        %v2879 = vsub.f32 %v2480, %v2873
        %v2880 = vsub.f32 %v2211, %v2865
        %v2881 = vsub.f32 %v2213, %v2869
        %v2882 = vsub.f32 %v2483, %v2873
        %v2883 = vsub.f32 %v2217, %v2865
        %v2884 = vsub.f32 %v2219, %v2869
        %v2885 = vsub.f32 %v2488, %v2873
        %v2886 = vsub.f32 %v2221, %v2865
        %v2887 = vsub.f32 %v2223, %v2869
        %v2888 = vsub.f32 %v2491, %v2873
        %v2889 = vsub.f32 %v2227, %v2865
        %v2890 = vsub.f32 %v2229, %v2869
        %v2891 = vsub.f32 %v2496, %v2873
        %v2892 = vsub.f32 %v2231, %v2865
        %v2893 = vsub.f32 %v2233, %v2869
        %v2894 = vsub.f32 %v2499, %v2873
        %v2895 = vsub.f32 %v2237, %v2865
        %v2896 = vsub.f32 %v2239, %v2869
        %v2897 = vsub.f32 %v2504, %v2873
        %v2898 = vsub.f32 %v2241, %v2865
        %v2899 = vsub.f32 %v2243, %v2869
        %v2900 = vsub.f32 %v2507, %v2873
        %v2901 = vsub.f32 %v2247, %v2865
        %v2902 = vsub.f32 %v2249, %v2869
        %v2903 = vsub.f32 %v2512, %v2873
        %v2904 = vsub.f32 %v2251, %v2865
        %v2905 = vsub.f32 %v2253, %v2869
        %v2906 = vsub.f32 %v2515, %v2873
        %v2907 = vsub.f32 %v2257, %v2865
        %v2908 = vsub.f32 %v2259, %v2869
        %v2909 = vsub.f32 %v2520, %v2873
        %v2910 = vsub.f32 %v2261, %v2865
        %v2911 = vsub.f32 %v2263, %v2869
        %v2912 = vsub.f32 %v2523, %v2873
        %v2913 = vsub.f32 %v2267, %v2865
        %v2914 = vsub.f32 %v2269, %v2869
        %v2915 = vsub.f32 %v2528, %v2873
        %v2916 = vsub.f32 %v2271, %v2865
        %v2917 = vsub.f32 %v2273, %v2869
        %v2918 = vsub.f32 %v2531, %v2873
        %v2919 = vsub.f32 %v2277, %v2865
        %v2920 = vsub.f32 %v2279, %v2869
        %v2921 = vsub.f32 %v2536, %v2873
        %v2922 = vsub.f32 %v2281, %v2865
        %v2923 = vsub.f32 %v2283, %v2869
        %v2924 = vsub.f32 %v2539, %v2873
        %v2925 = vsub.f32 %v2287, %v2865
        %v2926 = vsub.f32 %v2289, %v2869
        %v2927 = vsub.f32 %v2544, %v2873
        %v2928 = vsub.f32 %v2291, %v2865
        %v2929 = vsub.f32 %v2293, %v2869
        %v2930 = vsub.f32 %v2547, %v2873
        %v2931 = vsub.f32 %v2297, %v2865
        %v2932 = vsub.f32 %v2299, %v2869
        %v2933 = vsub.f32 %v2552, %v2873
        %v2934 = vsub.f32 %v2301, %v2865
        %v2935 = vsub.f32 %v2303, %v2869
        %v2936 = vsub.f32 %v2555, %v2873
        %v2937 = vsub.f32 %v2307, %v2865
        %v2938 = vsub.f32 %v2309, %v2869
        %v2939 = vsub.f32 %v2560, %v2873
        %v2940 = vsub.f32 %v2311, %v2865
        %v2941 = vsub.f32 %v2313, %v2869
        %v2942 = vsub.f32 %v2563, %v2873
        %v2943 = vsub.f32 %v2317, %v2865
        %v2944 = vsub.f32 %v2319, %v2869
        %v2945 = vsub.f32 %v2568, %v2873
        %v2946 = vsub.f32 %v2321, %v2865
        %v2947 = vsub.f32 %v2323, %v2869
        %v2948 = vsub.f32 %v2571, %v2873
        %v2949 = vsub.f32 %v2327, %v2865
        %v2950 = vsub.f32 %v2329, %v2869
        %v2951 = vsub.f32 %v2576, %v2873
        %v2952 = vsub.f32 %v2331, %v2865
        %v2953 = vsub.f32 %v2333, %v2869
        %v2954 = vsub.f32 %v2579, %v2873
        %v2955 = vsub.f32 %v2337, %v2865
        %v2956 = vsub.f32 %v2339, %v2869
        %v2957 = vsub.f32 %v2584, %v2873
        %v2958 = vsub.f32 %v2341, %v2865
        %v2959 = vsub.f32 %v2343, %v2869
        %v2960 = vsub.f32 %v2587, %v2873
        %v2961 = vsub.f32 %v2347, %v2865
        %v2962 = vsub.f32 %v2349, %v2869
        %v2963 = vsub.f32 %v2592, %v2873
        %v2964 = vsub.f32 %v2351, %v2865
        %v2965 = vsub.f32 %v2353, %v2869
        %v2966 = vsub.f32 %v2595, %v2873
        %v2967 = vsub.f32 %v2357, %v2865
        %v2968 = vsub.f32 %v2359, %v2869
        %v2969 = vsub.f32 %v2600, %v2873
        %v2970 = vsub.f32 %v2361, %v2865
        %v2971 = vsub.f32 %v2363, %v2869
        %v2972 = vsub.f32 %v2603, %v2873
        %v2973 = vsub.f32 %v2367, %v2865
        %v2974 = vsub.f32 %v2369, %v2869
        %v2975 = vsub.f32 %v2608, %v2873
        %v2976 = vsub.f32 %v2371, %v2865
        %v2977 = vsub.f32 %v2373, %v2869
        %v2978 = vsub.f32 %v2611, %v2873
        %v2979 = vsub.f32 %v2377, %v2865
        %v2980 = vsub.f32 %v2379, %v2869
        %v2981 = vsub.f32 %v2616, %v2873
        %v2982 = vsub.f32 %v2381, %v2865
        %v2983 = vsub.f32 %v2383, %v2869
        %v2984 = vsub.f32 %v2619, %v2873
        %v2985 = vsub.f32 %v2387, %v2865
        %v2986 = vsub.f32 %v2389, %v2869
        %v2987 = vsub.f32 %v2624, %v2873
        %v2988 = vsub.f32 %v2391, %v2865
        %v2989 = vsub.f32 %v2393, %v2869
        %v2990 = vsub.f32 %v2627, %v2873
        %v2991 = vsub.f32 %v2397, %v2865
        %v2992 = vsub.f32 %v2399, %v2869
        %v2993 = vsub.f32 %v2632, %v2873
        %v2994 = vsub.f32 %v2401, %v2865
        %v2995 = vsub.f32 %v2403, %v2869
        %v2996 = vsub.f32 %v2635, %v2873
        %v2997 = vsub.f32 %v2407, %v2865
        %v2998 = vsub.f32 %v2409, %v2869
        %v2999 = vsub.f32 %v2640, %v2873
        %v3000 = vsub.f32 %v2411, %v2865
        %v3001 = vsub.f32 %v2413, %v2869
        %v3002 = vsub.f32 %v2643, %v2873
        %v3003 = vsub.f32 %v2417, %v2865
        %v3004 = vsub.f32 %v2419, %v2869
        %v3005 = vsub.f32 %v2648, %v2873
        %v3006 = vsub.f32 %v2421, %v2865
        %v3007 = vsub.f32 %v2423, %v2869
        %v3008 = vsub.f32 %v2651, %v2873
        %v3009 = vsub.f32 %v2427, %v2865
        %v3010 = vsub.f32 %v2429, %v2869
        %v3011 = vsub.f32 %v2656, %v2873
        %v3012 = vsub.f32 %v2431, %v2865
        %v3013 = vsub.f32 %v2433, %v2869
        %v3014 = vsub.f32 %v2659, %v2873
        %v3015 = vsub.f32 %v2437, %v2865
        %v3016 = vsub.f32 %v2439, %v2869
        %v3017 = vsub.f32 %v2664, %v2873
        %v3018 = vsub.f32 %v2441, %v2865
        %v3019 = vsub.f32 %v2443, %v2869
        %v3020 = vsub.f32 %v2667, %v2873
        %v3021 = vmul.f32 %v2877, 1.442695
        %v3022 = vpow.pop %v3021
        %v3023 = vmul.f32 %v2878, 1.442695
        %v3024 = vpow.pop %v3023
        %v3025 = vmul.f32 %v2879, 1.442695
        %v3026 = vpow.pop %v3025
        %v3027 = vmul.f32 %v2880, 1.442695
        %v3028 = vpow.pop %v3027
        %v3029 = vmul.f32 %v2881, 1.442695
        %v3030 = vpow.pop %v3029
        %v3031 = vmul.f32 %v2882, 1.442695
        %v3032 = vpow.pop %v3031
        %v3033 = vmul.f32 %v2883, 1.442695
        %v3034 = vpow.pop %v3033
        %v3035 = vmul.f32 %v2884, 1.442695
        %v3036 = vpow.pop %v3035
        %v3037 = vmul.f32 %v2885, 1.442695
        %v3038 = vpow.pop %v3037
        %v3039 = vmul.f32 %v2886, 1.442695
        %v3040 = vpow.pop %v3039
        %v3041 = vmul.f32 %v2887, 1.442695
        %v3042 = vpow.pop %v3041
        %v3043 = vmul.f32 %v2888, 1.442695
        %v3044 = vpow.pop %v3043
        %v3045 = vmul.f32 %v2889, 1.442695
        %v3046 = vpow.pop %v3045
        %v3047 = vmul.f32 %v2890, 1.442695
        %v3048 = vpow.pop %v3047
        %v3049 = vmul.f32 %v2891, 1.442695
        %v3050 = vpow.pop %v3049
        %v3051 = vmul.f32 %v2892, 1.442695
        %v3052 = vpow.pop %v3051
        %v3053 = vmul.f32 %v2893, 1.442695
        %v3054 = vpow.pop %v3053
        %v3055 = vmul.f32 %v2894, 1.442695
        %v3056 = vpow.pop %v3055
        %v3057 = vmul.f32 %v2895, 1.442695
        %v3058 = vpow.pop %v3057
        %v3059 = vmul.f32 %v2896, 1.442695
        %v3060 = vpow.pop %v3059
        %v3061 = vmul.f32 %v2897, 1.442695
        %v3062 = vpow.pop %v3061
        %v3063 = vmul.f32 %v2898, 1.442695
        %v3064 = vpow.pop %v3063
        %v3065 = vmul.f32 %v2899, 1.442695
        %v3066 = vpow.pop %v3065
        %v3067 = vmul.f32 %v2900, 1.442695
        %v3068 = vpow.pop %v3067
        %v3069 = vmul.f32 %v2901, 1.442695
        %v3070 = vpow.pop %v3069
        %v3071 = vmul.f32 %v2902, 1.442695
        %v3072 = vpow.pop %v3071
        %v3073 = vmul.f32 %v2903, 1.442695
        %v3074 = vpow.pop %v3073
        %v3075 = vmul.f32 %v2904, 1.442695
        %v3076 = vpow.pop %v3075
        %v3077 = vmul.f32 %v2905, 1.442695
        %v3078 = vpow.pop %v3077
        %v3079 = vmul.f32 %v2906, 1.442695
        %v3080 = vpow.pop %v3079
        %v3081 = vmul.f32 %v2907, 1.442695
        %v3082 = vpow.pop %v3081
        %v3083 = vmul.f32 %v2908, 1.442695
        %v3084 = vpow.pop %v3083
        %v3085 = vmul.f32 %v2909, 1.442695
        %v3086 = vpow.pop %v3085
        %v3087 = vmul.f32 %v2910, 1.442695
        %v3088 = vpow.pop %v3087
        %v3089 = vmul.f32 %v2911, 1.442695
        %v3090 = vpow.pop %v3089
        %v3091 = vmul.f32 %v2912, 1.442695
        %v3092 = vpow.pop %v3091
        %v3093 = vmul.f32 %v2913, 1.442695
        %v3094 = vpow.pop %v3093
        %v3095 = vmul.f32 %v2914, 1.442695
        %v3096 = vpow.pop %v3095
        %v3097 = vmul.f32 %v2915, 1.442695
        %v3098 = vpow.pop %v3097
        %v3099 = vmul.f32 %v2916, 1.442695
        %v3100 = vpow.pop %v3099
        %v3101 = vmul.f32 %v2917, 1.442695
        %v3102 = vpow.pop %v3101
        %v3103 = vmul.f32 %v2918, 1.442695
        %v3104 = vpow.pop %v3103
        %v3105 = vmul.f32 %v2919, 1.442695
        %v3106 = vpow.pop %v3105
        %v3107 = vmul.f32 %v2920, 1.442695
        %v3108 = vpow.pop %v3107
        %v3109 = vmul.f32 %v2921, 1.442695
        %v3110 = vpow.pop %v3109
        %v3111 = vmul.f32 %v2922, 1.442695
        %v3112 = vpow.pop %v3111
        %v3113 = vmul.f32 %v2923, 1.442695
        %v3114 = vpow.pop %v3113
        %v3115 = vmul.f32 %v2924, 1.442695
        %v3116 = vpow.pop %v3115
        %v3117 = vmul.f32 %v2925, 1.442695
        %v3118 = vpow.pop %v3117
        %v3119 = vmul.f32 %v2926, 1.442695
        %v3120 = vpow.pop %v3119
        %v3121 = vmul.f32 %v2927, 1.442695
        %v3122 = vpow.pop %v3121
        %v3123 = vmul.f32 %v2928, 1.442695
        %v3124 = vpow.pop %v3123
        %v3125 = vmul.f32 %v2929, 1.442695
        %v3126 = vpow.pop %v3125
        %v3127 = vmul.f32 %v2930, 1.442695
        %v3128 = vpow.pop %v3127
        %v3129 = vmul.f32 %v2931, 1.442695
        %v3130 = vpow.pop %v3129
        %v3131 = vmul.f32 %v2932, 1.442695
        %v3132 = vpow.pop %v3131
        %v3133 = vmul.f32 %v2933, 1.442695
        %v3134 = vpow.pop %v3133
        %v3135 = vmul.f32 %v2934, 1.442695
        %v3136 = vpow.pop %v3135
        %v3137 = vmul.f32 %v2935, 1.442695
        %v3138 = vpow.pop %v3137
        %v3139 = vmul.f32 %v2936, 1.442695
        %v3140 = vpow.pop %v3139
        %v3141 = vmul.f32 %v2937, 1.442695
        %v3142 = vpow.pop %v3141
        %v3143 = vmul.f32 %v2938, 1.442695
        %v3144 = vpow.pop %v3143
        %v3145 = vmul.f32 %v2939, 1.442695
        %v3146 = vpow.pop %v3145
        %v3147 = vmul.f32 %v2940, 1.442695
        %v3148 = vpow.pop %v3147
        %v3149 = vmul.f32 %v2941, 1.442695
        %v3150 = vpow.pop %v3149
        %v3151 = vmul.f32 %v2942, 1.442695
        %v3152 = vpow.pop %v3151
        %v3153 = vmul.f32 %v2943, 1.442695
        %v3154 = vpow.pop %v3153
        %v3155 = vmul.f32 %v2944, 1.442695
        %v3156 = vpow.pop %v3155
        %v3157 = vmul.f32 %v2945, 1.442695
        %v3158 = vpow.pop %v3157
        %v3159 = vmul.f32 %v2946, 1.442695
        %v3160 = vpow.pop %v3159
        %v3161 = vmul.f32 %v2947, 1.442695
        %v3162 = vpow.pop %v3161
        %v3163 = vmul.f32 %v2948, 1.442695
        %v3164 = vpow.pop %v3163
        %v3165 = vmul.f32 %v2949, 1.442695
        %v3166 = vpow.pop %v3165
        %v3167 = vmul.f32 %v2950, 1.442695
        %v3168 = vpow.pop %v3167
        %v3169 = vmul.f32 %v2951, 1.442695
        %v3170 = vpow.pop %v3169
        %v3171 = vmul.f32 %v2952, 1.442695
        %v3172 = vpow.pop %v3171
        %v3173 = vmul.f32 %v2953, 1.442695
        %v3174 = vpow.pop %v3173
        %v3175 = vmul.f32 %v2954, 1.442695
        %v3176 = vpow.pop %v3175
        %v3177 = vmul.f32 %v2955, 1.442695
        %v3178 = vpow.pop %v3177
        %v3179 = vmul.f32 %v2956, 1.442695
        %v3180 = vpow.pop %v3179
        %v3181 = vmul.f32 %v2957, 1.442695
        %v3182 = vpow.pop %v3181
        %v3183 = vmul.f32 %v2958, 1.442695
        %v3184 = vpow.pop %v3183
        %v3185 = vmul.f32 %v2959, 1.442695
        %v3186 = vpow.pop %v3185
        %v3187 = vmul.f32 %v2960, 1.442695
        %v3188 = vpow.pop %v3187
        %v3189 = vmul.f32 %v2961, 1.442695
        %v3190 = vpow.pop %v3189
        %v3191 = vmul.f32 %v2962, 1.442695
        %v3192 = vpow.pop %v3191
        %v3193 = vmul.f32 %v2963, 1.442695
        %v3194 = vpow.pop %v3193
        %v3195 = vmul.f32 %v2964, 1.442695
        %v3196 = vpow.pop %v3195
        %v3197 = vmul.f32 %v2965, 1.442695
        %v3198 = vpow.pop %v3197
        %v3199 = vmul.f32 %v2966, 1.442695
        %v3200 = vpow.pop %v3199
        %v3201 = vmul.f32 %v2967, 1.442695
        %v3202 = vpow.pop %v3201
        %v3203 = vmul.f32 %v2968, 1.442695
        %v3204 = vpow.pop %v3203
        %v3205 = vmul.f32 %v2969, 1.442695
        %v3206 = vpow.pop %v3205
        %v3207 = vmul.f32 %v2970, 1.442695
        %v3208 = vpow.pop %v3207
        %v3209 = vmul.f32 %v2971, 1.442695
        %v3210 = vpow.pop %v3209
        %v3211 = vmul.f32 %v2972, 1.442695
        %v3212 = vpow.pop %v3211
        %v3213 = vmul.f32 %v2973, 1.442695
        %v3214 = vpow.pop %v3213
        %v3215 = vmul.f32 %v2974, 1.442695
        %v3216 = vpow.pop %v3215
        %v3217 = vmul.f32 %v2975, 1.442695
        %v3218 = vpow.pop %v3217
        %v3219 = vmul.f32 %v2976, 1.442695
        %v3220 = vpow.pop %v3219
        %v3221 = vmul.f32 %v2977, 1.442695
        %v3222 = vpow.pop %v3221
        %v3223 = vmul.f32 %v2978, 1.442695
        %v3224 = vpow.pop %v3223
        %v3225 = vmul.f32 %v2979, 1.442695
        %v3226 = vpow.pop %v3225
        %v3227 = vmul.f32 %v2980, 1.442695
        %v3228 = vpow.pop %v3227
        %v3229 = vmul.f32 %v2981, 1.442695
        %v3230 = vpow.pop %v3229
        %v3231 = vmul.f32 %v2982, 1.442695
        %v3232 = vpow.pop %v3231
        %v3233 = vmul.f32 %v2983, 1.442695
        %v3234 = vpow.pop %v3233
        %v3235 = vmul.f32 %v2984, 1.442695
        %v3236 = vpow.pop %v3235
        %v3237 = vmul.f32 %v2985, 1.442695
        %v3238 = vpow.pop %v3237
        %v3239 = vmul.f32 %v2986, 1.442695
        %v3240 = vpow.pop %v3239
        %v3241 = vmul.f32 %v2987, 1.442695
        %v3242 = vpow.pop %v3241
        %v3243 = vmul.f32 %v2988, 1.442695
        %v3244 = vpow.pop %v3243
        %v3245 = vmul.f32 %v2989, 1.442695
        %v3246 = vpow.pop %v3245
        %v3247 = vmul.f32 %v2990, 1.442695
        %v3248 = vpow.pop %v3247
        %v3249 = vmul.f32 %v2991, 1.442695
        %v3250 = vpow.pop %v3249
        %v3251 = vmul.f32 %v2992, 1.442695
        %v3252 = vpow.pop %v3251
        %v3253 = vmul.f32 %v2993, 1.442695
        %v3254 = vpow.pop %v3253
        %v3255 = vmul.f32 %v2994, 1.442695
        %v3256 = vpow.pop %v3255
        %v3257 = vmul.f32 %v2995, 1.442695
        %v3258 = vpow.pop %v3257
        %v3259 = vmul.f32 %v2996, 1.442695
        %v3260 = vpow.pop %v3259
        %v3261 = vmul.f32 %v2997, 1.442695
        %v3262 = vpow.pop %v3261
        %v3263 = vmul.f32 %v2998, 1.442695
        %v3264 = vpow.pop %v3263
        %v3265 = vmul.f32 %v2999, 1.442695
        %v3266 = vpow.pop %v3265
        %v3267 = vmul.f32 %v3000, 1.442695
        %v3268 = vpow.pop %v3267
        %v3269 = vmul.f32 %v3001, 1.442695
        %v3270 = vpow.pop %v3269
        %v3271 = vmul.f32 %v3002, 1.442695
        %v3272 = vpow.pop %v3271
        %v3273 = vmul.f32 %v3003, 1.442695
        %v3274 = vpow.pop %v3273
        %v3275 = vmul.f32 %v3004, 1.442695
        %v3276 = vpow.pop %v3275
        %v3277 = vmul.f32 %v3005, 1.442695
        %v3278 = vpow.pop %v3277
        %v3279 = vmul.f32 %v3006, 1.442695
        %v3280 = vpow.pop %v3279
        %v3281 = vmul.f32 %v3007, 1.442695
        %v3282 = vpow.pop %v3281
        %v3283 = vmul.f32 %v3008, 1.442695
        %v3284 = vpow.pop %v3283
        %v3285 = vmul.f32 %v3009, 1.442695
        %v3286 = vpow.pop %v3285
        %v3287 = vmul.f32 %v3010, 1.442695
        %v3288 = vpow.pop %v3287
        %v3289 = vmul.f32 %v3011, 1.442695
        %v3290 = vpow.pop %v3289
        %v3291 = vmul.f32 %v3012, 1.442695
        %v3292 = vpow.pop %v3291
        %v3293 = vmul.f32 %v3013, 1.442695
        %v3294 = vpow.pop %v3293
        %v3295 = vmul.f32 %v3014, 1.442695
        %v3296 = vpow.pop %v3295
        %v3297 = vmul.f32 %v3015, 1.442695
        %v3298 = vpow.pop %v3297
        %v3299 = vmul.f32 %v3016, 1.442695
        %v3300 = vpow.pop %v3299
        %v3301 = vmul.f32 %v3017, 1.442695
        %v3302 = vpow.pop %v3301
        %v3303 = vmul.f32 %v3018, 1.442695
        %v3304 = vpow.pop %v3303
        %v3305 = vmul.f32 %v3019, 1.442695
        %v3306 = vpow.pop %v3305
        %v3307 = vmul.f32 %v3020, 1.442695
        %v3308 = vpow.pop %v3307
        %v3309 = vld [vmem:[#allocation4] sm:$0x7]
        %v3310 = vmul.f32 %v2860, %v3309
        %v3311 = vadd.f32 %v3022, %v3028
        %v3312 = vadd.f32 %v3311, %v3034
        %v3313 = vadd.f32 %v3312, %v3040
        %v3314 = vadd.f32 %v3313, %v3046
        %v3315 = vadd.f32 %v3314, %v3052
        %v3316 = vadd.f32 %v3315, %v3058
        %v3317 = vadd.f32 %v3316, %v3064
        %v3318 = vadd.f32 %v3317, %v3070
        %v3319 = vadd.f32 %v3318, %v3076
        %v3320 = vadd.f32 %v3319, %v3082
        %v3321 = vadd.f32 %v3320, %v3088
        %v3322 = vadd.f32 %v3321, %v3094
        %v3323 = vadd.f32 %v3322, %v3100
        %v3324 = vadd.f32 %v3323, %v3106
        %v3325 = vadd.f32 %v3324, %v3112
        %v3326 = vadd.f32 %v3325, %v3118
        %v3327 = vadd.f32 %v3326, %v3124
        %v3328 = vadd.f32 %v3327, %v3130
        %v3329 = vadd.f32 %v3328, %v3136
        %v3330 = vadd.f32 %v3329, %v3142
        %v3331 = vadd.f32 %v3330, %v3148
        %v3332 = vadd.f32 %v3331, %v3154
        %v3333 = vadd.f32 %v3332, %v3160
        %v3334 = vadd.f32 %v3333, %v3166
        %v3335 = vadd.f32 %v3334, %v3172
        %v3336 = vadd.f32 %v3335, %v3178
        %v3337 = vadd.f32 %v3336, %v3184
        %v3338 = vadd.f32 %v3337, %v3190
        %v3339 = vadd.f32 %v3338, %v3196
        %v3340 = vadd.f32 %v3339, %v3202
        %v3341 = vadd.f32 %v3340, %v3208
        %v3342 = vadd.f32 %v3341, %v3214
        %v3343 = vadd.f32 %v3342, %v3220
        %v3344 = vadd.f32 %v3343, %v3226
        %v3345 = vadd.f32 %v3344, %v3232
        %v3346 = vadd.f32 %v3345, %v3238
        %v3347 = vadd.f32 %v3346, %v3244
        %v3348 = vadd.f32 %v3347, %v3250
        %v3349 = vadd.f32 %v3348, %v3256
        %v3350 = vadd.f32 %v3349, %v3262
        %v3351 = vadd.f32 %v3350, %v3268
        %v3352 = vadd.f32 %v3351, %v3274
        %v3353 = vadd.f32 %v3352, %v3280
        %v3354 = vadd.f32 %v3353, %v3286
        %v3355 = vadd.f32 %v3354, %v3292
        %v3356 = vadd.f32 %v3355, %v3298
        %v3357 = vadd.f32 %v3356, %v3304
        %v3358 = vrot.slane %v3357, 4
        %v3359 = vadd.f32 %v3357, %v3358
        %v3360 = vrot.slane %v3359, 2
        %v3361 = vadd.f32 %v3359, %v3360
        %v3362 = vrot.slane %v3361, 1
        %v3363 = vadd.f32 %v3361, %v3362
        %v3364 = vadd.f32 %v3024, %v3030
        %v3365 = vadd.f32 %v3364, %v3036
        %v3366 = vadd.f32 %v3365, %v3042
        %v3367 = vadd.f32 %v3366, %v3048
        %v3368 = vadd.f32 %v3367, %v3054
        %v3369 = vadd.f32 %v3368, %v3060
        %v3370 = vadd.f32 %v3369, %v3066
        %v3371 = vadd.f32 %v3370, %v3072
        %v3372 = vadd.f32 %v3371, %v3078
        %v3373 = vadd.f32 %v3372, %v3084
        %v3374 = vadd.f32 %v3373, %v3090
        %v3375 = vadd.f32 %v3374, %v3096
        %v3376 = vadd.f32 %v3375, %v3102
        %v3377 = vadd.f32 %v3376, %v3108
        %v3378 = vadd.f32 %v3377, %v3114
        %v3379 = vadd.f32 %v3378, %v3120
        %v3380 = vadd.f32 %v3379, %v3126
        %v3381 = vadd.f32 %v3380, %v3132
        %v3382 = vadd.f32 %v3381, %v3138
        %v3383 = vadd.f32 %v3382, %v3144
        %v3384 = vadd.f32 %v3383, %v3150
        %v3385 = vadd.f32 %v3384, %v3156
        %v3386 = vadd.f32 %v3385, %v3162
        %v3387 = vadd.f32 %v3386, %v3168
        %v3388 = vadd.f32 %v3387, %v3174
        %v3389 = vadd.f32 %v3388, %v3180
        %v3390 = vadd.f32 %v3389, %v3186
        %v3391 = vadd.f32 %v3390, %v3192
        %v3392 = vadd.f32 %v3391, %v3198
        %v3393 = vadd.f32 %v3392, %v3204
        %v3394 = vadd.f32 %v3393, %v3210
        %v3395 = vadd.f32 %v3394, %v3216
        %v3396 = vadd.f32 %v3395, %v3222
        %v3397 = vadd.f32 %v3396, %v3228
        %v3398 = vadd.f32 %v3397, %v3234
        %v3399 = vadd.f32 %v3398, %v3240
        %v3400 = vadd.f32 %v3399, %v3246
        %v3401 = vadd.f32 %v3400, %v3252
        %v3402 = vadd.f32 %v3401, %v3258
        %v3403 = vadd.f32 %v3402, %v3264
        %v3404 = vadd.f32 %v3403, %v3270
        %v3405 = vadd.f32 %v3404, %v3276
        %v3406 = vadd.f32 %v3405, %v3282
        %v3407 = vadd.f32 %v3406, %v3288
        %v3408 = vadd.f32 %v3407, %v3294
        %v3409 = vadd.f32 %v3408, %v3300
        %v3410 = vadd.f32 %v3409, %v3306
        %v3411 = vrot.slane %v3410, 4
        %v3412 = vadd.f32 %v3410, %v3411
        %v3413 = vrot.slane %v3412, 2
        %v3414 = vadd.f32 %v3412, %v3413
        %v3415 = vrot.slane %v3414, 1
        %v3416 = vadd.f32 %v3414, %v3415
        %v3417 = vadd.f32 %v3026, %v3032
        %v3418 = vadd.f32 %v3417, %v3038
        %v3419 = vadd.f32 %v3418, %v3044
        %v3420 = vadd.f32 %v3419, %v3050
        %v3421 = vadd.f32 %v3420, %v3056
        %v3422 = vadd.f32 %v3421, %v3062
        %v3423 = vadd.f32 %v3422, %v3068
        %v3424 = vadd.f32 %v3423, %v3074
        %v3425 = vadd.f32 %v3424, %v3080
        %v3426 = vadd.f32 %v3425, %v3086
        %v3427 = vadd.f32 %v3426, %v3092
        %v3428 = vadd.f32 %v3427, %v3098
        %v3429 = vadd.f32 %v3428, %v3104
        %v3430 = vadd.f32 %v3429, %v3110
        %v3431 = vadd.f32 %v3430, %v3116
        %v3432 = vadd.f32 %v3431, %v3122
        %v3433 = vadd.f32 %v3432, %v3128
        %v3434 = vadd.f32 %v3433, %v3134
        %v3435 = vadd.f32 %v3434, %v3140
        %v3436 = vadd.f32 %v3435, %v3146
        %v3437 = vadd.f32 %v3436, %v3152
        %v3438 = vadd.f32 %v3437, %v3158
        %v3439 = vadd.f32 %v3438, %v3164
        %v3440 = vadd.f32 %v3439, %v3170
        %v3441 = vadd.f32 %v3440, %v3176
        %v3442 = vadd.f32 %v3441, %v3182
        %v3443 = vadd.f32 %v3442, %v3188
        %v3444 = vadd.f32 %v3443, %v3194
        %v3445 = vadd.f32 %v3444, %v3200
        %v3446 = vadd.f32 %v3445, %v3206
        %v3447 = vadd.f32 %v3446, %v3212
        %v3448 = vadd.f32 %v3447, %v3218
        %v3449 = vadd.f32 %v3448, %v3224
        %v3450 = vadd.f32 %v3449, %v3230
        %v3451 = vadd.f32 %v3450, %v3236
        %v3452 = vadd.f32 %v3451, %v3242
        %v3453 = vadd.f32 %v3452, %v3248
        %v3454 = vadd.f32 %v3453, %v3254
        %v3455 = vadd.f32 %v3454, %v3260
        %v3456 = vadd.f32 %v3455, %v3266
        %v3457 = vadd.f32 %v3456, %v3272
        %v3458 = vadd.f32 %v3457, %v3278
        %v3459 = vadd.f32 %v3458, %v3284
        %v3460 = vadd.f32 %v3459, %v3290
        %v3461 = vadd.f32 %v3460, %v3296
        %v3462 = vadd.f32 %v3461, %v3302
        %v3463 = vadd.f32 %v3462, %v3308
        %v3464 = vrot.slane %v3463, 4
        %v3465 = vadd.f32 %v3463, %v3464
        %v3466 = vrot.slane %v3465, 2
        %v3467 = vadd.f32 %v3465, %v3466
        %v3468 = vrot.slane %v3467, 1
        %v3469 = vadd.f32 %v3467, %v3468
        %v3473 = vcombine.low %v3363, %v3416
        %v3475 = vunpack.c.l.s4 1966171168
        %v3476 = vunpack.c.0.s8 %v3475
        %v3477 = vlaneseq
        %v3478 = vshrl.u32 %v3477, 7
        %v3479 = vsub.s32 %v3476, %v3478
        %v3480 = vrot.slane %v3473, %v3479
        %v3482 = vunpack.c.l.s4 1966171168
        %v3483 = vunpack.c.0.s8 %v3482
        %v3484 = vlaneseq
        %v3485 = vshrl.u32 %v3484, 7
        %v3486 = vsub.s32 %v3483, %v3485
        %v3487 = vrot.slane %v3469, %v3486
        %v3488 = vcombine.low %v3480, %v3487
        %v3490 = vunpack.c.l.s4 1966171168
        %v3491 = vunpack.c.0.s8 %v3490
        %v3492 = vlaneseq
        %v3493 = vshrl.u32 %v3492, 7
        %v3494 = vsub.s32 %v3491, %v3493
        %v3495 = vrot.slane %v3488, %v3494
        %v3497 = vadd.f32 %v3310, %v3495
        %v3498 = vlaneseq
        %vm3499 = vcmp.ge.s32.totalorder %v3498, 0
        %vm3500 = vcmp.lt.s32.totalorder %v3498, 384
        %vm3501 = vmand %vm3499, %vm3500
        %3502 = vst.msk [vmem:[#allocation4] sm:$0x7] %vm3501, %v3497
        %v3503 = vld [vmem:[#allocation5] sm:$0xff]
        %v3504 = vld [vmem:[#allocation5 + $0x8] sm:$0xff]
        %v3505 = vld [vmem:[#allocation5 + $0x10] sm:$0xff]
        %v3506 = vld [vmem:[#allocation5 + $0x18] sm:$0xff]
        %v3507 = vld [vmem:[#allocation5 + $0x20] sm:$0xff]
        %v3508 = vld [vmem:[#allocation5 + $0x28] sm:$0xff]
        %v3509 = vld [vmem:[#allocation5 + $0x30] sm:$0xff]
        %v3510 = vld [vmem:[#allocation5 + $0x38] sm:$0xff]
        %v3511 = vld [vmem:[#allocation5 + $0x40] sm:$0xff]
        %v3512 = vld [vmem:[#allocation5 + $0x48] sm:$0xff]
        %v3513 = vld [vmem:[#allocation5 + $0x50] sm:$0xff]
        %v3514 = vld [vmem:[#allocation5 + $0x58] sm:$0xff]
        %v3515 = vld [vmem:[#allocation5 + $0x60] sm:$0xff]
        %v3516 = vld [vmem:[#allocation5 + $0x68] sm:$0xff]
        %v3517 = vld [vmem:[#allocation5 + $0x70] sm:$0xff]
        %v3518 = vld [vmem:[#allocation5 + $0x78] sm:$0xff]
        %v3519 = vld [vmem:[#allocation5 + $0x80] sm:$0xff]
        %v3520 = vld [vmem:[#allocation5 + $0x88] sm:$0xff]
        %v3521 = vld [vmem:[#allocation5 + $0x90] sm:$0xff]
        %v3522 = vld [vmem:[#allocation5 + $0x98] sm:$0xff]
        %v3523 = vld [vmem:[#allocation5 + $0xa0] sm:$0xff]
        %v3524 = vld [vmem:[#allocation5 + $0xa8] sm:$0xff]
        %v3525 = vld [vmem:[#allocation5 + $0xb0] sm:$0xff]
        %v3526 = vld [vmem:[#allocation5 + $0xb8] sm:$0xff]
        %v3527 = vld [vmem:[#allocation5 + $0xc0] sm:$0xff]
        %v3528 = vld [vmem:[#allocation5 + $0xc8] sm:$0xff]
        %v3529 = vld [vmem:[#allocation5 + $0xd0] sm:$0xff]
        %v3530 = vld [vmem:[#allocation5 + $0xd8] sm:$0xff]
        %v3531 = vld [vmem:[#allocation5 + $0xe0] sm:$0xff]
        %v3532 = vld [vmem:[#allocation5 + $0xe8] sm:$0xff]
        %v3533 = vld [vmem:[#allocation5 + $0xf0] sm:$0xff]
        %v3534 = vld [vmem:[#allocation5 + $0xf8] sm:$0xff]
        %v3535 = vld [vmem:[#allocation5 + $0x100] sm:$0xff]
        %v3536 = vld [vmem:[#allocation5 + $0x108] sm:$0xff]
        %v3537 = vld [vmem:[#allocation5 + $0x110] sm:$0xff]
        %v3538 = vld [vmem:[#allocation5 + $0x118] sm:$0xff]
        %v3539 = vld [vmem:[#allocation5 + $0x120] sm:$0xff]
        %v3540 = vld [vmem:[#allocation5 + $0x128] sm:$0xff]
        %v3541 = vld [vmem:[#allocation5 + $0x130] sm:$0xff]
        %v3542 = vld [vmem:[#allocation5 + $0x138] sm:$0xff]
        %v3543 = vld [vmem:[#allocation5 + $0x140] sm:$0xff]
        %v3544 = vld [vmem:[#allocation5 + $0x148] sm:$0xff]
        %v3545 = vld [vmem:[#allocation5 + $0x150] sm:$0xff]
        %v3546 = vld [vmem:[#allocation5 + $0x158] sm:$0xff]
        %v3547 = vld [vmem:[#allocation5 + $0x160] sm:$0xff]
        %v3548 = vld [vmem:[#allocation5 + $0x168] sm:$0xff]
        %v3549 = vld [vmem:[#allocation5 + $0x170] sm:$0xff]
        %v3550 = vld [vmem:[#allocation5 + $0x178] sm:$0xff]
        %v3552 = vlaneseq
        %v3553 = vshrl.u32 %v3552, 7
        %v3554 = vsub.s32 0, %v3553
        %v3555 = vrot.slane %v2860, %v3554
        %v3556 = vlaneseq
        %v3557 = vshrl.u32 %v3556, 7
        %v3558 = vsub.s32 1, %v3557
        %v3559 = vrot.slane %v2860, %v3558
        %v3560 = vlaneseq
        %v3561 = vshrl.u32 %v3560, 7
        %v3562 = vsub.s32 2, %v3561
        %v3563 = vrot.slane %v2860, %v3562
        %v3567 = vmul.f32 %v3555, %v3503
        %v3568 = vmul.f32 %v3559, %v3504
        %v3569 = vmul.f32 %v3563, %v3505
        %v3570 = vmul.f32 %v3555, %v3506
        %v3571 = vmul.f32 %v3559, %v3507
        %v3572 = vmul.f32 %v3563, %v3508
        %v3573 = vmul.f32 %v3555, %v3509
        %v3574 = vmul.f32 %v3559, %v3510
        %v3575 = vmul.f32 %v3563, %v3511
        %v3576 = vmul.f32 %v3555, %v3512
        %v3577 = vmul.f32 %v3559, %v3513
        %v3578 = vmul.f32 %v3563, %v3514
        %v3579 = vmul.f32 %v3555, %v3515
        %v3580 = vmul.f32 %v3559, %v3516
        %v3581 = vmul.f32 %v3563, %v3517
        %v3582 = vmul.f32 %v3555, %v3518
        %v3583 = vmul.f32 %v3559, %v3519
        %v3584 = vmul.f32 %v3563, %v3520
        %v3585 = vmul.f32 %v3555, %v3521
        %v3586 = vmul.f32 %v3559, %v3522
        %v3587 = vmul.f32 %v3563, %v3523
        %v3588 = vmul.f32 %v3555, %v3524
        %v3589 = vmul.f32 %v3559, %v3525
        %v3590 = vmul.f32 %v3563, %v3526
        %v3591 = vmul.f32 %v3555, %v3527
        %v3592 = vmul.f32 %v3559, %v3528
        %v3593 = vmul.f32 %v3563, %v3529
        %v3594 = vmul.f32 %v3555, %v3530
        %v3595 = vmul.f32 %v3559, %v3531
        %v3596 = vmul.f32 %v3563, %v3532
        %v3597 = vmul.f32 %v3555, %v3533
        %v3598 = vmul.f32 %v3559, %v3534
        %v3599 = vmul.f32 %v3563, %v3535
        %v3600 = vmul.f32 %v3555, %v3536
        %v3601 = vmul.f32 %v3559, %v3537
        %v3602 = vmul.f32 %v3563, %v3538
        %v3603 = vmul.f32 %v3555, %v3539
        %v3604 = vmul.f32 %v3559, %v3540
        %v3605 = vmul.f32 %v3563, %v3541
        %v3606 = vmul.f32 %v3555, %v3542
        %v3607 = vmul.f32 %v3559, %v3543
        %v3608 = vmul.f32 %v3563, %v3544
        %v3609 = vmul.f32 %v3555, %v3545
        %v3610 = vmul.f32 %v3559, %v3546
        %v3611 = vmul.f32 %v3563, %v3547
        %v3612 = vmul.f32 %v3555, %v3548
        %v3613 = vmul.f32 %v3559, %v3549
        %v3614 = vmul.f32 %v3563, %v3550
        %v3615 = vpack.c.bf16 %v3028, %v3022
        %v3616 = vpack.c.bf16 %v3030, %v3024
        %v3617 = vpack.c.bf16 %v3032, %v3026
        %v3618 = vpack.c.bf16 %v3040, %v3034
        %v3619 = vpack.c.bf16 %v3042, %v3036
        %v3620 = vpack.c.bf16 %v3044, %v3038
        %v3621 = vpack.c.bf16 %v3052, %v3046
        %v3622 = vpack.c.bf16 %v3054, %v3048
        %v3623 = vpack.c.bf16 %v3056, %v3050
        %v3624 = vpack.c.bf16 %v3064, %v3058
        %v3625 = vpack.c.bf16 %v3066, %v3060
        %v3626 = vpack.c.bf16 %v3068, %v3062
        %v3627 = vpack.c.bf16 %v3076, %v3070
        %v3628 = vpack.c.bf16 %v3078, %v3072
        %v3629 = vpack.c.bf16 %v3080, %v3074
        %v3630 = vpack.c.bf16 %v3088, %v3082
        %v3631 = vpack.c.bf16 %v3090, %v3084
        %v3632 = vpack.c.bf16 %v3092, %v3086
        %v3633 = vpack.c.bf16 %v3100, %v3094
        %v3634 = vpack.c.bf16 %v3102, %v3096
        %v3635 = vpack.c.bf16 %v3104, %v3098
        %v3636 = vpack.c.bf16 %v3112, %v3106
        %v3637 = vpack.c.bf16 %v3114, %v3108
        %v3638 = vpack.c.bf16 %v3116, %v3110
        %v3639 = vpack.c.bf16 %v3124, %v3118
        %v3640 = vpack.c.bf16 %v3126, %v3120
        %v3641 = vpack.c.bf16 %v3128, %v3122
        %v3642 = vpack.c.bf16 %v3136, %v3130
        %v3643 = vpack.c.bf16 %v3138, %v3132
        %v3644 = vpack.c.bf16 %v3140, %v3134
        %v3645 = vpack.c.bf16 %v3148, %v3142
        %v3646 = vpack.c.bf16 %v3150, %v3144
        %v3647 = vpack.c.bf16 %v3152, %v3146
        %v3648 = vpack.c.bf16 %v3160, %v3154
        %v3649 = vpack.c.bf16 %v3162, %v3156
        %v3650 = vpack.c.bf16 %v3164, %v3158
        %v3651 = vpack.c.bf16 %v3172, %v3166
        %v3652 = vpack.c.bf16 %v3174, %v3168
        %v3653 = vpack.c.bf16 %v3176, %v3170
        %v3654 = vpack.c.bf16 %v3184, %v3178
        %v3655 = vpack.c.bf16 %v3186, %v3180
        %v3656 = vpack.c.bf16 %v3188, %v3182
        %v3657 = vpack.c.bf16 %v3196, %v3190
        %v3658 = vpack.c.bf16 %v3198, %v3192
        %v3659 = vpack.c.bf16 %v3200, %v3194
        %v3660 = vpack.c.bf16 %v3208, %v3202
        %v3661 = vpack.c.bf16 %v3210, %v3204
        %v3662 = vpack.c.bf16 %v3212, %v3206
        %v3663 = vpack.c.bf16 %v3220, %v3214
        %v3664 = vpack.c.bf16 %v3222, %v3216
        %v3665 = vpack.c.bf16 %v3224, %v3218
        %v3666 = vpack.c.bf16 %v3232, %v3226
        %v3667 = vpack.c.bf16 %v3234, %v3228
        %v3668 = vpack.c.bf16 %v3236, %v3230
        %v3669 = vpack.c.bf16 %v3244, %v3238
        %v3670 = vpack.c.bf16 %v3246, %v3240
        %v3671 = vpack.c.bf16 %v3248, %v3242
        %v3672 = vpack.c.bf16 %v3256, %v3250
        %v3673 = vpack.c.bf16 %v3258, %v3252
        %v3674 = vpack.c.bf16 %v3260, %v3254
        %v3675 = vpack.c.bf16 %v3268, %v3262
        %v3676 = vpack.c.bf16 %v3270, %v3264
        %v3677 = vpack.c.bf16 %v3272, %v3266
        %v3678 = vpack.c.bf16 %v3280, %v3274
        %v3679 = vpack.c.bf16 %v3282, %v3276
        %v3680 = vpack.c.bf16 %v3284, %v3278
        %v3681 = vpack.c.bf16 %v3292, %v3286
        %v3682 = vpack.c.bf16 %v3294, %v3288
        %v3683 = vpack.c.bf16 %v3296, %v3290
        %v3684 = vpack.c.bf16 %v3304, %v3298
        %v3685 = vpack.c.bf16 %v3306, %v3300
        %v3686 = vpack.c.bf16 %v3308, %v3302
        %3687 = vmatprep.subr.bf16.mxu0 %v3616
        %3688 = vmatpush1.bf16.msra.mxu0 %v3615
        %3689 = vmatprep.subr.bf16.mxu0 %v3619
        %3690 = vmatpush1.bf16.msra.mxu0 %v3618
        %3691 = vmatprep.subr.bf16.mxu0 %v3622
        %3692 = vmatpush1.bf16.msra.mxu0 %v3621
        %3693 = vmatprep.subr.bf16.mxu0 %v3625
        %3694 = vmatpush1.bf16.msra.mxu0 %v3624
        %3695 = vmatprep.subr.bf16.mxu0 %v3628
        %3696 = vmatpush1.bf16.msra.mxu0 %v3627
        %3697 = vmatprep.subr.bf16.mxu0 %v3631
        %3698 = vmatpush1.bf16.msra.mxu0 %v3630
        %3699 = vmatprep.subr.bf16.mxu0 %v3634
        %3700 = vmatpush1.bf16.msra.mxu0 %v3633
        %3701 = vmatprep.subr.bf16.mxu0 %v3637
        %3702 = vmatpush1.bf16.msra.mxu0 %v3636
        %3703 = vmatprep.subr.bf16.mxu0 %v3640
        %3704 = vmatpush1.bf16.msra.mxu0 %v3639
        %3705 = vmatprep.subr.bf16.mxu0 %v3643
        %3706 = vmatpush1.bf16.msra.mxu0 %v3642
        %3707 = vmatprep.subr.bf16.mxu0 %v3646
        %3708 = vmatpush1.bf16.msra.mxu0 %v3645
        %3709 = vmatprep.subr.bf16.mxu0 %v3649
        %3710 = vmatpush1.bf16.msra.mxu0 %v3648
        %3711 = vmatprep.subr.bf16.mxu0 %v3652
        %3712 = vmatpush1.bf16.msra.mxu0 %v3651
        %3713 = vmatprep.subr.bf16.mxu0 %v3655
        %3714 = vmatpush1.bf16.msra.mxu0 %v3654
        %3715 = vmatprep.subr.bf16.mxu0 %v3658
        %3716 = vmatpush1.bf16.msra.mxu0 %v3657
        %3717 = vmatprep.subr.bf16.mxu0 %v3661
        %3718 = vmatpush1.bf16.msra.mxu0 %v3660
        %3719 = vmatprep.mubr.bf16.mxu0 %v1730
        %3720 = vmatmul.mubr.bf16.gmra.mrb[0].mxu0 %v1729
        %v3721 = vpop.f32.mrb[0].mxu0
        %v3722 = vadd.f32 0.0, %v3721
        %v3723 = vpop.f32.mrb[0].mxu0
        %v3724 = vadd.f32 0.0, %v3723
        %v3725 = vpop.f32.mrb[0].mxu0
        %v3726 = vadd.f32 0.0, %v3725
        %v3727 = vpop.f32.mrb[0].mxu0
        %v3728 = vadd.f32 0.0, %v3727
        %3729 = vmatprep.mubr.bf16.mxu0 %v1733
        %3730 = vmatmul.mubr.bf16.gmra.mrb[0].mxu0 %v1732
        %v3731 = vpop.f32.mrb[0].mxu0
        %v3732 = vadd.f32 0.0, %v3731
        %v3733 = vpop.f32.mrb[0].mxu0
        %v3734 = vadd.f32 0.0, %v3733
        %v3735 = vpop.f32.mrb[0].mxu0
        %v3736 = vadd.f32 0.0, %v3735
        %v3737 = vpop.f32.mrb[0].mxu0
        %v3738 = vadd.f32 0.0, %v3737
        %3739 = vmatprep.mubr.bf16.mxu0 %v1736
        %3740 = vmatmul.mubr.bf16.gmra.mrb[0].mxu0 %v1735
        %v3741 = vpop.f32.mrb[0].mxu0
        %v3742 = vadd.f32 0.0, %v3741
        %v3743 = vpop.f32.mrb[0].mxu0
        %v3744 = vadd.f32 0.0, %v3743
        %v3745 = vpop.f32.mrb[0].mxu0
        %v3746 = vadd.f32 0.0, %v3745
        %v3747 = vpop.f32.mrb[0].mxu0
        %v3748 = vadd.f32 0.0, %v3747
        %3749 = vmatprep.mubr.bf16.mxu0 %v1739
        %3750 = vmatmul.mubr.bf16.gmra.mrb[0].mxu0 %v1738
        %v3751 = vpop.f32.mrb[0].mxu0
        %v3752 = vadd.f32 0.0, %v3751
        %v3753 = vpop.f32.mrb[0].mxu0
        %v3754 = vadd.f32 0.0, %v3753
        %v3755 = vpop.f32.mrb[0].mxu0
        %v3756 = vadd.f32 0.0, %v3755
        %v3757 = vpop.f32.mrb[0].mxu0
        %v3758 = vadd.f32 0.0, %v3757
        %3759 = vmatprep.mubr.bf16.mxu0 %v1742
        %3760 = vmatmul.mubr.bf16.gmra.mrb[0].mxu0 %v1741
        %v3761 = vpop.f32.mrb[0].mxu0
        %v3762 = vadd.f32 0.0, %v3761
        %v3763 = vpop.f32.mrb[0].mxu0
        %v3764 = vadd.f32 0.0, %v3763
        %v3765 = vpop.f32.mrb[0].mxu0
        %v3766 = vadd.f32 0.0, %v3765
        %v3767 = vpop.f32.mrb[0].mxu0
        %v3768 = vadd.f32 0.0, %v3767
        %3769 = vmatprep.mubr.bf16.mxu0 %v1745
        %3770 = vmatmul.mubr.bf16.gmra.mrb[0].mxu0 %v1744
        %v3771 = vpop.f32.mrb[0].mxu0
        %v3772 = vadd.f32 0.0, %v3771
        %v3773 = vpop.f32.mrb[0].mxu0
        %v3774 = vadd.f32 0.0, %v3773
        %v3775 = vpop.f32.mrb[0].mxu0
        %v3776 = vadd.f32 0.0, %v3775
        %v3777 = vpop.f32.mrb[0].mxu0
        %v3778 = vadd.f32 0.0, %v3777
        %3779 = vmatprep.mubr.bf16.mxu0 %v1748
        %3780 = vmatmul.mubr.bf16.gmra.mrb[0].mxu0 %v1747
        %v3781 = vpop.f32.mrb[0].mxu0
        %v3782 = vadd.f32 0.0, %v3781
        %v3783 = vpop.f32.mrb[0].mxu0
        %v3784 = vadd.f32 0.0, %v3783
        %v3785 = vpop.f32.mrb[0].mxu0
        %v3786 = vadd.f32 0.0, %v3785
        %v3787 = vpop.f32.mrb[0].mxu0
        %v3788 = vadd.f32 0.0, %v3787
        %3789 = vmatprep.mubr.bf16.mxu0 %v1751
        %3790 = vmatmul.mubr.bf16.gmra.mrb[0].mxu0 %v1750
        %v3791 = vpop.f32.mrb[0].mxu0
        %v3792 = vadd.f32 0.0, %v3791
        %v3793 = vpop.f32.mrb[0].mxu0
        %v3794 = vadd.f32 0.0, %v3793
        %v3795 = vpop.f32.mrb[0].mxu0
        %v3796 = vadd.f32 0.0, %v3795
        %v3797 = vpop.f32.mrb[0].mxu0
        %v3798 = vadd.f32 0.0, %v3797
        %3799 = vdwg.mxu0
        %3800 = vmatprep.subr.bf16.mxu0 %v3664
        %3801 = vmatpush1.bf16.msra.mxu0 %v3663
        %3802 = vmatprep.subr.bf16.mxu0 %v3667
        %3803 = vmatpush1.bf16.msra.mxu0 %v3666
        %3804 = vmatprep.subr.bf16.mxu0 %v3670
        %3805 = vmatpush1.bf16.msra.mxu0 %v3669
        %3806 = vmatprep.subr.bf16.mxu0 %v3673
        %3807 = vmatpush1.bf16.msra.mxu0 %v3672
        %3808 = vmatprep.subr.bf16.mxu0 %v3676
        %3809 = vmatpush1.bf16.msra.mxu0 %v3675
        %3810 = vmatprep.subr.bf16.mxu0 %v3679
        %3811 = vmatpush1.bf16.msra.mxu0 %v3678
        %3812 = vmatprep.subr.bf16.mxu0 %v3682
        %3813 = vmatpush1.bf16.msra.mxu0 %v3681
        %3814 = vmatprep.subr.bf16.mxu0 %v3685
        %3815 = vmatpush1.bf16.msra.mxu0 %v3684
        %3816 = vmatprep.subr.bf16.mxu0 0
        %3817 = vmatpush1.bf16.msra.mxu0 0
        %3818 = vmatprep.subr.bf16.mxu0 0
        %3819 = vmatpush1.bf16.msra.mxu0 0
        %3820 = vmatprep.subr.bf16.mxu0 0
        %3821 = vmatpush1.bf16.msra.mxu0 0
        %3822 = vmatprep.subr.bf16.mxu0 0
        %3823 = vmatpush1.bf16.msra.mxu0 0
        %3824 = vmatprep.subr.bf16.mxu0 0
        %3825 = vmatpush1.bf16.msra.mxu0 0
        %3826 = vmatprep.subr.bf16.mxu0 0
        %3827 = vmatpush1.bf16.msra.mxu0 0
        %3828 = vmatprep.subr.bf16.mxu0 0
        %3829 = vmatpush1.bf16.msra.mxu0 0
        %3830 = vmatprep.subr.bf16.mxu0 0
        %3831 = vmatpush1.bf16.msra.mxu0 0
        %3832 = vmatprep.mubr.bf16.mxu0 0
        %3833 = vmatmul.mubr.bf16.gmra.mrb[0].mxu0 %v1731
        %v3834 = vpop.f32.mrb[0].mxu0
        %v3835 = vadd.f32 %v3722, %v3834
        %v3836 = vpop.f32.mrb[0].mxu0
        %v3837 = vadd.f32 %v3724, %v3836
        %v3838 = vpop.f32.mrb[0].mxu0
        %v3839 = vadd.f32 %v3726, %v3838
        %v3840 = vpop.f32.mrb[0].mxu0
        %v3841 = vadd.f32 %v3728, %v3840
        %3842 = vmatprep.mubr.bf16.mxu0 0
        %3843 = vmatmul.mubr.bf16.gmra.mrb[0].mxu0 %v1734
        %v3844 = vpop.f32.mrb[0].mxu0
        %v3845 = vadd.f32 %v3732, %v3844
        %v3846 = vpop.f32.mrb[0].mxu0
        %v3847 = vadd.f32 %v3734, %v3846
        %v3848 = vpop.f32.mrb[0].mxu0
        %v3849 = vadd.f32 %v3736, %v3848
        %v3850 = vpop.f32.mrb[0].mxu0
        %v3851 = vadd.f32 %v3738, %v3850
        %3852 = vmatprep.mubr.bf16.mxu0 0
        %3853 = vmatmul.mubr.bf16.gmra.mrb[0].mxu0 %v1737
        %v3854 = vpop.f32.mrb[0].mxu0
        %v3855 = vadd.f32 %v3742, %v3854
        %v3856 = vpop.f32.mrb[0].mxu0
        %v3857 = vadd.f32 %v3744, %v3856
        %v3858 = vpop.f32.mrb[0].mxu0
        %v3859 = vadd.f32 %v3746, %v3858
        %v3860 = vpop.f32.mrb[0].mxu0
        %v3861 = vadd.f32 %v3748, %v3860
        %3862 = vmatprep.mubr.bf16.mxu0 0
        %3863 = vmatmul.mubr.bf16.gmra.mrb[0].mxu0 %v1740
        %v3864 = vpop.f32.mrb[0].mxu0
        %v3865 = vadd.f32 %v3752, %v3864
        %v3866 = vpop.f32.mrb[0].mxu0
        %v3867 = vadd.f32 %v3754, %v3866
        %v3868 = vpop.f32.mrb[0].mxu0
        %v3869 = vadd.f32 %v3756, %v3868
        %v3870 = vpop.f32.mrb[0].mxu0
        %v3871 = vadd.f32 %v3758, %v3870
        %3872 = vmatprep.mubr.bf16.mxu0 0
        %3873 = vmatmul.mubr.bf16.gmra.mrb[0].mxu0 %v1743
        %v3874 = vpop.f32.mrb[0].mxu0
        %v3875 = vadd.f32 %v3762, %v3874
        %v3876 = vpop.f32.mrb[0].mxu0
        %v3877 = vadd.f32 %v3764, %v3876
        %v3878 = vpop.f32.mrb[0].mxu0
        %v3879 = vadd.f32 %v3766, %v3878
        %v3880 = vpop.f32.mrb[0].mxu0
        %v3881 = vadd.f32 %v3768, %v3880
        %3882 = vmatprep.mubr.bf16.mxu0 0
        %3883 = vmatmul.mubr.bf16.gmra.mrb[0].mxu0 %v1746
        %v3884 = vpop.f32.mrb[0].mxu0
        %v3885 = vadd.f32 %v3772, %v3884
        %v3886 = vpop.f32.mrb[0].mxu0
        %v3887 = vadd.f32 %v3774, %v3886
        %v3888 = vpop.f32.mrb[0].mxu0
        %v3889 = vadd.f32 %v3776, %v3888
        %v3890 = vpop.f32.mrb[0].mxu0
        %v3891 = vadd.f32 %v3778, %v3890
        %3892 = vmatprep.mubr.bf16.mxu0 0
        %3893 = vmatmul.mubr.bf16.gmra.mrb[0].mxu0 %v1749
        %v3894 = vpop.f32.mrb[0].mxu0
        %v3895 = vadd.f32 %v3782, %v3894
        %v3896 = vpop.f32.mrb[0].mxu0
        %v3897 = vadd.f32 %v3784, %v3896
        %v3898 = vpop.f32.mrb[0].mxu0
        %v3899 = vadd.f32 %v3786, %v3898
        %v3900 = vpop.f32.mrb[0].mxu0
        %v3901 = vadd.f32 %v3788, %v3900
        %3902 = vmatprep.mubr.bf16.mxu0 0
        %3903 = vmatmul.mubr.bf16.gmra.mrb[0].mxu0 %v1752
        %v3904 = vpop.f32.mrb[0].mxu0
        %v3905 = vadd.f32 %v3792, %v3904
        %v3906 = vpop.f32.mrb[0].mxu0
        %v3907 = vadd.f32 %v3794, %v3906
        %v3908 = vpop.f32.mrb[0].mxu0
        %v3909 = vadd.f32 %v3796, %v3908
        %v3910 = vpop.f32.mrb[0].mxu0
        %v3911 = vadd.f32 %v3798, %v3910
        %3912 = vdwg.mxu0
        %3913 = vmatprep.subr.bf16.mxu0 0
        %3914 = vmatpush1.bf16.msra.mxu0 %v3617
        %3915 = vmatprep.subr.bf16.mxu0 0
        %3916 = vmatpush1.bf16.msra.mxu0 %v3620
        %3917 = vmatprep.subr.bf16.mxu0 0
        %3918 = vmatpush1.bf16.msra.mxu0 %v3623
        %3919 = vmatprep.subr.bf16.mxu0 0
        %3920 = vmatpush1.bf16.msra.mxu0 %v3626
        %3921 = vmatprep.subr.bf16.mxu0 0
        %3922 = vmatpush1.bf16.msra.mxu0 %v3629
        %3923 = vmatprep.subr.bf16.mxu0 0
        %3924 = vmatpush1.bf16.msra.mxu0 %v3632
        %3925 = vmatprep.subr.bf16.mxu0 0
        %3926 = vmatpush1.bf16.msra.mxu0 %v3635
        %3927 = vmatprep.subr.bf16.mxu0 0
        %3928 = vmatpush1.bf16.msra.mxu0 %v3638
        %3929 = vmatprep.subr.bf16.mxu0 0
        %3930 = vmatpush1.bf16.msra.mxu0 %v3641
        %3931 = vmatprep.subr.bf16.mxu0 0
        %3932 = vmatpush1.bf16.msra.mxu0 %v3644
        %3933 = vmatprep.subr.bf16.mxu0 0
        %3934 = vmatpush1.bf16.msra.mxu0 %v3647
        %3935 = vmatprep.subr.bf16.mxu0 0
        %3936 = vmatpush1.bf16.msra.mxu0 %v3650
        %3937 = vmatprep.subr.bf16.mxu0 0
        %3938 = vmatpush1.bf16.msra.mxu0 %v3653
        %3939 = vmatprep.subr.bf16.mxu0 0
        %3940 = vmatpush1.bf16.msra.mxu0 %v3656
        %3941 = vmatprep.subr.bf16.mxu0 0
        %3942 = vmatpush1.bf16.msra.mxu0 %v3659
        %3943 = vmatprep.subr.bf16.mxu0 0
        %3944 = vmatpush1.bf16.msra.mxu0 %v3662
        %3945 = vmatprep.mubr.bf16.mxu0 %v1730
        %3946 = vmatmul.mubr.bf16.gmra.mrb[0].mxu0 %v1729
        %v3947 = vpop.f32.mrb[0].mxu0
        %v3948 = vadd.f32 0.0, %v3947
        %v3949 = vpop.f32.mrb[0].mxu0
        %v3950 = vpop.f32.mrb[0].mxu0
        %v3951 = vadd.f32 0.0, %v3950
        %v3952 = vpop.f32.mrb[0].mxu0
        %3953 = vmatprep.mubr.bf16.mxu0 %v1733
        %3954 = vmatmul.mubr.bf16.gmra.mrb[0].mxu0 %v1732
        %v3955 = vpop.f32.mrb[0].mxu0
        %v3956 = vadd.f32 0.0, %v3955
        %v3957 = vpop.f32.mrb[0].mxu0
        %v3958 = vpop.f32.mrb[0].mxu0
        %v3959 = vadd.f32 0.0, %v3958
        %v3960 = vpop.f32.mrb[0].mxu0
        %3961 = vmatprep.mubr.bf16.mxu0 %v1736
        %3962 = vmatmul.mubr.bf16.gmra.mrb[0].mxu0 %v1735
        %v3963 = vpop.f32.mrb[0].mxu0
        %v3964 = vadd.f32 0.0, %v3963
        %v3965 = vpop.f32.mrb[0].mxu0
        %v3966 = vpop.f32.mrb[0].mxu0
        %v3967 = vadd.f32 0.0, %v3966
        %v3968 = vpop.f32.mrb[0].mxu0
        %3969 = vmatprep.mubr.bf16.mxu0 %v1739
        %3970 = vmatmul.mubr.bf16.gmra.mrb[0].mxu0 %v1738
        %v3971 = vpop.f32.mrb[0].mxu0
        %v3972 = vadd.f32 0.0, %v3971
        %v3973 = vpop.f32.mrb[0].mxu0
        %v3974 = vpop.f32.mrb[0].mxu0
        %v3975 = vadd.f32 0.0, %v3974
        %v3976 = vpop.f32.mrb[0].mxu0
        %3977 = vmatprep.mubr.bf16.mxu0 %v1742
        %3978 = vmatmul.mubr.bf16.gmra.mrb[0].mxu0 %v1741
        %v3979 = vpop.f32.mrb[0].mxu0
        %v3980 = vadd.f32 0.0, %v3979
        %v3981 = vpop.f32.mrb[0].mxu0
        %v3982 = vpop.f32.mrb[0].mxu0
        %v3983 = vadd.f32 0.0, %v3982
        %v3984 = vpop.f32.mrb[0].mxu0
        %3985 = vmatprep.mubr.bf16.mxu0 %v1745
        %3986 = vmatmul.mubr.bf16.gmra.mrb[0].mxu0 %v1744
        %v3987 = vpop.f32.mrb[0].mxu0
        %v3988 = vadd.f32 0.0, %v3987
        %v3989 = vpop.f32.mrb[0].mxu0
        %v3990 = vpop.f32.mrb[0].mxu0
        %v3991 = vadd.f32 0.0, %v3990
        %v3992 = vpop.f32.mrb[0].mxu0
        %3993 = vmatprep.mubr.bf16.mxu0 %v1748
        %3994 = vmatmul.mubr.bf16.gmra.mrb[0].mxu0 %v1747
        %v3995 = vpop.f32.mrb[0].mxu0
        %v3996 = vadd.f32 0.0, %v3995
        %v3997 = vpop.f32.mrb[0].mxu0
        %v3998 = vpop.f32.mrb[0].mxu0
        %v3999 = vadd.f32 0.0, %v3998
        %v4000 = vpop.f32.mrb[0].mxu0
        %4001 = vmatprep.mubr.bf16.mxu0 %v1751
        %4002 = vmatmul.mubr.bf16.gmra.mrb[0].mxu0 %v1750
        %v4003 = vpop.f32.mrb[0].mxu0
        %v4004 = vadd.f32 0.0, %v4003
        %v4005 = vpop.f32.mrb[0].mxu0
        %v4006 = vpop.f32.mrb[0].mxu0
        %v4007 = vadd.f32 0.0, %v4006
        %v4008 = vpop.f32.mrb[0].mxu0
        %4009 = vdwg.mxu0
        %4010 = vmatprep.subr.bf16.mxu0 0
        %4011 = vmatpush1.bf16.msra.mxu0 %v3665
        %4012 = vmatprep.subr.bf16.mxu0 0
        %4013 = vmatpush1.bf16.msra.mxu0 %v3668
        %4014 = vmatprep.subr.bf16.mxu0 0
        %4015 = vmatpush1.bf16.msra.mxu0 %v3671
        %4016 = vmatprep.subr.bf16.mxu0 0
        %4017 = vmatpush1.bf16.msra.mxu0 %v3674
        %4018 = vmatprep.subr.bf16.mxu0 0
        %4019 = vmatpush1.bf16.msra.mxu0 %v3677
        %4020 = vmatprep.subr.bf16.mxu0 0
        %4021 = vmatpush1.bf16.msra.mxu0 %v3680
        %4022 = vmatprep.subr.bf16.mxu0 0
        %4023 = vmatpush1.bf16.msra.mxu0 %v3683
        %4024 = vmatprep.subr.bf16.mxu0 0
        %4025 = vmatpush1.bf16.msra.mxu0 %v3686
        %4026 = vmatprep.subr.bf16.mxu0 0
        %4027 = vmatpush1.bf16.msra.mxu0 0
        %4028 = vmatprep.subr.bf16.mxu0 0
        %4029 = vmatpush1.bf16.msra.mxu0 0
        %4030 = vmatprep.subr.bf16.mxu0 0
        %4031 = vmatpush1.bf16.msra.mxu0 0
        %4032 = vmatprep.subr.bf16.mxu0 0
        %4033 = vmatpush1.bf16.msra.mxu0 0
        %4034 = vmatprep.subr.bf16.mxu0 0
        %4035 = vmatpush1.bf16.msra.mxu0 0
        %4036 = vmatprep.subr.bf16.mxu0 0
        %4037 = vmatpush1.bf16.msra.mxu0 0
        %4038 = vmatprep.subr.bf16.mxu0 0
        %4039 = vmatpush1.bf16.msra.mxu0 0
        %4040 = vmatprep.subr.bf16.mxu0 0
        %4041 = vmatpush1.bf16.msra.mxu0 0
        %4042 = vmatprep.mubr.bf16.mxu0 0
        %4043 = vmatmul.mubr.bf16.gmra.mrb[0].mxu0 %v1731
        %v4044 = vpop.f32.mrb[0].mxu0
        %v4045 = vadd.f32 %v3948, %v4044
        %v4046 = vpop.f32.mrb[0].mxu0
        %v4047 = vpop.f32.mrb[0].mxu0
        %v4048 = vadd.f32 %v3951, %v4047
        %v4049 = vpop.f32.mrb[0].mxu0
        %4050 = vmatprep.mubr.bf16.mxu0 0
        %4051 = vmatmul.mubr.bf16.gmra.mrb[0].mxu0 %v1734
        %v4052 = vpop.f32.mrb[0].mxu0
        %v4053 = vadd.f32 %v3956, %v4052
        %v4054 = vpop.f32.mrb[0].mxu0
        %v4055 = vpop.f32.mrb[0].mxu0
        %v4056 = vadd.f32 %v3959, %v4055
        %v4057 = vpop.f32.mrb[0].mxu0
        %4058 = vmatprep.mubr.bf16.mxu0 0
        %4059 = vmatmul.mubr.bf16.gmra.mrb[0].mxu0 %v1737
        %v4060 = vpop.f32.mrb[0].mxu0
        %v4061 = vadd.f32 %v3964, %v4060
        %v4062 = vpop.f32.mrb[0].mxu0
        %v4063 = vpop.f32.mrb[0].mxu0
        %v4064 = vadd.f32 %v3967, %v4063
        %v4065 = vpop.f32.mrb[0].mxu0
        %4066 = vmatprep.mubr.bf16.mxu0 0
        %4067 = vmatmul.mubr.bf16.gmra.mrb[0].mxu0 %v1740
        %v4068 = vpop.f32.mrb[0].mxu0
        %v4069 = vadd.f32 %v3972, %v4068
        %v4070 = vpop.f32.mrb[0].mxu0
        %v4071 = vpop.f32.mrb[0].mxu0
        %v4072 = vadd.f32 %v3975, %v4071
        %v4073 = vpop.f32.mrb[0].mxu0
        %4074 = vmatprep.mubr.bf16.mxu0 0
        %4075 = vmatmul.mubr.bf16.gmra.mrb[0].mxu0 %v1743
        %v4076 = vpop.f32.mrb[0].mxu0
        %v4077 = vadd.f32 %v3980, %v4076
        %v4078 = vpop.f32.mrb[0].mxu0
        %v4079 = vpop.f32.mrb[0].mxu0
        %v4080 = vadd.f32 %v3983, %v4079
        %v4081 = vpop.f32.mrb[0].mxu0
        %4082 = vmatprep.mubr.bf16.mxu0 0
        %4083 = vmatmul.mubr.bf16.gmra.mrb[0].mxu0 %v1746
        %v4084 = vpop.f32.mrb[0].mxu0
        %v4085 = vadd.f32 %v3988, %v4084
        %v4086 = vpop.f32.mrb[0].mxu0
        %v4087 = vpop.f32.mrb[0].mxu0
        %v4088 = vadd.f32 %v3991, %v4087
        %v4089 = vpop.f32.mrb[0].mxu0
        %4090 = vmatprep.mubr.bf16.mxu0 0
        %4091 = vmatmul.mubr.bf16.gmra.mrb[0].mxu0 %v1749
        %v4092 = vpop.f32.mrb[0].mxu0
        %v4093 = vadd.f32 %v3996, %v4092
        %v4094 = vpop.f32.mrb[0].mxu0
        %v4095 = vpop.f32.mrb[0].mxu0
        %v4096 = vadd.f32 %v3999, %v4095
        %v4097 = vpop.f32.mrb[0].mxu0
        %4098 = vmatprep.mubr.bf16.mxu0 0
        %4099 = vmatmul.mubr.bf16.gmra.mrb[0].mxu0 %v1752
        %v4100 = vpop.f32.mrb[0].mxu0
        %v4101 = vadd.f32 %v4004, %v4100
        %v4102 = vpop.f32.mrb[0].mxu0
        %v4103 = vpop.f32.mrb[0].mxu0
        %v4104 = vadd.f32 %v4007, %v4103
        %v4105 = vpop.f32.mrb[0].mxu0
        %4106 = vdwg.mxu0
        %v4107 = vadd.f32 %v3567, %v3835
        %v4108 = vadd.f32 %v3568, %v3837
        %v4109 = vadd.f32 %v3569, %v4045
        %v4110 = vadd.f32 %v3570, %v3839
        %v4111 = vadd.f32 %v3571, %v3841
        %v4112 = vadd.f32 %v3572, %v4048
        %v4113 = vadd.f32 %v3573, %v3845
        %v4114 = vadd.f32 %v3574, %v3847
        %v4115 = vadd.f32 %v3575, %v4053
        %v4116 = vadd.f32 %v3576, %v3849
        %v4117 = vadd.f32 %v3577, %v3851
        %v4118 = vadd.f32 %v3578, %v4056
        %v4119 = vadd.f32 %v3579, %v3855
        %v4120 = vadd.f32 %v3580, %v3857
        %v4121 = vadd.f32 %v3581, %v4061
        %v4122 = vadd.f32 %v3582, %v3859
        %v4123 = vadd.f32 %v3583, %v3861
        %v4124 = vadd.f32 %v3584, %v4064
        %v4125 = vadd.f32 %v3585, %v3865
        %v4126 = vadd.f32 %v3586, %v3867
        %v4127 = vadd.f32 %v3587, %v4069
        %v4128 = vadd.f32 %v3588, %v3869
        %v4129 = vadd.f32 %v3589, %v3871
        %v4130 = vadd.f32 %v3590, %v4072
        %v4131 = vadd.f32 %v3591, %v3875
        %v4132 = vadd.f32 %v3592, %v3877
        %v4133 = vadd.f32 %v3593, %v4077
        %v4134 = vadd.f32 %v3594, %v3879
        %v4135 = vadd.f32 %v3595, %v3881
        %v4136 = vadd.f32 %v3596, %v4080
        %v4137 = vadd.f32 %v3597, %v3885
        %v4138 = vadd.f32 %v3598, %v3887
        %v4139 = vadd.f32 %v3599, %v4085
        %v4140 = vadd.f32 %v3600, %v3889
        %v4141 = vadd.f32 %v3601, %v3891
        %v4142 = vadd.f32 %v3602, %v4088
        %v4143 = vadd.f32 %v3603, %v3895
        %v4144 = vadd.f32 %v3604, %v3897
        %v4145 = vadd.f32 %v3605, %v4093
        %v4146 = vadd.f32 %v3606, %v3899
        %v4147 = vadd.f32 %v3607, %v3901
        %v4148 = vadd.f32 %v3608, %v4096
        %v4149 = vadd.f32 %v3609, %v3905
        %v4150 = vadd.f32 %v3610, %v3907
        %v4151 = vadd.f32 %v3611, %v4101
        %v4152 = vadd.f32 %v3612, %v3909
        %v4153 = vadd.f32 %v3613, %v3911
        %v4154 = vadd.f32 %v3614, %v4104
        %4155 = vst [vmem:[#allocation5] sm:$0xff] %v4107
        %4156 = vst [vmem:[#allocation5 + $0x8] sm:$0xff] %v4108
        %4157 = vst [vmem:[#allocation5 + $0x10] sm:$0xff] %v4109
        %4158 = vst [vmem:[#allocation5 + $0x18] sm:$0xff] %v4110
        %4159 = vst [vmem:[#allocation5 + $0x20] sm:$0xff] %v4111
        %4160 = vst [vmem:[#allocation5 + $0x28] sm:$0xff] %v4112
        %4161 = vst [vmem:[#allocation5 + $0x30] sm:$0xff] %v4113
        %4162 = vst [vmem:[#allocation5 + $0x38] sm:$0xff] %v4114
        %4163 = vst [vmem:[#allocation5 + $0x40] sm:$0xff] %v4115
        %4164 = vst [vmem:[#allocation5 + $0x48] sm:$0xff] %v4116
        %4165 = vst [vmem:[#allocation5 + $0x50] sm:$0xff] %v4117
        %4166 = vst [vmem:[#allocation5 + $0x58] sm:$0xff] %v4118
        %4167 = vst [vmem:[#allocation5 + $0x60] sm:$0xff] %v4119
        %4168 = vst [vmem:[#allocation5 + $0x68] sm:$0xff] %v4120
        %4169 = vst [vmem:[#allocation5 + $0x70] sm:$0xff] %v4121
        %4170 = vst [vmem:[#allocation5 + $0x78] sm:$0xff] %v4122
        %4171 = vst [vmem:[#allocation5 + $0x80] sm:$0xff] %v4123
        %4172 = vst [vmem:[#allocation5 + $0x88] sm:$0xff] %v4124
        %4173 = vst [vmem:[#allocation5 + $0x90] sm:$0xff] %v4125
        %4174 = vst [vmem:[#allocation5 + $0x98] sm:$0xff] %v4126
        %4175 = vst [vmem:[#allocation5 + $0xa0] sm:$0xff] %v4127
        %4176 = vst [vmem:[#allocation5 + $0xa8] sm:$0xff] %v4128
        %4177 = vst [vmem:[#allocation5 + $0xb0] sm:$0xff] %v4129
        %4178 = vst [vmem:[#allocation5 + $0xb8] sm:$0xff] %v4130
        %4179 = vst [vmem:[#allocation5 + $0xc0] sm:$0xff] %v4131
        %4180 = vst [vmem:[#allocation5 + $0xc8] sm:$0xff] %v4132
        %4181 = vst [vmem:[#allocation5 + $0xd0] sm:$0xff] %v4133
        %4182 = vst [vmem:[#allocation5 + $0xd8] sm:$0xff] %v4134
        %4183 = vst [vmem:[#allocation5 + $0xe0] sm:$0xff] %v4135
        %4184 = vst [vmem:[#allocation5 + $0xe8] sm:$0xff] %v4136
        %4185 = vst [vmem:[#allocation5 + $0xf0] sm:$0xff] %v4137
        %4186 = vst [vmem:[#allocation5 + $0xf8] sm:$0xff] %v4138
        %4187 = vst [vmem:[#allocation5 + $0x100] sm:$0xff] %v4139
        %4188 = vst [vmem:[#allocation5 + $0x108] sm:$0xff] %v4140
        %4189 = vst [vmem:[#allocation5 + $0x110] sm:$0xff] %v4141
        %4190 = vst [vmem:[#allocation5 + $0x118] sm:$0xff] %v4142
        %4191 = vst [vmem:[#allocation5 + $0x120] sm:$0xff] %v4143
        %4192 = vst [vmem:[#allocation5 + $0x128] sm:$0xff] %v4144
        %4193 = vst [vmem:[#allocation5 + $0x130] sm:$0xff] %v4145
        %4194 = vst [vmem:[#allocation5 + $0x138] sm:$0xff] %v4146
        %4195 = vst [vmem:[#allocation5 + $0x140] sm:$0xff] %v4147
        %4196 = vst [vmem:[#allocation5 + $0x148] sm:$0xff] %v4148
        %4197 = vst [vmem:[#allocation5 + $0x150] sm:$0xff] %v4149
        %4198 = vst [vmem:[#allocation5 + $0x158] sm:$0xff] %v4150
        %4199 = vst [vmem:[#allocation5 + $0x160] sm:$0xff] %v4151
        %4200 = vst [vmem:[#allocation5 + $0x168] sm:$0xff] %v4152
        %4201 = vst [vmem:[#allocation5 + $0x170] sm:$0xff] %v4153
        %4202 = vst [vmem:[#allocation5 + $0x178] sm:$0xff] %v4154
        %4203 = vst.msk [vmem:[#allocation3] sm:$0x7] %vm3501, %v2857
      $region48: #{causal_self_attention.2} parent=39 // pred_fallthru
        _
      // Predicated region
      $region49: #{causal_self_attention.2} parent=39 // pred_check
        %p4204 = pneg %p308
      $region50: #{causal_self_attention.2} parent=39 // pred_check_branch
        %4206 = sbr.rel (%p4204) target = $region52
      $region51: #{causal_self_attention.2} parent=39 // pred_region
        %v4207 = vld [vmem:[#allocation4] sm:$0x7]
        %v4208 = vrcp.pop %v4207
        %v4209 = vld [vmem:[#allocation5] sm:$0xff]
        %v4210 = vld [vmem:[#allocation5 + $0x8] sm:$0xff]
        %v4211 = vld [vmem:[#allocation5 + $0x10] sm:$0xff]
        %v4212 = vld [vmem:[#allocation5 + $0x18] sm:$0xff]
        %v4213 = vld [vmem:[#allocation5 + $0x20] sm:$0xff]
        %v4214 = vld [vmem:[#allocation5 + $0x28] sm:$0xff]
        %v4215 = vld [vmem:[#allocation5 + $0x30] sm:$0xff]
        %v4216 = vld [vmem:[#allocation5 + $0x38] sm:$0xff]
        %v4217 = vld [vmem:[#allocation5 + $0x40] sm:$0xff]
        %v4218 = vld [vmem:[#allocation5 + $0x48] sm:$0xff]
        %v4219 = vld [vmem:[#allocation5 + $0x50] sm:$0xff]
        %v4220 = vld [vmem:[#allocation5 + $0x58] sm:$0xff]
        %v4221 = vld [vmem:[#allocation5 + $0x60] sm:$0xff]
        %v4222 = vld [vmem:[#allocation5 + $0x68] sm:$0xff]
        %v4223 = vld [vmem:[#allocation5 + $0x70] sm:$0xff]
        %v4224 = vld [vmem:[#allocation5 + $0x78] sm:$0xff]
        %v4225 = vld [vmem:[#allocation5 + $0x80] sm:$0xff]
        %v4226 = vld [vmem:[#allocation5 + $0x88] sm:$0xff]
        %v4227 = vld [vmem:[#allocation5 + $0x90] sm:$0xff]
        %v4228 = vld [vmem:[#allocation5 + $0x98] sm:$0xff]
        %v4229 = vld [vmem:[#allocation5 + $0xa0] sm:$0xff]
        %v4230 = vld [vmem:[#allocation5 + $0xa8] sm:$0xff]
        %v4231 = vld [vmem:[#allocation5 + $0xb0] sm:$0xff]
        %v4232 = vld [vmem:[#allocation5 + $0xb8] sm:$0xff]
        %v4233 = vld [vmem:[#allocation5 + $0xc0] sm:$0xff]
        %v4234 = vld [vmem:[#allocation5 + $0xc8] sm:$0xff]
        %v4235 = vld [vmem:[#allocation5 + $0xd0] sm:$0xff]
        %v4236 = vld [vmem:[#allocation5 + $0xd8] sm:$0xff]
        %v4237 = vld [vmem:[#allocation5 + $0xe0] sm:$0xff]
        %v4238 = vld [vmem:[#allocation5 + $0xe8] sm:$0xff]
        %v4239 = vld [vmem:[#allocation5 + $0xf0] sm:$0xff]
        %v4240 = vld [vmem:[#allocation5 + $0xf8] sm:$0xff]
        %v4241 = vld [vmem:[#allocation5 + $0x100] sm:$0xff]
        %v4242 = vld [vmem:[#allocation5 + $0x108] sm:$0xff]
        %v4243 = vld [vmem:[#allocation5 + $0x110] sm:$0xff]
        %v4244 = vld [vmem:[#allocation5 + $0x118] sm:$0xff]
        %v4245 = vld [vmem:[#allocation5 + $0x120] sm:$0xff]
        %v4246 = vld [vmem:[#allocation5 + $0x128] sm:$0xff]
        %v4247 = vld [vmem:[#allocation5 + $0x130] sm:$0xff]
        %v4248 = vld [vmem:[#allocation5 + $0x138] sm:$0xff]
        %v4249 = vld [vmem:[#allocation5 + $0x140] sm:$0xff]
        %v4250 = vld [vmem:[#allocation5 + $0x148] sm:$0xff]
        %v4251 = vld [vmem:[#allocation5 + $0x150] sm:$0xff]
        %v4252 = vld [vmem:[#allocation5 + $0x158] sm:$0xff]
        %v4253 = vld [vmem:[#allocation5 + $0x160] sm:$0xff]
        %v4254 = vld [vmem:[#allocation5 + $0x168] sm:$0xff]
        %v4255 = vld [vmem:[#allocation5 + $0x170] sm:$0xff]
        %v4256 = vld [vmem:[#allocation5 + $0x178] sm:$0xff]
        %v4258 = vlaneseq
        %v4259 = vshrl.u32 %v4258, 7
        %v4260 = vsub.s32 0, %v4259
        %v4261 = vrot.slane %v4208, %v4260
        %v4262 = vlaneseq
        %v4263 = vshrl.u32 %v4262, 7
        %v4264 = vsub.s32 1, %v4263
        %v4265 = vrot.slane %v4208, %v4264
        %v4266 = vlaneseq
        %v4267 = vshrl.u32 %v4266, 7
        %v4268 = vsub.s32 2, %v4267
        %v4269 = vrot.slane %v4208, %v4268
        %v4273 = vmul.f32 %v4209, %v4261
        %v4274 = vmul.f32 %v4210, %v4265
        %v4275 = vmul.f32 %v4211, %v4269
        %v4276 = vmul.f32 %v4212, %v4261
        %v4277 = vmul.f32 %v4213, %v4265
        %v4278 = vmul.f32 %v4214, %v4269
        %v4279 = vmul.f32 %v4215, %v4261
        %v4280 = vmul.f32 %v4216, %v4265
        %v4281 = vmul.f32 %v4217, %v4269
        %v4282 = vmul.f32 %v4218, %v4261
        %v4283 = vmul.f32 %v4219, %v4265
        %v4284 = vmul.f32 %v4220, %v4269
        %v4285 = vmul.f32 %v4221, %v4261
        %v4286 = vmul.f32 %v4222, %v4265
        %v4287 = vmul.f32 %v4223, %v4269
        %v4288 = vmul.f32 %v4224, %v4261
        %v4289 = vmul.f32 %v4225, %v4265
        %v4290 = vmul.f32 %v4226, %v4269
        %v4291 = vmul.f32 %v4227, %v4261
        %v4292 = vmul.f32 %v4228, %v4265
        %v4293 = vmul.f32 %v4229, %v4269
        %v4294 = vmul.f32 %v4230, %v4261
        %v4295 = vmul.f32 %v4231, %v4265
        %v4296 = vmul.f32 %v4232, %v4269
        %v4297 = vmul.f32 %v4233, %v4261
        %v4298 = vmul.f32 %v4234, %v4265
        %v4299 = vmul.f32 %v4235, %v4269
        %v4300 = vmul.f32 %v4236, %v4261
        %v4301 = vmul.f32 %v4237, %v4265
        %v4302 = vmul.f32 %v4238, %v4269
        %v4303 = vmul.f32 %v4239, %v4261
        %v4304 = vmul.f32 %v4240, %v4265
        %v4305 = vmul.f32 %v4241, %v4269
        %v4306 = vmul.f32 %v4242, %v4261
        %v4307 = vmul.f32 %v4243, %v4265
        %v4308 = vmul.f32 %v4244, %v4269
        %v4309 = vmul.f32 %v4245, %v4261
        %v4310 = vmul.f32 %v4246, %v4265
        %v4311 = vmul.f32 %v4247, %v4269
        %v4312 = vmul.f32 %v4248, %v4261
        %v4313 = vmul.f32 %v4249, %v4265
        %v4314 = vmul.f32 %v4250, %v4269
        %v4315 = vmul.f32 %v4251, %v4261
        %v4316 = vmul.f32 %v4252, %v4265
        %v4317 = vmul.f32 %v4253, %v4269
        %v4318 = vmul.f32 %v4254, %v4261
        %v4319 = vmul.f32 %v4255, %v4265
        %v4320 = vmul.f32 %v4256, %v4269
        %v4321 = vpack.c.bf16 %v4276, %v4273
        %v4322 = vpack.c.bf16 %v4277, %v4274
        %v4323 = vpack.c.bf16 %v4278, %v4275
        %v4324 = vpack.c.bf16 %v4282, %v4279
        %v4325 = vpack.c.bf16 %v4283, %v4280
        %v4326 = vpack.c.bf16 %v4284, %v4281
        %v4327 = vpack.c.bf16 %v4288, %v4285
        %v4328 = vpack.c.bf16 %v4289, %v4286
        %v4329 = vpack.c.bf16 %v4290, %v4287
        %v4330 = vpack.c.bf16 %v4294, %v4291
        %v4331 = vpack.c.bf16 %v4295, %v4292
        %v4332 = vpack.c.bf16 %v4296, %v4293
        %v4333 = vpack.c.bf16 %v4300, %v4297
        %v4334 = vpack.c.bf16 %v4301, %v4298
        %v4335 = vpack.c.bf16 %v4302, %v4299
        %v4336 = vpack.c.bf16 %v4306, %v4303
        %v4337 = vpack.c.bf16 %v4307, %v4304
        %v4338 = vpack.c.bf16 %v4308, %v4305
        %v4339 = vpack.c.bf16 %v4312, %v4309
        %v4340 = vpack.c.bf16 %v4313, %v4310
        %v4341 = vpack.c.bf16 %v4314, %v4311
        %v4342 = vpack.c.bf16 %v4318, %v4315
        %v4343 = vpack.c.bf16 %v4319, %v4316
        %v4344 = vpack.c.bf16 %v4320, %v4317
        %v4369 = vunpack.c.l.b16 %v4321
        %v4370 = vunpack.c.l.b16 %v4322
        %v4371 = vunpack.c.l.b16 %v4323
        %v4372 = vunpack.c.h.b16 %v4321
        %v4373 = vunpack.c.h.b16 %v4322
        %v4374 = vunpack.c.h.b16 %v4323
        %v4375 = vunpack.c.l.b16 %v4324
        %v4376 = vunpack.c.l.b16 %v4325
        %v4377 = vunpack.c.l.b16 %v4326
        %v4378 = vunpack.c.h.b16 %v4324
        %v4379 = vunpack.c.h.b16 %v4325
        %v4380 = vunpack.c.h.b16 %v4326
        %v4381 = vunpack.c.l.b16 %v4327
        %v4382 = vunpack.c.l.b16 %v4328
        %v4383 = vunpack.c.l.b16 %v4329
        %v4384 = vunpack.c.h.b16 %v4327
        %v4385 = vunpack.c.h.b16 %v4328
        %v4386 = vunpack.c.h.b16 %v4329
        %v4387 = vunpack.c.l.b16 %v4330
        %v4388 = vunpack.c.l.b16 %v4331
        %v4389 = vunpack.c.l.b16 %v4332
        %v4390 = vunpack.c.h.b16 %v4330
        %v4391 = vunpack.c.h.b16 %v4331
        %v4392 = vunpack.c.h.b16 %v4332
        %v4393 = vunpack.c.l.b16 %v4333
        %v4394 = vunpack.c.l.b16 %v4334
        %v4395 = vunpack.c.l.b16 %v4335
        %v4396 = vunpack.c.h.b16 %v4333
        %v4397 = vunpack.c.h.b16 %v4334
        %v4398 = vunpack.c.h.b16 %v4335
        %v4399 = vunpack.c.l.b16 %v4336
        %v4400 = vunpack.c.l.b16 %v4337
        %v4401 = vunpack.c.l.b16 %v4338
        %v4402 = vunpack.c.h.b16 %v4336
        %v4403 = vunpack.c.h.b16 %v4337
        %v4404 = vunpack.c.h.b16 %v4338
        %v4405 = vunpack.c.l.b16 %v4339
        %v4406 = vunpack.c.l.b16 %v4340
        %v4407 = vunpack.c.l.b16 %v4341
        %v4408 = vunpack.c.h.b16 %v4339
        %v4409 = vunpack.c.h.b16 %v4340
        %v4410 = vunpack.c.h.b16 %v4341
        %v4411 = vunpack.c.l.b16 %v4342
        %v4412 = vunpack.c.l.b16 %v4343
        %v4413 = vunpack.c.l.b16 %v4344
        %v4414 = vunpack.c.h.b16 %v4342
        %v4415 = vunpack.c.h.b16 %v4343
        %v4416 = vunpack.c.h.b16 %v4344
        %v4417 = vpack.c.b16 %v4370, %v4369
        %v4418 = vpack.c.b16 %v4371, %v4371
        %v4419 = vpack.c.b16 %v4373, %v4372
        %v4420 = vpack.c.b16 %v4374, %v4374
        %v4421 = vpack.c.b16 %v4376, %v4375
        %v4422 = vpack.c.b16 %v4377, %v4377
        %v4423 = vpack.c.b16 %v4379, %v4378
        %v4424 = vpack.c.b16 %v4380, %v4380
        %v4425 = vpack.c.b16 %v4382, %v4381
        %v4426 = vpack.c.b16 %v4383, %v4383
        %v4427 = vpack.c.b16 %v4385, %v4384
        %v4428 = vpack.c.b16 %v4386, %v4386
        %v4429 = vpack.c.b16 %v4388, %v4387
        %v4430 = vpack.c.b16 %v4389, %v4389
        %v4431 = vpack.c.b16 %v4391, %v4390
        %v4432 = vpack.c.b16 %v4392, %v4392
        %v4433 = vpack.c.b16 %v4394, %v4393
        %v4434 = vpack.c.b16 %v4395, %v4395
        %v4435 = vpack.c.b16 %v4397, %v4396
        %v4436 = vpack.c.b16 %v4398, %v4398
        %v4437 = vpack.c.b16 %v4400, %v4399
        %v4438 = vpack.c.b16 %v4401, %v4401
        %v4439 = vpack.c.b16 %v4403, %v4402
        %v4440 = vpack.c.b16 %v4404, %v4404
        %v4441 = vpack.c.b16 %v4406, %v4405
        %v4442 = vpack.c.b16 %v4407, %v4407
        %v4443 = vpack.c.b16 %v4409, %v4408
        %v4444 = vpack.c.b16 %v4410, %v4410
        %v4445 = vpack.c.b16 %v4412, %v4411
        %v4446 = vpack.c.b16 %v4413, %v4413
        %v4447 = vpack.c.b16 %v4415, %v4414
        %v4448 = vpack.c.b16 %v4416, %v4416
        %4481 = vst [vmem:[%s305] sm:$0xff] %v4417
        %4482 = vst [vmem:[%s305 + $0x8] sm:$0xf] %v4418
        %4483 = vst [vmem:[%s305 + $0xc] sm:$0xff] %v4419
        %4484 = vst [vmem:[%s305 + $0x14] sm:$0xf] %v4420
        %4485 = vst [vmem:[%s305 + $0x18] sm:$0xff] %v4421
        %4486 = vst [vmem:[%s305 + $0x20] sm:$0xf] %v4422
        %4487 = vst [vmem:[%s305 + $0x24] sm:$0xff] %v4423
        %4488 = vst [vmem:[%s305 + $0x2c] sm:$0xf] %v4424
        %4489 = vst [vmem:[%s305 + $0x30] sm:$0xff] %v4425
        %4490 = vst [vmem:[%s305 + $0x38] sm:$0xf] %v4426
        %4491 = vst [vmem:[%s305 + $0x3c] sm:$0xff] %v4427
        %4492 = vst [vmem:[%s305 + $0x44] sm:$0xf] %v4428
        %4493 = vst [vmem:[%s305 + $0x48] sm:$0xff] %v4429
        %4494 = vst [vmem:[%s305 + $0x50] sm:$0xf] %v4430
        %4495 = vst [vmem:[%s305 + $0x54] sm:$0xff] %v4431
        %4496 = vst [vmem:[%s305 + $0x5c] sm:$0xf] %v4432
        %4497 = vst [vmem:[%s305 + $0x60] sm:$0xff] %v4433
        %4498 = vst [vmem:[%s305 + $0x68] sm:$0xf] %v4434
        %4499 = vst [vmem:[%s305 + $0x6c] sm:$0xff] %v4435
        %4500 = vst [vmem:[%s305 + $0x74] sm:$0xf] %v4436
        %4501 = vst [vmem:[%s305 + $0x78] sm:$0xff] %v4437
        %4502 = vst [vmem:[%s305 + $0x80] sm:$0xf] %v4438
        %4503 = vst [vmem:[%s305 + $0x84] sm:$0xff] %v4439
        %4504 = vst [vmem:[%s305 + $0x8c] sm:$0xf] %v4440
        %4505 = vst [vmem:[%s305 + $0x90] sm:$0xff] %v4441
        %4506 = vst [vmem:[%s305 + $0x98] sm:$0xf] %v4442
        %4507 = vst [vmem:[%s305 + $0x9c] sm:$0xff] %v4443
        %4508 = vst [vmem:[%s305 + $0xa4] sm:$0xf] %v4444
        %4509 = vst [vmem:[%s305 + $0xa8] sm:$0xff] %v4445
        %4510 = vst [vmem:[%s305 + $0xb0] sm:$0xf] %v4446
        %4511 = vst [vmem:[%s305 + $0xb4] sm:$0xff] %v4447
        %4512 = vst [vmem:[%s305 + $0xbc] sm:$0xf] %v4448
      $region52: #{causal_self_attention.2} parent=39 // pred_fallthru
        _
      %s4513 = smul.u32 3, %s22
      %p4514 = scmp.lt.s32.totalorder %s21, 1
      %s4515 = scalar_select %p4514, %s21, 1
      %p4516 = scmp.lt.s32.totalorder %s4513, 2
      %s4517 = scalar_select %p4516, %s4513, 2
      %s4518 = smul.addr %s4515, 48
      %s4519 = sadd.s32 %s4517, %s4518
      %s4520 = smul.addr %s4519, 4
      %s4521 = scalar_lea.vmem %s5, %s4520
      // Predicated region
      $region53: #{causal_self_attention.2} parent=39 // pred_check
        %p4522 = pneg %p174
      $region54: #{causal_self_attention.2} parent=39 // pred_check_branch
        %4524 = sbr.rel (%p4522) target = $region56
      $region55: #{causal_self_attention.2} parent=39 // pred_region
        %s4525 = smul.u32 3, %s22
      $region56: #{causal_self_attention.2} parent=39 // pred_fallthru
        _
    $region40: #{causal_self_attention.2} parent=5 // pred_fallthru
      _
    %p4526 = scmp.le.s32.totalorder 2, %s11
    // Predicated region
    $region57: #{causal_self_attention.2} parent=5 // pred_check
      %p4527 = pneg %p4526
    $region58: #{causal_self_attention.2} parent=5 // pred_check_branch
      %4529 = sbr.rel (%p4527) target = $region60
    $region59: #{causal_self_attention.2} parent=5 // pred_region
      %s4530 = ssub.s32 %s11, 2
      // Predicated region
      $region61: #{causal_self_attention.2} parent=59 // pred_check
        %p4531 = pneg %p180
      $region62: #{causal_self_attention.2} parent=59 // pred_check_branch
        %4533 = sbr.rel (%p4531) target = $region64
      $region63: #{causal_self_attention.2} parent=59 // pred_region
        %s4534 = smul.u32 3, %s25
        %p4535 = scmp.lt.s32.totalorder %s24, 1
        %s4536 = scalar_select %p4535, %s24, 1
        %p4537 = scmp.lt.s32.totalorder %s4534, 2
        %s4538 = scalar_select %p4537, %s4534, 2
        %s4539 = smul.addr %s4536, 48
        %s4540 = sadd.s32 %s4538, %s4539
        %s4541 = smul.addr %s4540, 4
        %s4542 = scalar_lea.vmem %s5, %s4541
      $region64: #{causal_self_attention.2} parent=59 // pred_fallthru
        _
    $region60: #{causal_self_attention.2} parent=5 // pred_fallthru
      _
  $region6: #{causal_self_attention.2} parent=0 // loop_footer
    %s15 = sadd.s32 1, %s11
  $region7: #{causal_self_attention.2} parent=0 // loop_footer_branch
    %10 = sbr.rel target = $region3
  $region8: #{causal_self_attention.2} parent=0 // loop_exit
    _

</llo_original>
